<compile_context>
chip_gen: v6e
topology: v6e:2x2x1
jax: 0.10.0
libtpu: 0.0.40
codegen_flags: <defaults>
</compile_context>

<pallas_src>
import jax
import jax.numpy as jnp
from jax.experimental import pallas as pl
from jax.experimental.pallas import tpu as pltpu

C = 14               # feature channels
HALF = 15            # half sequence length (even / odd split)
T = 2 * HALF         # input sequence length (30)
FLAT = C * HALF      # 210: one flattened (channel, time) half
D_FC7 = 64
NGROUP = 32          # padded softmax group count (28 or 30 real groups)
MAX_B_TILE = 128     # rows per grid step (multiple of 8; fills the v5e MXU; v6e/v7x
                     # could use 256 - VMEM use stays tiny either way)
F32 = jnp.float32


def _round_up(n, m):
    return ((n + m - 1) // m) * m


# ---------------------------------------------------------------------------
# Kernel
# ---------------------------------------------------------------------------
def _grouped_softmax(logits, g, gt):
    """Softmax over fixed-size groups of consecutive lanes.

    g  : (L, NGROUP) 0/1 lane->group indicator (zero-padded groups are harmless)
    gt : (NGROUP, L) its transpose.  The per-row shift keeps the softmax exact.
    """
    m = jnp.max(logits, axis=-1, keepdims=True)
    e = jnp.exp(logits - m)
    gsum = jnp.dot(e, g, preferred_element_type=F32)       # (rows, NGROUP)
    denom = jnp.dot(gsum, gt, preferred_element_type=F32)  # broadcast back to lanes
    return e * pl.reciprocal(jnp.maximum(denom, 1e-30), approx=True)


def encoder_kernel(xcr_ref, xtr_ref, kmats_ref, bvecs_ref, mn_ref, g_ref, gt_ref,
                   tail_ref, out_ref):
    # xcr: (BT, 420) = [even | odd], channel-major flattening (lane index c*15 + t)
    # xtr: (BT, 420) = [even^T("a") | odd^T("b")], time-major (lane index t*14 + c)
    xcr = xcr_ref[...]
    xtr = xtr_ref[...]

    # ---- mWDN_RCF low-pass (xiaobo / xiaobo1), both halves fused in one matmul ----
    # TODO(synk): xiaobo.mWDN_RCF source is unavailable; stand-in is the canonical
    # mWDN low-pass step low = sigmoid(x @ W_l + b_l), length preserving, shared
    # across the 14 feature channels (block-diagonal kron(I14, W_l) weight).
    low = jax.nn.sigmoid(
        jnp.dot(xcr, kmats_ref[0], preferred_element_type=F32) + bvecs_ref[0])

    # ---- even half: Conv1d(14,14,k=3,pad=1)+residual | odd half: Dynamic_conv1d ----
    # TODO(synk): DTcov.Dynamic_conv1d source is unavailable; stand-in is a static
    # pointwise (k=1) conv.  Both convs + residuals are folded into one
    # block-diagonal 420x420 weight (identity added for the residual).
    lc = jnp.dot(low, kmats_ref[1], preferred_element_type=F32) + bvecs_ref[1]

    # ---- VariableSelectionNetworks -------------------------------------------------
    # TODO(synk): real TFT.VariableSelectionNetwork (per-variable GRNs) is unavailable;
    # stand-in is the same softmax-gated linear embedding as the previous version.
    # vsn1 / vsn3 over the 15 time variables (groups of 15 consecutive lanes):
    logit_cr = jnp.dot(lc, kmats_ref[2], preferred_element_type=F32) + bvecs_ref[2]
    w_cr = _grouped_softmax(logit_cr, g_ref[0], gt_ref[0])
    # vsn8 (on even^T == "a") and vsn7 (on odd^T == "b") over the 14 channel variables:
    logit_tr = jnp.dot(xtr, kmats_ref[3], preferred_element_type=F32) + bvecs_ref[3]
    w_tr = _grouped_softmax(logit_tr, g_ref[1], gt_ref[1])

    # ---- fc7: VSN embedding weights pre-fused with the per-segment fc7 weights -----
    h = (jnp.dot(w_cr * lc, mn_ref[0], preferred_element_type=F32)
         + jnp.dot(w_cr, mn_ref[1], preferred_element_type=F32)
         + jnp.dot(w_tr * xtr, mn_ref[2], preferred_element_type=F32)
         + jnp.dot(w_tr, mn_ref[3], preferred_element_type=F32)
         + tail_ref[0])                                    # (BT, 64) == fc7 output
    # dropout(p=0.1) is identity at inference time.

    # ---- fc8, emitted lane-dense as a (1, BT) row ----------------------------------
    w8_row = tail_ref[1]                                   # (1, 64) = fc8 weight^T
    b8 = tail_ref[2][:, 0:1]                               # (1, 1)
    y_row = jax.lax.dot_general(w8_row, h, (((1,), (1,)), ((), ())),
                                preferred_element_type=F32) + b8
    out_ref[0] = y_row


# ---------------------------------------------------------------------------
# Parameters (deterministic synthetic init, shapes from Encoder.__init__)
# ---------------------------------------------------------------------------
def init_params(key):
    def nrm(k, shape, scale=0.3):
        return scale * jax.random.normal(k, shape, F32)

    keys = iter(jax.random.split(key, 40))
    p = {}
    # xiaobo / xiaobo1 low-pass linear (15 -> 15)
    p["wxl_e"] = nrm(next(keys), (HALF, HALF)); p["bxl_e"] = nrm(next(keys), (1, HALF))
    p["wxl_o"] = nrm(next(keys), (HALF, HALF)); p["bxl_o"] = nrm(next(keys), (1, HALF))
    # Conv1d(14, 14, k=3, pad=1)
    conv_w = nrm(next(keys), (C, C, 3))
    p["cw0"], p["cw1"], p["cw2"] = conv_w[:, :, 0], conv_w[:, :, 1], conv_w[:, :, 2]
    p["cb"] = nrm(next(keys), (C, 1))
    # Dynamic_conv1d(14, 14, 1) stand-in (pointwise)
    p["dtw"] = nrm(next(keys), (C, C)); p["dtb"] = nrm(next(keys), (C, 1))
    # VariableSelectionNetworks: vsn1/vsn3 over 15 vars, vsn7/vsn8 over 14 vars
    for name, n in (("v1", HALF), ("v3", HALF), ("v7", C), ("v8", C)):
        p[name + "ws"] = nrm(next(keys), (n, n)); p[name + "bs"] = nrm(next(keys), (1, n))
        p[name + "we"] = nrm(next(keys), (n, n)); p[name + "be"] = nrm(next(keys), (n, n))
    # fc7: Linear(840, 64) acting on flatten((14, 60)) row-major; fc8: Linear(64, 1)
    p["w7"] = nrm(next(keys), (C * 4 * HALF, D_FC7), scale=0.05)
    p["b7"] = nrm(next(keys), (1, D_FC7), scale=0.05)
    p["w8"] = nrm(next(keys), (D_FC7, 1), scale=0.05)
    p["b8"] = nrm(next(keys), (1, 1), scale=0.05)
    return p


def pack_params(p):
    """Precompute the block-diagonal / fused weights consumed by the kernel (runs once)."""
    I14 = jnp.eye(C, dtype=F32)
    I15 = jnp.eye(HALF, dtype=F32)
    I210 = jnp.eye(FLAT, dtype=F32)

    def blkdiag(a, b):
        za = jnp.zeros((a.shape[0], b.shape[1]), F32)
        zb = jnp.zeros((b.shape[0], a.shape[1]), F32)
        return jnp.concatenate(
            [jnp.concatenate([a, za], 1), jnp.concatenate([zb, b], 1)], 0)

    # mWDN low-pass (time-dim linear, shared over channels): kron(I_channels, W_l)
    k_xl = blkdiag(jnp.kron(I14, p["wxl_e"]), jnp.kron(I14, p["wxl_o"]))
    b_xl = jnp.concatenate([jnp.tile(p["bxl_e"], (1, C)),
                            jnp.tile(p["bxl_o"], (1, C))], axis=1)

    # even: Conv1d(k=3, pad=1) + residual;  odd: pointwise dyn-conv stand-in + residual
    s_m1 = jnp.eye(HALF, k=1, dtype=F32)    # selects x[:, t-1]   (zero-padded boundary)
    s_p1 = jnp.eye(HALF, k=-1, dtype=F32)   # selects x[:, t+1]
    k_conv = (jnp.kron(p["cw0"].T, s_m1) + jnp.kron(p["cw1"].T, I15)
              + jnp.kron(p["cw2"].T, s_p1) + I210)
    k_dt = jnp.kron(p["dtw"].T, I15) + I210
    k_cv = blkdiag(k_conv, k_dt)
    b_cv = jnp.concatenate([jnp.repeat(p["cb"][:, 0], HALF),
                            jnp.repeat(p["dtb"][:, 0], HALF)])[None, :]

    # VSN selection (softmax-logit) weights
    k_sel_cr = blkdiag(jnp.kron(I14, p["v1ws"]), jnp.kron(I14, p["v3ws"]))
    b_sel_cr = jnp.concatenate([jnp.tile(p["v1bs"], (1, C)),
                                jnp.tile(p["v3bs"], (1, C))], axis=1)
    k_sel_tr = blkdiag(jnp.kron(I15, p["v8ws"]), jnp.kron(I15, p["v7ws"]))
    b_sel_tr = jnp.concatenate([jnp.tile(p["v8bs"], (1, HALF)),
                                jnp.tile(p["v7bs"], (1, HALF))], axis=1)

    # fc7 weight split per concat segment (row index = c*60 + seg*15 + t) and fused
    # with the VSN embedding weights -> four (420, 64) matrices.
    w7r = p["w7"].reshape(C, 4, HALF, D_FC7)
    w7a = w7r[:, 0].reshape(FLAT, D_FC7)                               # even_sel  (lanes c*15+t)
    w7b = jnp.transpose(w7r[:, 1], (1, 0, 2)).reshape(FLAT, D_FC7)     # vsn7^T    (lanes t*14+c)
    w7c = w7r[:, 2].reshape(FLAT, D_FC7)                               # odd_sel
    w7d = jnp.transpose(w7r[:, 3], (1, 0, 2)).reshape(FLAT, D_FC7)     # vsn8^T
    m_cr = jnp.concatenate([jnp.kron(I14, p["v1we"]) @ w7a,
                            jnp.kron(I14, p["v3we"]) @ w7c], 0)
    n_cr = jnp.concatenate([jnp.kron(I14, p["v1be"]) @ w7a,
                            jnp.kron(I14, p["v3be"]) @ w7c], 0)
    m_tr = jnp.concatenate([jnp.kron(I15, p["v8we"]) @ w7d,
                            jnp.kron(I15, p["v7we"]) @ w7b], 0)
    n_tr = jnp.concatenate([jnp.kron(I15, p["v8be"]) @ w7d,
                            jnp.kron(I15, p["v7be"]) @ w7b], 0)

    # group-indicator matrices for the lane-grouped softmax (padded to NGROUP groups)
    lanes = jnp.arange(2 * FLAT)
    g_cr = (lanes[:, None] // HALF == jnp.arange(NGROUP)[None, :]).astype(F32)  # 28 real
    g_tr = (lanes[:, None] // C == jnp.arange(NGROUP)[None, :]).astype(F32)     # 30 real

    return dict(
        kmats=jnp.stack([k_xl, k_cv, k_sel_cr, k_sel_tr]),        # (4, 420, 420)
        bvecs=jnp.stack([b_xl, b_cv, b_sel_cr, b_sel_tr]),        # (4, 1, 420)
        mnmats=jnp.stack([m_cr, n_cr, m_tr, n_tr]),               # (4, 420, 64)
        gmats=jnp.stack([g_cr, g_tr]),                            # (2, 420, 32)
        gtmats=jnp.stack([g_cr.T, g_tr.T]),                       # (2, 32, 420)
        tail=jnp.stack([p["b7"], p["w8"].T,
                        jnp.pad(p["b8"], ((0, 0), (0, D_FC7 - 1)))]),  # (3, 1, 64)
    )


# ---------------------------------------------------------------------------
# Wrapper
# ---------------------------------------------------------------------------
@jax.jit
def encoder_forward(x, packed):
    B = x.shape[0]
    b_tile = min(MAX_B_TILE, _round_up(B, 8))
    b_pad = _round_up(B, b_tile)
    num_tiles = b_pad // b_tile

    # Layout plumbing (tiny, done in XLA): even/odd split and the two flattenings.
    xt = jnp.transpose(x, (0, 2, 1))                      # (B, C, T) == x.permute(0, 2, 1)
    even = xt[:, :, 0::2]                                  # (B, C, 15)  == out_even
    odd = xt[:, :, 1::2]                                   # (B, C, 15)  == out_odd
    acts_cr = jnp.concatenate([even.reshape(B, FLAT),
                               odd.reshape(B, FLAT)], axis=-1)                 # (B, 420)
    acts_tr = jnp.concatenate([jnp.transpose(even, (0, 2, 1)).reshape(B, FLAT),  # "a"
                               jnp.transpose(odd, (0, 2, 1)).reshape(B, FLAT)],  # "b"
                              axis=-1)                                          # (B, 420)
    acts_cr = jnp.pad(acts_cr, ((0, b_pad - B), (0, 0)))
    acts_tr = jnp.pad(acts_tr, ((0, b_pad - B), (0, 0)))

    weights = [packed[k] for k in ("kmats", "bvecs", "mnmats", "gmats", "gtmats", "tail")]

    def full_spec(a):
        nd = a.ndim
        return pl.BlockSpec(a.shape, lambda i, _nd=nd: (0,) * _nd)

    in_specs = ([pl.BlockSpec((b_tile, 2 * FLAT), lambda i: (i, 0)),
                 pl.BlockSpec((b_tile, 2 * FLAT), lambda i: (i, 0))]
                + [full_spec(w) for w in weights])

    y = pl.pallas_call(
        encoder_kernel,
        out_shape=jax.ShapeDtypeStruct((num_tiles, 1, b_tile), F32),
        grid=(num_tiles,),
        in_specs=in_specs,
        out_specs=pl.BlockSpec((1, 1, b_tile), lambda i: (i, 0, 0)),
        compiler_params=pltpu.CompilerParams(dimension_semantics=("parallel",)),
    )(acts_cr, acts_tr, *weights)

    return y.reshape(-1)[:B].reshape(B, 1)


if __name__ == "__main__":
    key = jax.random.PRNGKey(0)
    pkey, xkey = jax.random.split(key)
    params = init_params(pkey)
    packed = pack_params(params)           # host-side weight packing, done once

    B = 2
    x = jax.random.normal(xkey, (B, T, C), F32)     # (2, 30, 14)

    y = encoder_forward(x, packed)
    jax.block_until_ready(y)
    assert y.shape == (B, 1) and y.dtype == jnp.float32
    assert bool(jnp.all(jnp.isfinite(y)))
    print("KERNEL_OK")
</pallas_src>

<mosaic_0001>
module attributes {stable_mosaic.version = 11 : i64} {
  func.func @encoder_kernel(%arg0: i32, %arg1: memref<8x420xf32, #tpu.memory_space<vmem>>, %arg2: memref<8x420xf32, #tpu.memory_space<vmem>>, %arg3: memref<4x420x420xf32, #tpu.memory_space<vmem>>, %arg4: memref<4x1x420xf32, #tpu.memory_space<vmem>>, %arg5: memref<4x420x64xf32, #tpu.memory_space<vmem>>, %arg6: memref<2x420x32xf32, #tpu.memory_space<vmem>>, %arg7: memref<2x32x420xf32, #tpu.memory_space<vmem>>, %arg8: memref<3x1x64xf32, #tpu.memory_space<vmem>>, %arg9: memref<1x1x8xf32, #tpu.memory_space<vmem>>) attributes {dimension_semantics = [#tpu.dimension_semantics<parallel>], iteration_bounds = array<i64: 1>, scalar_prefetch = 0 : i64, scratch_operands = 0 : i64, tpu.core_type = #tpu.core_type<tc>, window_params = [{transform_indices = @transform_0, window_bounds = array<i64: 8, 420>}, {transform_indices = @transform_1, window_bounds = array<i64: 8, 420>}, {pipeline_mode = #tpu.pipeline_mode<synchronous>, transform_indices = @transform_2, window_bounds = array<i64: 4, 420, 420>}, {pipeline_mode = #tpu.pipeline_mode<synchronous>, transform_indices = @transform_3, window_bounds = array<i64: 4, 1, 420>}, {pipeline_mode = #tpu.pipeline_mode<synchronous>, transform_indices = @transform_4, window_bounds = array<i64: 4, 420, 64>}, {pipeline_mode = #tpu.pipeline_mode<synchronous>, transform_indices = @transform_5, window_bounds = array<i64: 2, 420, 32>}, {pipeline_mode = #tpu.pipeline_mode<synchronous>, transform_indices = @transform_6, window_bounds = array<i64: 2, 32, 420>}, {pipeline_mode = #tpu.pipeline_mode<synchronous>, transform_indices = @transform_7, window_bounds = array<i64: 3, 1, 64>}, {transform_indices = @transform_8, window_bounds = array<i64: 1, 1, 8>}]} {
    %c0 = arith.constant 0 : index
    %c0_0 = arith.constant 0 : index
    %0 = vector.load %arg1[%c0, %c0_0] : memref<8x420xf32, #tpu.memory_space<vmem>>, vector<8x420xf32>
    %c0_1 = arith.constant 0 : index
    %c0_2 = arith.constant 0 : index
    %1 = vector.load %arg2[%c0_1, %c0_2] : memref<8x420xf32, #tpu.memory_space<vmem>>, vector<8x420xf32>
    %c0_3 = arith.constant 0 : index
    %c0_4 = arith.constant 0 : index
    %c0_5 = arith.constant 0 : index
    %2 = vector.load %arg3[%c0_3, %c0_4, %c0_5] : memref<4x420x420xf32, #tpu.memory_space<vmem>>, vector<1x420x420xf32>
    %3 = vector.shape_cast %2 : vector<1x420x420xf32> to vector<420x420xf32>
    %cst = arith.constant dense<0.000000e+00> : vector<8x420xf32>
    %4 = tpu.matmul %0, %3, %cst {dimension_numbers = #tpu.dot_dimension_numbers<[1], [0], [0], [1], [0, 0, 1, 1], [], []>} : vector<8x420xf32>, vector<420x420xf32>, vector<8x420xf32> -> vector<8x420xf32>
    %c0_6 = arith.constant 0 : index
    %c0_7 = arith.constant 0 : index
    %c0_8 = arith.constant 0 : index
    %5 = vector.load %arg4[%c0_6, %c0_7, %c0_8] : memref<4x1x420xf32, #tpu.memory_space<vmem>>, vector<1x1x420xf32>
    %6 = vector.shape_cast %5 : vector<1x1x420xf32> to vector<1x420xf32>
    %7 = vector.broadcast %6 : vector<1x420xf32> to vector<8x420xf32>
    %8 = arith.addf %4, %7 : vector<8x420xf32>
    %9 = arith.negf %8 : vector<8x420xf32>
    %10 = math.exp %9 : vector<8x420xf32>
    %cst_9 = arith.constant 1.000000e+00 : f32
    %11 = vector.broadcast %cst_9 : f32 to vector<8x420xf32>
    %12 = arith.addf %11, %10 : vector<8x420xf32>
    %13 = arith.divf %11, %12 : vector<8x420xf32>
    %c1 = arith.constant 1 : index
    %c0_10 = arith.constant 0 : index
    %c0_11 = arith.constant 0 : index
    %14 = vector.load %arg3[%c1, %c0_10, %c0_11] : memref<4x420x420xf32, #tpu.memory_space<vmem>>, vector<1x420x420xf32>
    %15 = vector.shape_cast %14 : vector<1x420x420xf32> to vector<420x420xf32>
    %cst_12 = arith.constant dense<0.000000e+00> : vector<8x420xf32>
    %16 = tpu.matmul %13, %15, %cst_12 {dimension_numbers = #tpu.dot_dimension_numbers<[1], [0], [0], [1], [0, 0, 1, 1], [], []>} : vector<8x420xf32>, vector<420x420xf32>, vector<8x420xf32> -> vector<8x420xf32>
    %c1_13 = arith.constant 1 : index
    %c0_14 = arith.constant 0 : index
    %c0_15 = arith.constant 0 : index
    %17 = vector.load %arg4[%c1_13, %c0_14, %c0_15] : memref<4x1x420xf32, #tpu.memory_space<vmem>>, vector<1x1x420xf32>
    %18 = vector.shape_cast %17 : vector<1x1x420xf32> to vector<1x420xf32>
    %19 = vector.broadcast %18 : vector<1x420xf32> to vector<8x420xf32>
    %20 = arith.addf %16, %19 : vector<8x420xf32>
    %c2 = arith.constant 2 : index
    %c0_16 = arith.constant 0 : index
    %c0_17 = arith.constant 0 : index
    %21 = vector.load %arg3[%c2, %c0_16, %c0_17] : memref<4x420x420xf32, #tpu.memory_space<vmem>>, vector<1x420x420xf32>
    %22 = vector.shape_cast %21 : vector<1x420x420xf32> to vector<420x420xf32>
    %cst_18 = arith.constant dense<0.000000e+00> : vector<8x420xf32>
    %23 = tpu.matmul %20, %22, %cst_18 {dimension_numbers = #tpu.dot_dimension_numbers<[1], [0], [0], [1], [0, 0, 1, 1], [], []>} : vector<8x420xf32>, vector<420x420xf32>, vector<8x420xf32> -> vector<8x420xf32>
    %c2_19 = arith.constant 2 : index
    %c0_20 = arith.constant 0 : index
    %c0_21 = arith.constant 0 : index
    %24 = vector.load %arg4[%c2_19, %c0_20, %c0_21] : memref<4x1x420xf32, #tpu.memory_space<vmem>>, vector<1x1x420xf32>
    %25 = vector.shape_cast %24 : vector<1x1x420xf32> to vector<1x420xf32>
    %26 = vector.broadcast %25 : vector<1x420xf32> to vector<8x420xf32>
    %27 = arith.addf %23, %26 : vector<8x420xf32>
    %c0_22 = arith.constant 0 : index
    %c0_23 = arith.constant 0 : index
    %c0_24 = arith.constant 0 : index
    %28 = vector.load %arg6[%c0_22, %c0_23, %c0_24] : memref<2x420x32xf32, #tpu.memory_space<vmem>>, vector<1x420x32xf32>
    %29 = vector.shape_cast %28 : vector<1x420x32xf32> to vector<420x32xf32>
    %c0_25 = arith.constant 0 : index
    %c0_26 = arith.constant 0 : index
    %c0_27 = arith.constant 0 : index
    %30 = vector.load %arg7[%c0_25, %c0_26, %c0_27] : memref<2x32x420xf32, #tpu.memory_space<vmem>>, vector<1x32x420xf32>
    %31 = vector.shape_cast %30 : vector<1x32x420xf32> to vector<32x420xf32>
    %cst_28 = arith.constant dense<0xFF800000> : vector<8xf32>
    %32 = vector.multi_reduction <maximumf>, %27, %cst_28 [1] : vector<8x420xf32> to vector<8xf32>
    %33 = vector.shape_cast %32 : vector<8xf32> to vector<8x1xf32>
    %34 = vector.broadcast %33 : vector<8x1xf32> to vector<8x420xf32>
    %35 = arith.subf %27, %34 : vector<8x420xf32>
    %36 = math.exp %35 : vector<8x420xf32>
    %cst_29 = arith.constant dense<0.000000e+00> : vector<8x32xf32>
    %37 = tpu.matmul %36, %29, %cst_29 {dimension_numbers = #tpu.dot_dimension_numbers<[1], [0], [0], [1], [0, 0, 1, 1], [], []>} : vector<8x420xf32>, vector<420x32xf32>, vector<8x32xf32> -> vector<8x32xf32>
    %cst_30 = arith.constant dense<0.000000e+00> : vector<8x420xf32>
    %38 = tpu.matmul %37, %31, %cst_30 {dimension_numbers = #tpu.dot_dimension_numbers<[1], [0], [0], [1], [0, 0, 1, 1], [], []>} : vector<8x32xf32>, vector<32x420xf32>, vector<8x420xf32> -> vector<8x420xf32>
    %cst_31 = arith.constant 1.000000e-30 : f32
    %39 = vector.broadcast %cst_31 : f32 to vector<8x420xf32>
    %40 = arith.maximumf %38, %39 : vector<8x420xf32>
    %41 = tpu.reciprocal %40 {approx = true} : vector<8x420xf32> -> vector<8x420xf32>
    %42 = arith.mulf %36, %41 : vector<8x420xf32>
    %c3 = arith.constant 3 : index
    %c0_32 = arith.constant 0 : index
    %c0_33 = arith.constant 0 : index
    %43 = vector.load %arg3[%c3, %c0_32, %c0_33] : memref<4x420x420xf32, #tpu.memory_space<vmem>>, vector<1x420x420xf32>
    %44 = vector.shape_cast %43 : vector<1x420x420xf32> to vector<420x420xf32>
    %cst_34 = arith.constant dense<0.000000e+00> : vector<8x420xf32>
    %45 = tpu.matmul %1, %44, %cst_34 {dimension_numbers = #tpu.dot_dimension_numbers<[1], [0], [0], [1], [0, 0, 1, 1], [], []>} : vector<8x420xf32>, vector<420x420xf32>, vector<8x420xf32> -> vector<8x420xf32>
    %c3_35 = arith.constant 3 : index
    %c0_36 = arith.constant 0 : index
    %c0_37 = arith.constant 0 : index
    %46 = vector.load %arg4[%c3_35, %c0_36, %c0_37] : memref<4x1x420xf32, #tpu.memory_space<vmem>>, vector<1x1x420xf32>
    %47 = vector.shape_cast %46 : vector<1x1x420xf32> to vector<1x420xf32>
    %48 = vector.broadcast %47 : vector<1x420xf32> to vector<8x420xf32>
    %49 = arith.addf %45, %48 : vector<8x420xf32>
    %c1_38 = arith.constant 1 : index
    %c0_39 = arith.constant 0 : index
    %c0_40 = arith.constant 0 : index
    %50 = vector.load %arg6[%c1_38, %c0_39, %c0_40] : memref<2x420x32xf32, #tpu.memory_space<vmem>>, vector<1x420x32xf32>
    %51 = vector.shape_cast %50 : vector<1x420x32xf32> to vector<420x32xf32>
    %c1_41 = arith.constant 1 : index
    %c0_42 = arith.constant 0 : index
    %c0_43 = arith.constant 0 : index
    %52 = vector.load %arg7[%c1_41, %c0_42, %c0_43] : memref<2x32x420xf32, #tpu.memory_space<vmem>>, vector<1x32x420xf32>
    %53 = vector.shape_cast %52 : vector<1x32x420xf32> to vector<32x420xf32>
    %cst_44 = arith.constant dense<0xFF800000> : vector<8xf32>
    %54 = vector.multi_reduction <maximumf>, %49, %cst_44 [1] : vector<8x420xf32> to vector<8xf32>
    %55 = vector.shape_cast %54 : vector<8xf32> to vector<8x1xf32>
    %56 = vector.broadcast %55 : vector<8x1xf32> to vector<8x420xf32>
    %57 = arith.subf %49, %56 : vector<8x420xf32>
    %58 = math.exp %57 : vector<8x420xf32>
    %cst_45 = arith.constant dense<0.000000e+00> : vector<8x32xf32>
    %59 = tpu.matmul %58, %51, %cst_45 {dimension_numbers = #tpu.dot_dimension_numbers<[1], [0], [0], [1], [0, 0, 1, 1], [], []>} : vector<8x420xf32>, vector<420x32xf32>, vector<8x32xf32> -> vector<8x32xf32>
    %cst_46 = arith.constant dense<0.000000e+00> : vector<8x420xf32>
    %60 = tpu.matmul %59, %53, %cst_46 {dimension_numbers = #tpu.dot_dimension_numbers<[1], [0], [0], [1], [0, 0, 1, 1], [], []>} : vector<8x32xf32>, vector<32x420xf32>, vector<8x420xf32> -> vector<8x420xf32>
    %cst_47 = arith.constant 1.000000e-30 : f32
    %61 = vector.broadcast %cst_47 : f32 to vector<8x420xf32>
    %62 = arith.maximumf %60, %61 : vector<8x420xf32>
    %63 = tpu.reciprocal %62 {approx = true} : vector<8x420xf32> -> vector<8x420xf32>
    %64 = arith.mulf %58, %63 : vector<8x420xf32>
    %65 = arith.mulf %42, %20 : vector<8x420xf32>
    %c0_48 = arith.constant 0 : index
    %c0_49 = arith.constant 0 : index
    %c0_50 = arith.constant 0 : index
    %66 = vector.load %arg5[%c0_48, %c0_49, %c0_50] : memref<4x420x64xf32, #tpu.memory_space<vmem>>, vector<1x420x64xf32>
    %67 = vector.shape_cast %66 : vector<1x420x64xf32> to vector<420x64xf32>
    %cst_51 = arith.constant dense<0.000000e+00> : vector<8x64xf32>
    %68 = tpu.matmul %65, %67, %cst_51 {dimension_numbers = #tpu.dot_dimension_numbers<[1], [0], [0], [1], [0, 0, 1, 1], [], []>} : vector<8x420xf32>, vector<420x64xf32>, vector<8x64xf32> -> vector<8x64xf32>
    %c1_52 = arith.constant 1 : index
    %c0_53 = arith.constant 0 : index
    %c0_54 = arith.constant 0 : index
    %69 = vector.load %arg5[%c1_52, %c0_53, %c0_54] : memref<4x420x64xf32, #tpu.memory_space<vmem>>, vector<1x420x64xf32>
    %70 = vector.shape_cast %69 : vector<1x420x64xf32> to vector<420x64xf32>
    %cst_55 = arith.constant dense<0.000000e+00> : vector<8x64xf32>
    %71 = tpu.matmul %42, %70, %cst_55 {dimension_numbers = #tpu.dot_dimension_numbers<[1], [0], [0], [1], [0, 0, 1, 1], [], []>} : vector<8x420xf32>, vector<420x64xf32>, vector<8x64xf32> -> vector<8x64xf32>
    %72 = arith.addf %68, %71 : vector<8x64xf32>
    %73 = arith.mulf %64, %1 : vector<8x420xf32>
    %c2_56 = arith.constant 2 : index
    %c0_57 = arith.constant 0 : index
    %c0_58 = arith.constant 0 : index
    %74 = vector.load %arg5[%c2_56, %c0_57, %c0_58] : memref<4x420x64xf32, #tpu.memory_space<vmem>>, vector<1x420x64xf32>
    %75 = vector.shape_cast %74 : vector<1x420x64xf32> to vector<420x64xf32>
    %cst_59 = arith.constant dense<0.000000e+00> : vector<8x64xf32>
    %76 = tpu.matmul %73, %75, %cst_59 {dimension_numbers = #tpu.dot_dimension_numbers<[1], [0], [0], [1], [0, 0, 1, 1], [], []>} : vector<8x420xf32>, vector<420x64xf32>, vector<8x64xf32> -> vector<8x64xf32>
    %77 = arith.addf %72, %76 : vector<8x64xf32>
    %c3_60 = arith.constant 3 : index
    %c0_61 = arith.constant 0 : index
    %c0_62 = arith.constant 0 : index
    %78 = vector.load %arg5[%c3_60, %c0_61, %c0_62] : memref<4x420x64xf32, #tpu.memory_space<vmem>>, vector<1x420x64xf32>
    %79 = vector.shape_cast %78 : vector<1x420x64xf32> to vector<420x64xf32>
    %cst_63 = arith.constant dense<0.000000e+00> : vector<8x64xf32>
    %80 = tpu.matmul %64, %79, %cst_63 {dimension_numbers = #tpu.dot_dimension_numbers<[1], [0], [0], [1], [0, 0, 1, 1], [], []>} : vector<8x420xf32>, vector<420x64xf32>, vector<8x64xf32> -> vector<8x64xf32>
    %81 = arith.addf %77, %80 : vector<8x64xf32>
    %c0_64 = arith.constant 0 : index
    %c0_65 = arith.constant 0 : index
    %c0_66 = arith.constant 0 : index
    %82 = vector.load %arg8[%c0_64, %c0_65, %c0_66] : memref<3x1x64xf32, #tpu.memory_space<vmem>>, vector<1x1x64xf32>
    %83 = vector.shape_cast %82 : vector<1x1x64xf32> to vector<1x64xf32>
    %84 = vector.broadcast %83 : vector<1x64xf32> to vector<8x64xf32>
    %85 = arith.addf %81, %84 : vector<8x64xf32>
    %c1_67 = arith.constant 1 : index
    %c0_68 = arith.constant 0 : index
    %c0_69 = arith.constant 0 : index
    %86 = vector.load %arg8[%c1_67, %c0_68, %c0_69] : memref<3x1x64xf32, #tpu.memory_space<vmem>>, vector<1x1x64xf32>
    %87 = vector.shape_cast %86 : vector<1x1x64xf32> to vector<1x64xf32>
    %c2_70 = arith.constant 2 : index
    %c0_71 = arith.constant 0 : index
    %c0_72 = arith.constant 0 : index
    %88 = vector.load %arg8[%c2_70, %c0_71, %c0_72] : memref<3x1x64xf32, #tpu.memory_space<vmem>>, vector<1x1x64xf32>
    %89 = vector.shape_cast %88 : vector<1x1x64xf32> to vector<1x64xf32>
    %90 = vector.extract_strided_slice %89 {offsets = [0, 0], sizes = [1, 1], strides = [1, 1]} : vector<1x64xf32> to vector<1x1xf32>
    %cst_73 = arith.constant dense<0.000000e+00> : vector<1x8xf32>
    %91 = tpu.matmul %87, %85, %cst_73 {dimension_numbers = #tpu.dot_dimension_numbers<[1], [1], [0], [0], [0, 0, 1, 0], [], []>} : vector<1x64xf32>, vector<8x64xf32>, vector<1x8xf32> -> vector<1x8xf32>
    %92 = vector.broadcast %90 : vector<1x1xf32> to vector<1x8xf32>
    %93 = arith.addf %91, %92 : vector<1x8xf32>
    %c0_74 = arith.constant 0 : index
    %c0_75 = arith.constant 0 : index
    %c0_76 = arith.constant 0 : index
    %94 = vector.load %arg9[%c0_74, %c0_75, %c0_76] : memref<1x1x8xf32, #tpu.memory_space<vmem>>, vector<1x1x8xf32>
    %95 = vector.shape_cast %94 : vector<1x1x8xf32> to vector<1x8xf32>
    %96 = vector.shape_cast %93 : vector<1x8xf32> to vector<1x1x8xf32>
    tpu.vector_store %arg9[%c0_74, %c0_75, %c0_76], %96 {strides = array<i32>} : memref<1x1x8xf32, #tpu.memory_space<vmem>>, vector<1x1x8xf32>,
    return
  }
  func.func @transform_0(%arg0: i32) -> (i32, i32) {
    %c0_i32 = arith.constant 0 : i32
    %c0_i32_0 = arith.constant 0 : i32
    return %arg0, %c0_i32 : i32, i32
  }
  func.func @transform_1(%arg0: i32) -> (i32, i32) {
    %c0_i32 = arith.constant 0 : i32
    %c0_i32_0 = arith.constant 0 : i32
    return %arg0, %c0_i32 : i32, i32
  }
  func.func @transform_2(%arg0: i32) -> (i32, i32, i32) {
    %c0_i32 = arith.constant 0 : i32
    %c0_i32_0 = arith.constant 0 : i32
    %c0_i32_1 = arith.constant 0 : i32
    %c0_i32_2 = arith.constant 0 : i32
    return %c0_i32, %c0_i32_0, %c0_i32_1 : i32, i32, i32
  }
  func.func @transform_3(%arg0: i32) -> (i32, i32, i32) {
    %c0_i32 = arith.constant 0 : i32
    %c0_i32_0 = arith.constant 0 : i32
    %c0_i32_1 = arith.constant 0 : i32
    %c0_i32_2 = arith.constant 0 : i32
    return %c0_i32, %c0_i32_0, %c0_i32_1 : i32, i32, i32
  }
  func.func @transform_4(%arg0: i32) -> (i32, i32, i32) {
    %c0_i32 = arith.constant 0 : i32
    %c0_i32_0 = arith.constant 0 : i32
    %c0_i32_1 = arith.constant 0 : i32
    %c0_i32_2 = arith.constant 0 : i32
    return %c0_i32, %c0_i32_0, %c0_i32_1 : i32, i32, i32
  }
  func.func @transform_5(%arg0: i32) -> (i32, i32, i32) {
    %c0_i32 = arith.constant 0 : i32
    %c0_i32_0 = arith.constant 0 : i32
    %c0_i32_1 = arith.constant 0 : i32
    %c0_i32_2 = arith.constant 0 : i32
    return %c0_i32, %c0_i32_0, %c0_i32_1 : i32, i32, i32
  }
  func.func @transform_6(%arg0: i32) -> (i32, i32, i32) {
    %c0_i32 = arith.constant 0 : i32
    %c0_i32_0 = arith.constant 0 : i32
    %c0_i32_1 = arith.constant 0 : i32
    %c0_i32_2 = arith.constant 0 : i32
    return %c0_i32, %c0_i32_0, %c0_i32_1 : i32, i32, i32
  }
  func.func @transform_7(%arg0: i32) -> (i32, i32, i32) {
    %c0_i32 = arith.constant 0 : i32
    %c0_i32_0 = arith.constant 0 : i32
    %c0_i32_1 = arith.constant 0 : i32
    %c0_i32_2 = arith.constant 0 : i32
    return %c0_i32, %c0_i32_0, %c0_i32_1 : i32, i32, i32
  }
  func.func @transform_8(%arg0: i32) -> (i32, i32, i32) {
    %c0_i32 = arith.constant 0 : i32
    %c0_i32_0 = arith.constant 0 : i32
    %c0_i32_1 = arith.constant 0 : i32
    return %arg0, %c0_i32, %c0_i32_0 : i32, i32, i32
  }
}

</mosaic_0001>

<llo_original>
// kernel: encoder_forward.1
$region0: #{encoder_forward.1}
  #allocation0 [shape = 'u32[]', space=smem, size = 0x4, offset = 0x4, fixed_abs, tag = 'smem constant byte address 0x4 - core index']
  #allocation1 [shape = 'u32[144,128]{1,0:T(1,128)}', space=vmem, size = 0x12000, scoped, tag = 'internal scratch']
  %s0 = inlined_call_operand.vmem [shape: f32[8,420], index: 0, kind: input, shape index: {}]
  %s1 = inlined_call_operand.vmem [shape: f32[8,420], index: 1, kind: input, shape index: {}]
  %s2 = inlined_call_operand.vmem [shape: f32[4,420,420], index: 2, kind: input, shape index: {}]
  %s3 = inlined_call_operand.vmem [shape: f32[4,1,420], index: 3, kind: input, shape index: {}]
  %s4 = inlined_call_operand.vmem [shape: f32[4,420,64], index: 4, kind: input, shape index: {}]
  %s5 = inlined_call_operand.vmem [shape: f32[2,420,32], index: 5, kind: input, shape index: {}]
  %s6 = inlined_call_operand.vmem [shape: f32[2,32,420], index: 6, kind: input, shape index: {}]
  %s7 = inlined_call_operand.vmem [shape: f32[3,1,64], index: 7, kind: input, shape index: {}]
  %s8 = inlined_call_operand.vmem [shape: f32[1,1,8], index: 8, kind: output, shape index: {}]
  %s9 = sld [smem:[#allocation0]]
  $region42: #{encoder_forward.1} parent=0
    _
  %s11 = ssub.s32 1, %s9
  %s12 = scalar_select 0, %s11, %s9
  // Predicated region
  $region2: #{encoder_forward.1} parent=0 // pred_check
    _
  $region3: #{encoder_forward.1} parent=0 // pred_check_branch
    %14 = sbr.rel (0) target = $region5
  $region4: #{encoder_forward.1} parent=0 // pred_region
    _
  $region5: #{encoder_forward.1} parent=0 // pred_fallthru
    _
  // Predicated region
  $region6: #{encoder_forward.1} parent=0 // pred_check
    _
  $region7: #{encoder_forward.1} parent=0 // pred_check_branch
    %16 = sbr.rel (0) target = $region9
  $region8: #{encoder_forward.1} parent=0 // pred_region
    _
  $region9: #{encoder_forward.1} parent=0 // pred_fallthru
    _
  // Predicated region
  $region10: #{encoder_forward.1} parent=0 // pred_check
    _
  $region11: #{encoder_forward.1} parent=0 // pred_check_branch
    %18 = sbr.rel (0) target = $region13
  $region12: #{encoder_forward.1} parent=0 // pred_region
    _
  $region13: #{encoder_forward.1} parent=0 // pred_fallthru
    _
  // Predicated region
  $region14: #{encoder_forward.1} parent=0 // pred_check
    _
  $region15: #{encoder_forward.1} parent=0 // pred_check_branch
    %20 = sbr.rel (0) target = $region17
  $region16: #{encoder_forward.1} parent=0 // pred_region
    _
  $region17: #{encoder_forward.1} parent=0 // pred_fallthru
    _
  // Predicated region
  $region18: #{encoder_forward.1} parent=0 // pred_check
    _
  $region19: #{encoder_forward.1} parent=0 // pred_check_branch
    %22 = sbr.rel (0) target = $region21
  $region20: #{encoder_forward.1} parent=0 // pred_region
    _
  $region21: #{encoder_forward.1} parent=0 // pred_fallthru
    _
  // Predicated region
  $region22: #{encoder_forward.1} parent=0 // pred_check
    _
  $region23: #{encoder_forward.1} parent=0 // pred_check_branch
    %24 = sbr.rel (0) target = $region25
  $region24: #{encoder_forward.1} parent=0 // pred_region
    _
  $region25: #{encoder_forward.1} parent=0 // pred_fallthru
    _
  // Predicated region
  $region26: #{encoder_forward.1} parent=0 // pred_check
    _
  $region27: #{encoder_forward.1} parent=0 // pred_check_branch
    %26 = sbr.rel (0) target = $region29
  $region28: #{encoder_forward.1} parent=0 // pred_region
    _
  $region29: #{encoder_forward.1} parent=0 // pred_fallthru
    _
  // Predicated region
  $region30: #{encoder_forward.1} parent=0 // pred_check
    _
  $region31: #{encoder_forward.1} parent=0 // pred_check_branch
    %28 = sbr.rel (0) target = $region33
  $region32: #{encoder_forward.1} parent=0 // pred_region
    _
  $region33: #{encoder_forward.1} parent=0 // pred_fallthru
    _
  %v29 = vld [vmem:[%s0] sm:$0xff]
  %v30 = vld [vmem:[%s0 + $0x8] sm:$0xff]
  %v31 = vld [vmem:[%s0 + $0x10] sm:$0xff]
  %v32 = vld [vmem:[%s0 + $0x18] sm:$0xff]
  %v33 = vld [vmem:[%s1] sm:$0xff]
  %v34 = vld [vmem:[%s1 + $0x8] sm:$0xff]
  %v35 = vld [vmem:[%s1 + $0x10] sm:$0xff]
  %v36 = vld [vmem:[%s1 + $0x18] sm:$0xff]
  %v37 = vld [vmem:[%s2] sm:$0xff]
  %v38 = vld [vmem:[%s2 + $0x8] sm:$0xff]
  %v39 = vld [vmem:[%s2 + $0x10] sm:$0xff]
  %v40 = vld [vmem:[%s2 + $0x18] sm:$0xff]
  %v41 = vld [vmem:[%s2 + $0x20] sm:$0xff]
  %v42 = vld [vmem:[%s2 + $0x28] sm:$0xff]
  %v43 = vld [vmem:[%s2 + $0x30] sm:$0xff]
  %v44 = vld [vmem:[%s2 + $0x38] sm:$0xff]
  %v45 = vld [vmem:[%s2 + $0x40] sm:$0xff]
  %v46 = vld [vmem:[%s2 + $0x48] sm:$0xff]
  %v47 = vld [vmem:[%s2 + $0x50] sm:$0xff]
  %v48 = vld [vmem:[%s2 + $0x58] sm:$0xff]
  %v49 = vld [vmem:[%s2 + $0x60] sm:$0xff]
  %v50 = vld [vmem:[%s2 + $0x68] sm:$0xff]
  %v51 = vld [vmem:[%s2 + $0x70] sm:$0xff]
  %v52 = vld [vmem:[%s2 + $0x78] sm:$0xff]
  %v53 = vld [vmem:[%s2 + $0x80] sm:$0xff]
  %v54 = vld [vmem:[%s2 + $0x88] sm:$0xff]
  %v55 = vld [vmem:[%s2 + $0x90] sm:$0xff]
  %v56 = vld [vmem:[%s2 + $0x98] sm:$0xff]
  %v57 = vld [vmem:[%s2 + $0xa0] sm:$0xff]
  %v58 = vld [vmem:[%s2 + $0xa8] sm:$0xff]
  %v59 = vld [vmem:[%s2 + $0xb0] sm:$0xff]
  %v60 = vld [vmem:[%s2 + $0xb8] sm:$0xff]
  %v61 = vld [vmem:[%s2 + $0xc0] sm:$0xff]
  %v62 = vld [vmem:[%s2 + $0xc8] sm:$0xff]
  %v63 = vld [vmem:[%s2 + $0xd0] sm:$0xff]
  %v64 = vld [vmem:[%s2 + $0xd8] sm:$0xff]
  %v65 = vld [vmem:[%s2 + $0xe0] sm:$0xff]
  %v66 = vld [vmem:[%s2 + $0xe8] sm:$0xff]
  %v67 = vld [vmem:[%s2 + $0xf0] sm:$0xff]
  %v68 = vld [vmem:[%s2 + $0xf8] sm:$0xff]
  %v69 = vld [vmem:[%s2 + $0x100] sm:$0xff]
  %v70 = vld [vmem:[%s2 + $0x108] sm:$0xff]
  %v71 = vld [vmem:[%s2 + $0x110] sm:$0xff]
  %v72 = vld [vmem:[%s2 + $0x118] sm:$0xff]
  %v73 = vld [vmem:[%s2 + $0x120] sm:$0xff]
  %v74 = vld [vmem:[%s2 + $0x128] sm:$0xff]
  %v75 = vld [vmem:[%s2 + $0x130] sm:$0xff]
  %v76 = vld [vmem:[%s2 + $0x138] sm:$0xff]
  %v77 = vld [vmem:[%s2 + $0x140] sm:$0xff]
  %v78 = vld [vmem:[%s2 + $0x148] sm:$0xff]
  %v79 = vld [vmem:[%s2 + $0x150] sm:$0xff]
  %v80 = vld [vmem:[%s2 + $0x158] sm:$0xff]
  %v81 = vld [vmem:[%s2 + $0x160] sm:$0xff]
  %v82 = vld [vmem:[%s2 + $0x168] sm:$0xff]
  %v83 = vld [vmem:[%s2 + $0x170] sm:$0xff]
  %v84 = vld [vmem:[%s2 + $0x178] sm:$0xff]
  %v85 = vld [vmem:[%s2 + $0x180] sm:$0xff]
  %v86 = vld [vmem:[%s2 + $0x188] sm:$0xff]
  %v87 = vld [vmem:[%s2 + $0x190] sm:$0xff]
  %v88 = vld [vmem:[%s2 + $0x198] sm:$0xff]
  %v89 = vld [vmem:[%s2 + $0x1a0] sm:$0xff]
  %v90 = vld [vmem:[%s2 + $0x1a8] sm:$0xff]
  %v91 = vld [vmem:[%s2 + $0x1b0] sm:$0xff]
  %v92 = vld [vmem:[%s2 + $0x1b8] sm:$0xff]
  %v93 = vld [vmem:[%s2 + $0x1c0] sm:$0xff]
  %v94 = vld [vmem:[%s2 + $0x1c8] sm:$0xff]
  %v95 = vld [vmem:[%s2 + $0x1d0] sm:$0xff]
  %v96 = vld [vmem:[%s2 + $0x1d8] sm:$0xff]
  %v97 = vld [vmem:[%s2 + $0x1e0] sm:$0xff]
  %v98 = vld [vmem:[%s2 + $0x1e8] sm:$0xff]
  %v99 = vld [vmem:[%s2 + $0x1f0] sm:$0xff]
  %v100 = vld [vmem:[%s2 + $0x1f8] sm:$0xff]
  %v101 = vld [vmem:[%s2 + $0x200] sm:$0xff]
  %v102 = vld [vmem:[%s2 + $0x208] sm:$0xff]
  %v103 = vld [vmem:[%s2 + $0x210] sm:$0xff]
  %v104 = vld [vmem:[%s2 + $0x218] sm:$0xff]
  %v105 = vld [vmem:[%s2 + $0x220] sm:$0xff]
  %v106 = vld [vmem:[%s2 + $0x228] sm:$0xff]
  %v107 = vld [vmem:[%s2 + $0x230] sm:$0xff]
  %v108 = vld [vmem:[%s2 + $0x238] sm:$0xff]
  %v109 = vld [vmem:[%s2 + $0x240] sm:$0xff]
  %v110 = vld [vmem:[%s2 + $0x248] sm:$0xff]
  %v111 = vld [vmem:[%s2 + $0x250] sm:$0xff]
  %v112 = vld [vmem:[%s2 + $0x258] sm:$0xff]
  %v113 = vld [vmem:[%s2 + $0x260] sm:$0xff]
  %v114 = vld [vmem:[%s2 + $0x268] sm:$0xff]
  %v115 = vld [vmem:[%s2 + $0x270] sm:$0xff]
  %v116 = vld [vmem:[%s2 + $0x278] sm:$0xff]
  %v117 = vld [vmem:[%s2 + $0x280] sm:$0xff]
  %v118 = vld [vmem:[%s2 + $0x288] sm:$0xff]
  %v119 = vld [vmem:[%s2 + $0x290] sm:$0xff]
  %v120 = vld [vmem:[%s2 + $0x298] sm:$0xff]
  %v121 = vld [vmem:[%s2 + $0x2a0] sm:$0xff]
  %v122 = vld [vmem:[%s2 + $0x2a8] sm:$0xff]
  %v123 = vld [vmem:[%s2 + $0x2b0] sm:$0xff]
  %v124 = vld [vmem:[%s2 + $0x2b8] sm:$0xff]
  %v125 = vld [vmem:[%s2 + $0x2c0] sm:$0xff]
  %v126 = vld [vmem:[%s2 + $0x2c8] sm:$0xff]
  %v127 = vld [vmem:[%s2 + $0x2d0] sm:$0xff]
  %v128 = vld [vmem:[%s2 + $0x2d8] sm:$0xff]
  %v129 = vld [vmem:[%s2 + $0x2e0] sm:$0xff]
  %v130 = vld [vmem:[%s2 + $0x2e8] sm:$0xff]
  %v131 = vld [vmem:[%s2 + $0x2f0] sm:$0xff]
  %v132 = vld [vmem:[%s2 + $0x2f8] sm:$0xff]
  %v133 = vld [vmem:[%s2 + $0x300] sm:$0xff]
  %v134 = vld [vmem:[%s2 + $0x308] sm:$0xff]
  %v135 = vld [vmem:[%s2 + $0x310] sm:$0xff]
  %v136 = vld [vmem:[%s2 + $0x318] sm:$0xff]
  %v137 = vld [vmem:[%s2 + $0x320] sm:$0xff]
  %v138 = vld [vmem:[%s2 + $0x328] sm:$0xff]
  %v139 = vld [vmem:[%s2 + $0x330] sm:$0xff]
  %v140 = vld [vmem:[%s2 + $0x338] sm:$0xff]
  %v141 = vld [vmem:[%s2 + $0x340] sm:$0xff]
  %v142 = vld [vmem:[%s2 + $0x348] sm:$0xff]
  %v143 = vld [vmem:[%s2 + $0x350] sm:$0xff]
  %v144 = vld [vmem:[%s2 + $0x358] sm:$0xff]
  %v145 = vld [vmem:[%s2 + $0x360] sm:$0xff]
  %v146 = vld [vmem:[%s2 + $0x368] sm:$0xff]
  %v147 = vld [vmem:[%s2 + $0x370] sm:$0xff]
  %v148 = vld [vmem:[%s2 + $0x378] sm:$0xff]
  %v149 = vld [vmem:[%s2 + $0x380] sm:$0xff]
  %v150 = vld [vmem:[%s2 + $0x388] sm:$0xff]
  %v151 = vld [vmem:[%s2 + $0x390] sm:$0xff]
  %v152 = vld [vmem:[%s2 + $0x398] sm:$0xff]
  %v153 = vld [vmem:[%s2 + $0x3a0] sm:$0xff]
  %v154 = vld [vmem:[%s2 + $0x3a8] sm:$0xff]
  %v155 = vld [vmem:[%s2 + $0x3b0] sm:$0xff]
  %v156 = vld [vmem:[%s2 + $0x3b8] sm:$0xff]
  %v157 = vld [vmem:[%s2 + $0x3c0] sm:$0xff]
  %v158 = vld [vmem:[%s2 + $0x3c8] sm:$0xff]
  %v159 = vld [vmem:[%s2 + $0x3d0] sm:$0xff]
  %v160 = vld [vmem:[%s2 + $0x3d8] sm:$0xff]
  %v161 = vld [vmem:[%s2 + $0x3e0] sm:$0xff]
  %v162 = vld [vmem:[%s2 + $0x3e8] sm:$0xff]
  %v163 = vld [vmem:[%s2 + $0x3f0] sm:$0xff]
  %v164 = vld [vmem:[%s2 + $0x3f8] sm:$0xff]
  %v165 = vld [vmem:[%s2 + $0x400] sm:$0xff]
  %v166 = vld [vmem:[%s2 + $0x408] sm:$0xff]
  %v167 = vld [vmem:[%s2 + $0x410] sm:$0xff]
  %v168 = vld [vmem:[%s2 + $0x418] sm:$0xff]
  %v169 = vld [vmem:[%s2 + $0x420] sm:$0xff]
  %v170 = vld [vmem:[%s2 + $0x428] sm:$0xff]
  %v171 = vld [vmem:[%s2 + $0x430] sm:$0xff]
  %v172 = vld [vmem:[%s2 + $0x438] sm:$0xff]
  %v173 = vld [vmem:[%s2 + $0x440] sm:$0xff]
  %v174 = vld [vmem:[%s2 + $0x448] sm:$0xff]
  %v175 = vld [vmem:[%s2 + $0x450] sm:$0xff]
  %v176 = vld [vmem:[%s2 + $0x458] sm:$0xff]
  %v177 = vld [vmem:[%s2 + $0x460] sm:$0xff]
  %v178 = vld [vmem:[%s2 + $0x468] sm:$0xff]
  %v179 = vld [vmem:[%s2 + $0x470] sm:$0xff]
  %v180 = vld [vmem:[%s2 + $0x478] sm:$0xff]
  %v181 = vld [vmem:[%s2 + $0x480] sm:$0xff]
  %v182 = vld [vmem:[%s2 + $0x488] sm:$0xff]
  %v183 = vld [vmem:[%s2 + $0x490] sm:$0xff]
  %v184 = vld [vmem:[%s2 + $0x498] sm:$0xff]
  %v185 = vld [vmem:[%s2 + $0x4a0] sm:$0xff]
  %v186 = vld [vmem:[%s2 + $0x4a8] sm:$0xff]
  %v187 = vld [vmem:[%s2 + $0x4b0] sm:$0xff]
  %v188 = vld [vmem:[%s2 + $0x4b8] sm:$0xff]
  %v189 = vld [vmem:[%s2 + $0x4c0] sm:$0xff]
  %v190 = vld [vmem:[%s2 + $0x4c8] sm:$0xff]
  %v191 = vld [vmem:[%s2 + $0x4d0] sm:$0xff]
  %v192 = vld [vmem:[%s2 + $0x4d8] sm:$0xff]
  %v193 = vld [vmem:[%s2 + $0x4e0] sm:$0xff]
  %v194 = vld [vmem:[%s2 + $0x4e8] sm:$0xff]
  %v195 = vld [vmem:[%s2 + $0x4f0] sm:$0xff]
  %v196 = vld [vmem:[%s2 + $0x4f8] sm:$0xff]
  %v197 = vld [vmem:[%s2 + $0x500] sm:$0xff]
  %v198 = vld [vmem:[%s2 + $0x508] sm:$0xff]
  %v199 = vld [vmem:[%s2 + $0x510] sm:$0xff]
  %v200 = vld [vmem:[%s2 + $0x518] sm:$0xff]
  %v201 = vld [vmem:[%s2 + $0x520] sm:$0xff]
  %v202 = vld [vmem:[%s2 + $0x528] sm:$0xff]
  %v203 = vld [vmem:[%s2 + $0x530] sm:$0xff]
  %v204 = vld [vmem:[%s2 + $0x538] sm:$0xff]
  %v205 = vld [vmem:[%s2 + $0x540] sm:$0xff]
  %v206 = vld [vmem:[%s2 + $0x548] sm:$0xff]
  %v207 = vld [vmem:[%s2 + $0x550] sm:$0xff]
  %v208 = vld [vmem:[%s2 + $0x558] sm:$0xff]
  %v209 = vld [vmem:[%s2 + $0x560] sm:$0xff]
  %v210 = vld [vmem:[%s2 + $0x568] sm:$0xff]
  %v211 = vld [vmem:[%s2 + $0x570] sm:$0xff]
  %v212 = vld [vmem:[%s2 + $0x578] sm:$0xff]
  %v213 = vld [vmem:[%s2 + $0x580] sm:$0xff]
  %v214 = vld [vmem:[%s2 + $0x588] sm:$0xff]
  %v215 = vld [vmem:[%s2 + $0x590] sm:$0xff]
  %v216 = vld [vmem:[%s2 + $0x598] sm:$0xff]
  %v217 = vld [vmem:[%s2 + $0x5a0] sm:$0xff]
  %v218 = vld [vmem:[%s2 + $0x5a8] sm:$0xff]
  %v219 = vld [vmem:[%s2 + $0x5b0] sm:$0xff]
  %v220 = vld [vmem:[%s2 + $0x5b8] sm:$0xff]
  %v221 = vld [vmem:[%s2 + $0x5c0] sm:$0xff]
  %v222 = vld [vmem:[%s2 + $0x5c8] sm:$0xff]
  %v223 = vld [vmem:[%s2 + $0x5d0] sm:$0xff]
  %v224 = vld [vmem:[%s2 + $0x5d8] sm:$0xff]
  %v225 = vld [vmem:[%s2 + $0x5e0] sm:$0xff]
  %v226 = vld [vmem:[%s2 + $0x5e8] sm:$0xff]
  %v227 = vld [vmem:[%s2 + $0x5f0] sm:$0xff]
  %v228 = vld [vmem:[%s2 + $0x5f8] sm:$0xff]
  %v229 = vld [vmem:[%s2 + $0x600] sm:$0xff]
  %v230 = vld [vmem:[%s2 + $0x608] sm:$0xff]
  %v231 = vld [vmem:[%s2 + $0x610] sm:$0xff]
  %v232 = vld [vmem:[%s2 + $0x618] sm:$0xff]
  %v233 = vld [vmem:[%s2 + $0x620] sm:$0xff]
  %v234 = vld [vmem:[%s2 + $0x628] sm:$0xff]
  %v235 = vld [vmem:[%s2 + $0x630] sm:$0xff]
  %v236 = vld [vmem:[%s2 + $0x638] sm:$0xff]
  %v237 = vld [vmem:[%s2 + $0x640] sm:$0xff]
  %v238 = vld [vmem:[%s2 + $0x648] sm:$0xff]
  %v239 = vld [vmem:[%s2 + $0x650] sm:$0xff]
  %v240 = vld [vmem:[%s2 + $0x658] sm:$0xff]
  %v241 = vld [vmem:[%s2 + $0x660] sm:$0xff]
  %v242 = vld [vmem:[%s2 + $0x668] sm:$0xff]
  %v243 = vld [vmem:[%s2 + $0x670] sm:$0xff]
  %v244 = vld [vmem:[%s2 + $0x678] sm:$0xff]
  %v245 = vld [vmem:[%s2 + $0x680] sm:$0xf]
  %v246 = vld [vmem:[%s2 + $0x688] sm:$0xf]
  %v247 = vld [vmem:[%s2 + $0x690] sm:$0xf]
  %v248 = vld [vmem:[%s2 + $0x698] sm:$0xf]
  %v249 = vld [vmem:[%s3] sm:$0xf]
  %v251 = vlaneseq
  %v252 = vshrl.u32 %v251, 7
  %v253 = vsub.s32 0, %v252
  %v254 = vrot.slane %v249, %v253
  %v255 = vlaneseq
  %v256 = vshrl.u32 %v255, 7
  %v257 = vsub.s32 1, %v256
  %v258 = vrot.slane %v249, %v257
  %v259 = vlaneseq
  %v260 = vshrl.u32 %v259, 7
  %v261 = vsub.s32 2, %v260
  %v262 = vrot.slane %v249, %v261
  %v263 = vlaneseq
  %v264 = vshrl.u32 %v263, 7
  %v265 = vsub.s32 3, %v264
  %v266 = vrot.slane %v249, %v265
  %vm271 = vcmask 293888
  %v273 = vsel %vm271, %v32, 0
  %vm275 = vcmask 1043456
  %v277 = vsel %vm275, %v245, 0
  %v280 = vsel %vm275, %v246, 0
  %v283 = vsel %vm275, %v247, 0
  %v286 = vsel %vm275, %v248, 0
  %288 = vmatprep.subr.mxu0 %v98
  %289 = vmatpush1.msra.mxu0 %v97
  %290 = vmatprep.subr.mxu0 %v94
  %291 = vmatpush1.msra.mxu0 %v93
  %292 = vmatprep.subr.mxu0 %v90
  %293 = vmatpush1.msra.mxu0 %v89
  %294 = vmatprep.subr.mxu0 %v86
  %295 = vmatpush1.msra.mxu0 %v85
  %296 = vmatprep.subr.mxu0 %v82
  %297 = vmatpush1.msra.mxu0 %v81
  %298 = vmatprep.subr.mxu0 %v78
  %299 = vmatpush1.msra.mxu0 %v77
  %300 = vmatprep.subr.mxu0 %v74
  %301 = vmatpush1.msra.mxu0 %v73
  %302 = vmatprep.subr.mxu0 %v70
  %303 = vmatpush1.msra.mxu0 %v69
  %304 = vmatprep.subr.mxu0 %v66
  %305 = vmatpush1.msra.mxu0 %v65
  %306 = vmatprep.subr.mxu0 %v62
  %307 = vmatpush1.msra.mxu0 %v61
  %308 = vmatprep.subr.mxu0 %v58
  %309 = vmatpush1.msra.mxu0 %v57
  %310 = vmatprep.subr.mxu0 %v54
  %311 = vmatpush1.msra.mxu0 %v53
  %312 = vmatprep.subr.mxu0 %v50
  %313 = vmatpush1.msra.mxu0 %v49
  %314 = vmatprep.subr.mxu0 %v46
  %315 = vmatpush1.msra.mxu0 %v45
  %316 = vmatprep.subr.mxu0 %v42
  %317 = vmatpush1.msra.mxu0 %v41
  %318 = vmatprep.subr.mxu0 %v38
  %319 = vmatpush1.msra.mxu0 %v37
  %320 = vmatprep.subr.mxu0 %v162
  %321 = vmatpush2.msra.mxu0 %v161
  %322 = vmatprep.subr.mxu0 %v158
  %323 = vmatpush2.msra.mxu0 %v157
  %324 = vmatprep.subr.mxu0 %v154
  %325 = vmatpush2.msra.mxu0 %v153
  %326 = vmatprep.subr.mxu0 %v150
  %327 = vmatpush2.msra.mxu0 %v149
  %328 = vmatprep.subr.mxu0 %v146
  %329 = vmatpush2.msra.mxu0 %v145
  %330 = vmatprep.subr.mxu0 %v142
  %331 = vmatpush2.msra.mxu0 %v141
  %332 = vmatprep.subr.mxu0 %v138
  %333 = vmatpush2.msra.mxu0 %v137
  %334 = vmatprep.subr.mxu0 %v134
  %335 = vmatpush2.msra.mxu0 %v133
  %336 = vmatprep.subr.mxu0 %v130
  %337 = vmatpush2.msra.mxu0 %v129
  %338 = vmatprep.subr.mxu0 %v126
  %339 = vmatpush2.msra.mxu0 %v125
  %340 = vmatprep.subr.mxu0 %v122
  %341 = vmatpush2.msra.mxu0 %v121
  %342 = vmatprep.subr.mxu0 %v118
  %343 = vmatpush2.msra.mxu0 %v117
  %344 = vmatprep.subr.mxu0 %v114
  %345 = vmatpush2.msra.mxu0 %v113
  %346 = vmatprep.subr.mxu0 %v110
  %347 = vmatpush2.msra.mxu0 %v109
  %348 = vmatprep.subr.mxu0 %v106
  %349 = vmatpush2.msra.mxu0 %v105
  %350 = vmatprep.subr.mxu0 %v102
  %351 = vmatpush2.msra.mxu0 %v101
  %352 = vmatprep.mubr.f32.mxu0 %v30
  %353 = vmatmul.mubr.f32.gmra.mxu0 %v29
  %v354 = vpop.f32.mrf.mxu0
  %v355 = vadd.f32 %v254, %v354
  %v356 = vpop.f32.mrf.mxu0
  %v357 = vadd.f32 %v258, %v356
  %358 = vdwg.mxu0
  %359 = vmatprep.subr.mxu0 %v226
  %360 = vmatpush1.msra.mxu0 %v225
  %361 = vmatprep.subr.mxu0 %v222
  %362 = vmatpush1.msra.mxu0 %v221
  %363 = vmatprep.subr.mxu0 %v218
  %364 = vmatpush1.msra.mxu0 %v217
  %365 = vmatprep.subr.mxu0 %v214
  %366 = vmatpush1.msra.mxu0 %v213
  %367 = vmatprep.subr.mxu0 %v210
  %368 = vmatpush1.msra.mxu0 %v209
  %369 = vmatprep.subr.mxu0 %v206
  %370 = vmatpush1.msra.mxu0 %v205
  %371 = vmatprep.subr.mxu0 %v202
  %372 = vmatpush1.msra.mxu0 %v201
  %373 = vmatprep.subr.mxu0 %v198
  %374 = vmatpush1.msra.mxu0 %v197
  %375 = vmatprep.subr.mxu0 %v194
  %376 = vmatpush1.msra.mxu0 %v193
  %377 = vmatprep.subr.mxu0 %v190
  %378 = vmatpush1.msra.mxu0 %v189
  %379 = vmatprep.subr.mxu0 %v186
  %380 = vmatpush1.msra.mxu0 %v185
  %381 = vmatprep.subr.mxu0 %v182
  %382 = vmatpush1.msra.mxu0 %v181
  %383 = vmatprep.subr.mxu0 %v178
  %384 = vmatpush1.msra.mxu0 %v177
  %385 = vmatprep.subr.mxu0 %v174
  %386 = vmatpush1.msra.mxu0 %v173
  %387 = vmatprep.subr.mxu0 %v170
  %388 = vmatpush1.msra.mxu0 %v169
  %389 = vmatprep.subr.mxu0 %v166
  %390 = vmatpush1.msra.mxu0 %v165
  %391 = vmatprep.subr.mxu0 0.0
  %392 = vmatpush2.msra.mxu0 0.0
  %393 = vmatprep.subr.mxu0 0.0
  %394 = vmatpush2.msra.mxu0 0.0
  %395 = vmatprep.subr.mxu0 0.0
  %396 = vmatpush2.msra.mxu0 0.0
  %397 = vmatprep.subr.mxu0 0.0
  %398 = vmatpush2.msra.mxu0 0.0
  %399 = vmatprep.subr.mxu0 0.0
  %400 = vmatpush2.msra.mxu0 0.0
  %401 = vmatprep.subr.mxu0 0.0
  %402 = vmatpush2.msra.mxu0 0.0
  %403 = vmatprep.subr.mxu0 0.0
  %404 = vmatpush2.msra.mxu0 0.0
  %405 = vmatprep.subr.mxu0 0.0
  %406 = vmatpush2.msra.mxu0 0.0
  %407 = vmatprep.subr.mxu0 0.0
  %408 = vmatpush2.msra.mxu0 0.0
  %409 = vmatprep.subr.mxu0 0.0
  %410 = vmatpush2.msra.mxu0 0.0
  %411 = vmatprep.subr.mxu0 0.0
  %412 = vmatpush2.msra.mxu0 0.0
  %413 = vmatprep.subr.mxu0 %v280
  %414 = vmatpush2.msra.mxu0 %v277
  %415 = vmatprep.subr.mxu0 %v242
  %416 = vmatpush2.msra.mxu0 %v241
  %417 = vmatprep.subr.mxu0 %v238
  %418 = vmatpush2.msra.mxu0 %v237
  %419 = vmatprep.subr.mxu0 %v234
  %420 = vmatpush2.msra.mxu0 %v233
  %421 = vmatprep.subr.mxu0 %v230
  %422 = vmatpush2.msra.mxu0 %v229
  %423 = vmatprep.mubr.f32.mxu0 %v273
  %424 = vmatmul.mubr.f32.gmra.mxu0 %v31
  %v425 = vpop.f32.mrf.mxu0
  %v426 = vadd.f32 %v355, %v425
  %v427 = vpop.f32.mrf.mxu0
  %v428 = vadd.f32 %v357, %v427
  %429 = vdwg.mxu0
  %430 = vmatprep.subr.mxu0 %v100
  %431 = vmatpush1.msra.mxu0 %v99
  %432 = vmatprep.subr.mxu0 %v96
  %433 = vmatpush1.msra.mxu0 %v95
  %434 = vmatprep.subr.mxu0 %v92
  %435 = vmatpush1.msra.mxu0 %v91
  %436 = vmatprep.subr.mxu0 %v88
  %437 = vmatpush1.msra.mxu0 %v87
  %438 = vmatprep.subr.mxu0 %v84
  %439 = vmatpush1.msra.mxu0 %v83
  %440 = vmatprep.subr.mxu0 %v80
  %441 = vmatpush1.msra.mxu0 %v79
  %442 = vmatprep.subr.mxu0 %v76
  %443 = vmatpush1.msra.mxu0 %v75
  %444 = vmatprep.subr.mxu0 %v72
  %445 = vmatpush1.msra.mxu0 %v71
  %446 = vmatprep.subr.mxu0 %v68
  %447 = vmatpush1.msra.mxu0 %v67
  %448 = vmatprep.subr.mxu0 %v64
  %449 = vmatpush1.msra.mxu0 %v63
  %450 = vmatprep.subr.mxu0 %v60
  %451 = vmatpush1.msra.mxu0 %v59
  %452 = vmatprep.subr.mxu0 %v56
  %453 = vmatpush1.msra.mxu0 %v55
  %454 = vmatprep.subr.mxu0 %v52
  %455 = vmatpush1.msra.mxu0 %v51
  %456 = vmatprep.subr.mxu0 %v48
  %457 = vmatpush1.msra.mxu0 %v47
  %458 = vmatprep.subr.mxu0 %v44
  %459 = vmatpush1.msra.mxu0 %v43
  %460 = vmatprep.subr.mxu0 %v40
  %461 = vmatpush1.msra.mxu0 %v39
  %462 = vmatprep.subr.mxu0 %v164
  %463 = vmatpush2.msra.mxu0 %v163
  %464 = vmatprep.subr.mxu0 %v160
  %465 = vmatpush2.msra.mxu0 %v159
  %466 = vmatprep.subr.mxu0 %v156
  %467 = vmatpush2.msra.mxu0 %v155
  %468 = vmatprep.subr.mxu0 %v152
  %469 = vmatpush2.msra.mxu0 %v151
  %470 = vmatprep.subr.mxu0 %v148
  %471 = vmatpush2.msra.mxu0 %v147
  %472 = vmatprep.subr.mxu0 %v144
  %473 = vmatpush2.msra.mxu0 %v143
  %474 = vmatprep.subr.mxu0 %v140
  %475 = vmatpush2.msra.mxu0 %v139
  %476 = vmatprep.subr.mxu0 %v136
  %477 = vmatpush2.msra.mxu0 %v135
  %478 = vmatprep.subr.mxu0 %v132
  %479 = vmatpush2.msra.mxu0 %v131
  %480 = vmatprep.subr.mxu0 %v128
  %481 = vmatpush2.msra.mxu0 %v127
  %482 = vmatprep.subr.mxu0 %v124
  %483 = vmatpush2.msra.mxu0 %v123
  %484 = vmatprep.subr.mxu0 %v120
  %485 = vmatpush2.msra.mxu0 %v119
  %486 = vmatprep.subr.mxu0 %v116
  %487 = vmatpush2.msra.mxu0 %v115
  %488 = vmatprep.subr.mxu0 %v112
  %489 = vmatpush2.msra.mxu0 %v111
  %490 = vmatprep.subr.mxu0 %v108
  %491 = vmatpush2.msra.mxu0 %v107
  %492 = vmatprep.subr.mxu0 %v104
  %493 = vmatpush2.msra.mxu0 %v103
  %494 = vmatprep.mubr.f32.mxu0 %v30
  %495 = vmatmul.mubr.f32.gmra.mxu0 %v29
  %v496 = vpop.f32.mrf.mxu0
  %v497 = vadd.f32 %v262, %v496
  %v498 = vpop.f32.mrf.mxu0
  %v499 = vadd.f32 %v266, %v498
  %500 = vdwg.mxu0
  %501 = vmatprep.subr.mxu0 %v228
  %502 = vmatpush1.msra.mxu0 %v227
  %503 = vmatprep.subr.mxu0 %v224
  %504 = vmatpush1.msra.mxu0 %v223
  %505 = vmatprep.subr.mxu0 %v220
  %506 = vmatpush1.msra.mxu0 %v219
  %507 = vmatprep.subr.mxu0 %v216
  %508 = vmatpush1.msra.mxu0 %v215
  %509 = vmatprep.subr.mxu0 %v212
  %510 = vmatpush1.msra.mxu0 %v211
  %511 = vmatprep.subr.mxu0 %v208
  %512 = vmatpush1.msra.mxu0 %v207
  %513 = vmatprep.subr.mxu0 %v204
  %514 = vmatpush1.msra.mxu0 %v203
  %515 = vmatprep.subr.mxu0 %v200
  %516 = vmatpush1.msra.mxu0 %v199
  %517 = vmatprep.subr.mxu0 %v196
  %518 = vmatpush1.msra.mxu0 %v195
  %519 = vmatprep.subr.mxu0 %v192
  %520 = vmatpush1.msra.mxu0 %v191
  %521 = vmatprep.subr.mxu0 %v188
  %522 = vmatpush1.msra.mxu0 %v187
  %523 = vmatprep.subr.mxu0 %v184
  %524 = vmatpush1.msra.mxu0 %v183
  %525 = vmatprep.subr.mxu0 %v180
  %526 = vmatpush1.msra.mxu0 %v179
  %527 = vmatprep.subr.mxu0 %v176
  %528 = vmatpush1.msra.mxu0 %v175
  %529 = vmatprep.subr.mxu0 %v172
  %530 = vmatpush1.msra.mxu0 %v171
  %531 = vmatprep.subr.mxu0 %v168
  %532 = vmatpush1.msra.mxu0 %v167
  %533 = vmatprep.subr.mxu0 0.0
  %534 = vmatpush2.msra.mxu0 0.0
  %535 = vmatprep.subr.mxu0 0.0
  %536 = vmatpush2.msra.mxu0 0.0
  %537 = vmatprep.subr.mxu0 0.0
  %538 = vmatpush2.msra.mxu0 0.0
  %539 = vmatprep.subr.mxu0 0.0
  %540 = vmatpush2.msra.mxu0 0.0
  %541 = vmatprep.subr.mxu0 0.0
  %542 = vmatpush2.msra.mxu0 0.0
  %543 = vmatprep.subr.mxu0 0.0
  %544 = vmatpush2.msra.mxu0 0.0
  %545 = vmatprep.subr.mxu0 0.0
  %546 = vmatpush2.msra.mxu0 0.0
  %547 = vmatprep.subr.mxu0 0.0
  %548 = vmatpush2.msra.mxu0 0.0
  %549 = vmatprep.subr.mxu0 0.0
  %550 = vmatpush2.msra.mxu0 0.0
  %551 = vmatprep.subr.mxu0 0.0
  %552 = vmatpush2.msra.mxu0 0.0
  %553 = vmatprep.subr.mxu0 0.0
  %554 = vmatpush2.msra.mxu0 0.0
  %555 = vmatprep.subr.mxu0 %v286
  %556 = vmatpush2.msra.mxu0 %v283
  %557 = vmatprep.subr.mxu0 %v244
  %558 = vmatpush2.msra.mxu0 %v243
  %559 = vmatprep.subr.mxu0 %v240
  %560 = vmatpush2.msra.mxu0 %v239
  %561 = vmatprep.subr.mxu0 %v236
  %562 = vmatpush2.msra.mxu0 %v235
  %563 = vmatprep.subr.mxu0 %v232
  %564 = vmatpush2.msra.mxu0 %v231
  %565 = vmatprep.mubr.f32.mxu0 %v273
  %566 = vmatmul.mubr.f32.gmra.mxu0 %v31
  %v567 = vpop.f32.mrf.mxu0
  %v568 = vadd.f32 %v497, %v567
  %v569 = vpop.f32.mrf.mxu0
  %v570 = vadd.f32 %v499, %v569
  %571 = vdwg.mxu0
  %v572 = vxor.u32 %v426, 2147483648
  %v573 = vxor.u32 %v428, 2147483648
  %v574 = vxor.u32 %v568, 2147483648
  %v575 = vxor.u32 %v570, 2147483648
  %v576 = vmul.f32 %v572, 1.442695
  %v577 = vpow.pop %v576
  %v578 = vmul.f32 %v573, 1.442695
  %v579 = vpow.pop %v578
  %v580 = vmul.f32 %v574, 1.442695
  %v581 = vpow.pop %v580
  %v582 = vmul.f32 %v575, 1.442695
  %v583 = vpow.pop %v582
  %v584 = vadd.f32 %v577, 1.0
  %v585 = vadd.f32 %v579, 1.0
  %v586 = vadd.f32 %v581, 1.0
  %v587 = vadd.f32 %v583, 1.0
  %v588 = vrcp.pop %v584
  %v589 = vmul.f32 1.0, %v588
  %v590 = vrcp.pop %v585
  %v591 = vmul.f32 1.0, %v590
  %v592 = vrcp.pop %v586
  %v593 = vmul.f32 1.0, %v592
  %v594 = vrcp.pop %v587
  %v595 = vmul.f32 1.0, %v594
  %s596 = scalar_lea.vmem %s2, 1696
  %v597 = vld [vmem:[%s596] sm:$0xff]
  %v598 = vld [vmem:[%s596 + $0x8] sm:$0xff]
  %v599 = vld [vmem:[%s596 + $0x10] sm:$0xff]
  %v600 = vld [vmem:[%s596 + $0x18] sm:$0xff]
  %v601 = vld [vmem:[%s596 + $0x20] sm:$0xff]
  %v602 = vld [vmem:[%s596 + $0x28] sm:$0xff]
  %v603 = vld [vmem:[%s596 + $0x30] sm:$0xff]
  %v604 = vld [vmem:[%s596 + $0x38] sm:$0xff]
  %v605 = vld [vmem:[%s596 + $0x40] sm:$0xff]
  %v606 = vld [vmem:[%s596 + $0x48] sm:$0xff]
  %v607 = vld [vmem:[%s596 + $0x50] sm:$0xff]
  %v608 = vld [vmem:[%s596 + $0x58] sm:$0xff]
  %v609 = vld [vmem:[%s596 + $0x60] sm:$0xff]
  %v610 = vld [vmem:[%s596 + $0x68] sm:$0xff]
  %v611 = vld [vmem:[%s596 + $0x70] sm:$0xff]
  %v612 = vld [vmem:[%s596 + $0x78] sm:$0xff]
  %v613 = vld [vmem:[%s596 + $0x80] sm:$0xff]
  %v614 = vld [vmem:[%s596 + $0x88] sm:$0xff]
  %v615 = vld [vmem:[%s596 + $0x90] sm:$0xff]
  %v616 = vld [vmem:[%s596 + $0x98] sm:$0xff]
  %v617 = vld [vmem:[%s596 + $0xa0] sm:$0xff]
  %v618 = vld [vmem:[%s596 + $0xa8] sm:$0xff]
  %v619 = vld [vmem:[%s596 + $0xb0] sm:$0xff]
  %v620 = vld [vmem:[%s596 + $0xb8] sm:$0xff]
  %v621 = vld [vmem:[%s596 + $0xc0] sm:$0xff]
  %v622 = vld [vmem:[%s596 + $0xc8] sm:$0xff]
  %v623 = vld [vmem:[%s596 + $0xd0] sm:$0xff]
  %v624 = vld [vmem:[%s596 + $0xd8] sm:$0xff]
  %v625 = vld [vmem:[%s596 + $0xe0] sm:$0xff]
  %v626 = vld [vmem:[%s596 + $0xe8] sm:$0xff]
  %v627 = vld [vmem:[%s596 + $0xf0] sm:$0xff]
  %v628 = vld [vmem:[%s596 + $0xf8] sm:$0xff]
  %v629 = vld [vmem:[%s596 + $0x100] sm:$0xff]
  %v630 = vld [vmem:[%s596 + $0x108] sm:$0xff]
  %v631 = vld [vmem:[%s596 + $0x110] sm:$0xff]
  %v632 = vld [vmem:[%s596 + $0x118] sm:$0xff]
  %v633 = vld [vmem:[%s596 + $0x120] sm:$0xff]
  %v634 = vld [vmem:[%s596 + $0x128] sm:$0xff]
  %v635 = vld [vmem:[%s596 + $0x130] sm:$0xff]
  %v636 = vld [vmem:[%s596 + $0x138] sm:$0xff]
  %v637 = vld [vmem:[%s596 + $0x140] sm:$0xff]
  %v638 = vld [vmem:[%s596 + $0x148] sm:$0xff]
  %v639 = vld [vmem:[%s596 + $0x150] sm:$0xff]
  %v640 = vld [vmem:[%s596 + $0x158] sm:$0xff]
  %v641 = vld [vmem:[%s596 + $0x160] sm:$0xff]
  %v642 = vld [vmem:[%s596 + $0x168] sm:$0xff]
  %v643 = vld [vmem:[%s596 + $0x170] sm:$0xff]
  %v644 = vld [vmem:[%s596 + $0x178] sm:$0xff]
  %v645 = vld [vmem:[%s596 + $0x180] sm:$0xff]
  %v646 = vld [vmem:[%s596 + $0x188] sm:$0xff]
  %v647 = vld [vmem:[%s596 + $0x190] sm:$0xff]
  %v648 = vld [vmem:[%s596 + $0x198] sm:$0xff]
  %v649 = vld [vmem:[%s596 + $0x1a0] sm:$0xff]
  %v650 = vld [vmem:[%s596 + $0x1a8] sm:$0xff]
  %v651 = vld [vmem:[%s596 + $0x1b0] sm:$0xff]
  %v652 = vld [vmem:[%s596 + $0x1b8] sm:$0xff]
  %v653 = vld [vmem:[%s596 + $0x1c0] sm:$0xff]
  %v654 = vld [vmem:[%s596 + $0x1c8] sm:$0xff]
  %v655 = vld [vmem:[%s596 + $0x1d0] sm:$0xff]
  %v656 = vld [vmem:[%s596 + $0x1d8] sm:$0xff]
  %v657 = vld [vmem:[%s596 + $0x1e0] sm:$0xff]
  %v658 = vld [vmem:[%s596 + $0x1e8] sm:$0xff]
  %v659 = vld [vmem:[%s596 + $0x1f0] sm:$0xff]
  %v660 = vld [vmem:[%s596 + $0x1f8] sm:$0xff]
  %v661 = vld [vmem:[%s596 + $0x200] sm:$0xff]
  %v662 = vld [vmem:[%s596 + $0x208] sm:$0xff]
  %v663 = vld [vmem:[%s596 + $0x210] sm:$0xff]
  %v664 = vld [vmem:[%s596 + $0x218] sm:$0xff]
  %v665 = vld [vmem:[%s596 + $0x220] sm:$0xff]
  %v666 = vld [vmem:[%s596 + $0x228] sm:$0xff]
  %v667 = vld [vmem:[%s596 + $0x230] sm:$0xff]
  %v668 = vld [vmem:[%s596 + $0x238] sm:$0xff]
  %v669 = vld [vmem:[%s596 + $0x240] sm:$0xff]
  %v670 = vld [vmem:[%s596 + $0x248] sm:$0xff]
  %v671 = vld [vmem:[%s596 + $0x250] sm:$0xff]
  %v672 = vld [vmem:[%s596 + $0x258] sm:$0xff]
  %v673 = vld [vmem:[%s596 + $0x260] sm:$0xff]
  %v674 = vld [vmem:[%s596 + $0x268] sm:$0xff]
  %v675 = vld [vmem:[%s596 + $0x270] sm:$0xff]
  %v676 = vld [vmem:[%s596 + $0x278] sm:$0xff]
  %v677 = vld [vmem:[%s596 + $0x280] sm:$0xff]
  %v678 = vld [vmem:[%s596 + $0x288] sm:$0xff]
  %v679 = vld [vmem:[%s596 + $0x290] sm:$0xff]
  %v680 = vld [vmem:[%s596 + $0x298] sm:$0xff]
  %v681 = vld [vmem:[%s596 + $0x2a0] sm:$0xff]
  %v682 = vld [vmem:[%s596 + $0x2a8] sm:$0xff]
  %v683 = vld [vmem:[%s596 + $0x2b0] sm:$0xff]
  %v684 = vld [vmem:[%s596 + $0x2b8] sm:$0xff]
  %v685 = vld [vmem:[%s596 + $0x2c0] sm:$0xff]
  %v686 = vld [vmem:[%s596 + $0x2c8] sm:$0xff]
  %v687 = vld [vmem:[%s596 + $0x2d0] sm:$0xff]
  %v688 = vld [vmem:[%s596 + $0x2d8] sm:$0xff]
  %v689 = vld [vmem:[%s596 + $0x2e0] sm:$0xff]
  %v690 = vld [vmem:[%s596 + $0x2e8] sm:$0xff]
  %v691 = vld [vmem:[%s596 + $0x2f0] sm:$0xff]
  %v692 = vld [vmem:[%s596 + $0x2f8] sm:$0xff]
  %v693 = vld [vmem:[%s596 + $0x300] sm:$0xff]
  %v694 = vld [vmem:[%s596 + $0x308] sm:$0xff]
  %v695 = vld [vmem:[%s596 + $0x310] sm:$0xff]
  %v696 = vld [vmem:[%s596 + $0x318] sm:$0xff]
  %v697 = vld [vmem:[%s596 + $0x320] sm:$0xff]
  %v698 = vld [vmem:[%s596 + $0x328] sm:$0xff]
  %v699 = vld [vmem:[%s596 + $0x330] sm:$0xff]
  %v700 = vld [vmem:[%s596 + $0x338] sm:$0xff]
  %v701 = vld [vmem:[%s596 + $0x340] sm:$0xff]
  %v702 = vld [vmem:[%s596 + $0x348] sm:$0xff]
  %v703 = vld [vmem:[%s596 + $0x350] sm:$0xff]
  %v704 = vld [vmem:[%s596 + $0x358] sm:$0xff]
  %v705 = vld [vmem:[%s596 + $0x360] sm:$0xff]
  %v706 = vld [vmem:[%s596 + $0x368] sm:$0xff]
  %v707 = vld [vmem:[%s596 + $0x370] sm:$0xff]
  %v708 = vld [vmem:[%s596 + $0x378] sm:$0xff]
  %v709 = vld [vmem:[%s596 + $0x380] sm:$0xff]
  %v710 = vld [vmem:[%s596 + $0x388] sm:$0xff]
  %v711 = vld [vmem:[%s596 + $0x390] sm:$0xff]
  %v712 = vld [vmem:[%s596 + $0x398] sm:$0xff]
  %v713 = vld [vmem:[%s596 + $0x3a0] sm:$0xff]
  %v714 = vld [vmem:[%s596 + $0x3a8] sm:$0xff]
  %v715 = vld [vmem:[%s596 + $0x3b0] sm:$0xff]
  %v716 = vld [vmem:[%s596 + $0x3b8] sm:$0xff]
  %v717 = vld [vmem:[%s596 + $0x3c0] sm:$0xff]
  %v718 = vld [vmem:[%s596 + $0x3c8] sm:$0xff]
  %v719 = vld [vmem:[%s596 + $0x3d0] sm:$0xff]
  %v720 = vld [vmem:[%s596 + $0x3d8] sm:$0xff]
  %v721 = vld [vmem:[%s596 + $0x3e0] sm:$0xff]
  %v722 = vld [vmem:[%s596 + $0x3e8] sm:$0xff]
  %v723 = vld [vmem:[%s596 + $0x3f0] sm:$0xff]
  %v724 = vld [vmem:[%s596 + $0x3f8] sm:$0xff]
  %v725 = vld [vmem:[%s596 + $0x400] sm:$0xff]
  %v726 = vld [vmem:[%s596 + $0x408] sm:$0xff]
  %v727 = vld [vmem:[%s596 + $0x410] sm:$0xff]
  %v728 = vld [vmem:[%s596 + $0x418] sm:$0xff]
  %v729 = vld [vmem:[%s596 + $0x420] sm:$0xff]
  %v730 = vld [vmem:[%s596 + $0x428] sm:$0xff]
  %v731 = vld [vmem:[%s596 + $0x430] sm:$0xff]
  %v732 = vld [vmem:[%s596 + $0x438] sm:$0xff]
  %v733 = vld [vmem:[%s596 + $0x440] sm:$0xff]
  %v734 = vld [vmem:[%s596 + $0x448] sm:$0xff]
  %v735 = vld [vmem:[%s596 + $0x450] sm:$0xff]
  %v736 = vld [vmem:[%s596 + $0x458] sm:$0xff]
  %v737 = vld [vmem:[%s596 + $0x460] sm:$0xff]
  %v738 = vld [vmem:[%s596 + $0x468] sm:$0xff]
  %v739 = vld [vmem:[%s596 + $0x470] sm:$0xff]
  %v740 = vld [vmem:[%s596 + $0x478] sm:$0xff]
  %v741 = vld [vmem:[%s596 + $0x480] sm:$0xff]
  %v742 = vld [vmem:[%s596 + $0x488] sm:$0xff]
  %v743 = vld [vmem:[%s596 + $0x490] sm:$0xff]
  %v744 = vld [vmem:[%s596 + $0x498] sm:$0xff]
  %v745 = vld [vmem:[%s596 + $0x4a0] sm:$0xff]
  %v746 = vld [vmem:[%s596 + $0x4a8] sm:$0xff]
  %v747 = vld [vmem:[%s596 + $0x4b0] sm:$0xff]
  %v748 = vld [vmem:[%s596 + $0x4b8] sm:$0xff]
  %v749 = vld [vmem:[%s596 + $0x4c0] sm:$0xff]
  %v750 = vld [vmem:[%s596 + $0x4c8] sm:$0xff]
  %v751 = vld [vmem:[%s596 + $0x4d0] sm:$0xff]
  %v752 = vld [vmem:[%s596 + $0x4d8] sm:$0xff]
  %v753 = vld [vmem:[%s596 + $0x4e0] sm:$0xff]
  %v754 = vld [vmem:[%s596 + $0x4e8] sm:$0xff]
  %v755 = vld [vmem:[%s596 + $0x4f0] sm:$0xff]
  %v756 = vld [vmem:[%s596 + $0x4f8] sm:$0xff]
  %v757 = vld [vmem:[%s596 + $0x500] sm:$0xff]
  %v758 = vld [vmem:[%s596 + $0x508] sm:$0xff]
  %v759 = vld [vmem:[%s596 + $0x510] sm:$0xff]
  %v760 = vld [vmem:[%s596 + $0x518] sm:$0xff]
  %v761 = vld [vmem:[%s596 + $0x520] sm:$0xff]
  %v762 = vld [vmem:[%s596 + $0x528] sm:$0xff]
  %v763 = vld [vmem:[%s596 + $0x530] sm:$0xff]
  %v764 = vld [vmem:[%s596 + $0x538] sm:$0xff]
  %v765 = vld [vmem:[%s596 + $0x540] sm:$0xff]
  %v766 = vld [vmem:[%s596 + $0x548] sm:$0xff]
  %v767 = vld [vmem:[%s596 + $0x550] sm:$0xff]
  %v768 = vld [vmem:[%s596 + $0x558] sm:$0xff]
  %v769 = vld [vmem:[%s596 + $0x560] sm:$0xff]
  %v770 = vld [vmem:[%s596 + $0x568] sm:$0xff]
  %v771 = vld [vmem:[%s596 + $0x570] sm:$0xff]
  %v772 = vld [vmem:[%s596 + $0x578] sm:$0xff]
  %v773 = vld [vmem:[%s596 + $0x580] sm:$0xff]
  %v774 = vld [vmem:[%s596 + $0x588] sm:$0xff]
  %v775 = vld [vmem:[%s596 + $0x590] sm:$0xff]
  %v776 = vld [vmem:[%s596 + $0x598] sm:$0xff]
  %v777 = vld [vmem:[%s596 + $0x5a0] sm:$0xff]
  %v778 = vld [vmem:[%s596 + $0x5a8] sm:$0xff]
  %v779 = vld [vmem:[%s596 + $0x5b0] sm:$0xff]
  %v780 = vld [vmem:[%s596 + $0x5b8] sm:$0xff]
  %v781 = vld [vmem:[%s596 + $0x5c0] sm:$0xff]
  %v782 = vld [vmem:[%s596 + $0x5c8] sm:$0xff]
  %v783 = vld [vmem:[%s596 + $0x5d0] sm:$0xff]
  %v784 = vld [vmem:[%s596 + $0x5d8] sm:$0xff]
  %v785 = vld [vmem:[%s596 + $0x5e0] sm:$0xff]
  %v786 = vld [vmem:[%s596 + $0x5e8] sm:$0xff]
  %v787 = vld [vmem:[%s596 + $0x5f0] sm:$0xff]
  %v788 = vld [vmem:[%s596 + $0x5f8] sm:$0xff]
  %v789 = vld [vmem:[%s596 + $0x600] sm:$0xff]
  %v790 = vld [vmem:[%s596 + $0x608] sm:$0xff]
  %v791 = vld [vmem:[%s596 + $0x610] sm:$0xff]
  %v792 = vld [vmem:[%s596 + $0x618] sm:$0xff]
  %v793 = vld [vmem:[%s596 + $0x620] sm:$0xff]
  %v794 = vld [vmem:[%s596 + $0x628] sm:$0xff]
  %v795 = vld [vmem:[%s596 + $0x630] sm:$0xff]
  %v796 = vld [vmem:[%s596 + $0x638] sm:$0xff]
  %v797 = vld [vmem:[%s596 + $0x640] sm:$0xff]
  %v798 = vld [vmem:[%s596 + $0x648] sm:$0xff]
  %v799 = vld [vmem:[%s596 + $0x650] sm:$0xff]
  %v800 = vld [vmem:[%s596 + $0x658] sm:$0xff]
  %v801 = vld [vmem:[%s596 + $0x660] sm:$0xff]
  %v802 = vld [vmem:[%s596 + $0x668] sm:$0xff]
  %v803 = vld [vmem:[%s596 + $0x670] sm:$0xff]
  %v804 = vld [vmem:[%s596 + $0x678] sm:$0xff]
  %v805 = vld [vmem:[%s596 + $0x680] sm:$0xf]
  %v806 = vld [vmem:[%s596 + $0x688] sm:$0xf]
  %v807 = vld [vmem:[%s596 + $0x690] sm:$0xf]
  %v808 = vld [vmem:[%s596 + $0x698] sm:$0xf]
  %s809 = scalar_lea.vmem %s3, 4
  %v810 = vld [vmem:[%s809] sm:$0xf]
  %v812 = vlaneseq
  %v813 = vshrl.u32 %v812, 7
  %v814 = vsub.s32 0, %v813
  %v815 = vrot.slane %v810, %v814
  %v816 = vlaneseq
  %v817 = vshrl.u32 %v816, 7
  %v818 = vsub.s32 1, %v817
  %v819 = vrot.slane %v810, %v818
  %v820 = vlaneseq
  %v821 = vshrl.u32 %v820, 7
  %v822 = vsub.s32 2, %v821
  %v823 = vrot.slane %v810, %v822
  %v824 = vlaneseq
  %v825 = vshrl.u32 %v824, 7
  %v826 = vsub.s32 3, %v825
  %v827 = vrot.slane %v810, %v826
  %v833 = vsel %vm271, %v595, 0
  %v836 = vsel %vm275, %v805, 0
  %v839 = vsel %vm275, %v806, 0
  %v842 = vsel %vm275, %v807, 0
  %v845 = vsel %vm275, %v808, 0
  %847 = vmatprep.subr.mxu0 %v658
  %848 = vmatpush1.msra.mxu0 %v657
  %849 = vmatprep.subr.mxu0 %v654
  %850 = vmatpush1.msra.mxu0 %v653
  %851 = vmatprep.subr.mxu0 %v650
  %852 = vmatpush1.msra.mxu0 %v649
  %853 = vmatprep.subr.mxu0 %v646
  %854 = vmatpush1.msra.mxu0 %v645
  %855 = vmatprep.subr.mxu0 %v642
  %856 = vmatpush1.msra.mxu0 %v641
  %857 = vmatprep.subr.mxu0 %v638
  %858 = vmatpush1.msra.mxu0 %v637
  %859 = vmatprep.subr.mxu0 %v634
  %860 = vmatpush1.msra.mxu0 %v633
  %861 = vmatprep.subr.mxu0 %v630
  %862 = vmatpush1.msra.mxu0 %v629
  %863 = vmatprep.subr.mxu0 %v626
  %864 = vmatpush1.msra.mxu0 %v625
  %865 = vmatprep.subr.mxu0 %v622
  %866 = vmatpush1.msra.mxu0 %v621
  %867 = vmatprep.subr.mxu0 %v618
  %868 = vmatpush1.msra.mxu0 %v617
  %869 = vmatprep.subr.mxu0 %v614
  %870 = vmatpush1.msra.mxu0 %v613
  %871 = vmatprep.subr.mxu0 %v610
  %872 = vmatpush1.msra.mxu0 %v609
  %873 = vmatprep.subr.mxu0 %v606
  %874 = vmatpush1.msra.mxu0 %v605
  %875 = vmatprep.subr.mxu0 %v602
  %876 = vmatpush1.msra.mxu0 %v601
  %877 = vmatprep.subr.mxu0 %v598
  %878 = vmatpush1.msra.mxu0 %v597
  %879 = vmatprep.subr.mxu0 %v722
  %880 = vmatpush2.msra.mxu0 %v721
  %881 = vmatprep.subr.mxu0 %v718
  %882 = vmatpush2.msra.mxu0 %v717
  %883 = vmatprep.subr.mxu0 %v714
  %884 = vmatpush2.msra.mxu0 %v713
  %885 = vmatprep.subr.mxu0 %v710
  %886 = vmatpush2.msra.mxu0 %v709
  %887 = vmatprep.subr.mxu0 %v706
  %888 = vmatpush2.msra.mxu0 %v705
  %889 = vmatprep.subr.mxu0 %v702
  %890 = vmatpush2.msra.mxu0 %v701
  %891 = vmatprep.subr.mxu0 %v698
  %892 = vmatpush2.msra.mxu0 %v697
  %893 = vmatprep.subr.mxu0 %v694
  %894 = vmatpush2.msra.mxu0 %v693
  %895 = vmatprep.subr.mxu0 %v690
  %896 = vmatpush2.msra.mxu0 %v689
  %897 = vmatprep.subr.mxu0 %v686
  %898 = vmatpush2.msra.mxu0 %v685
  %899 = vmatprep.subr.mxu0 %v682
  %900 = vmatpush2.msra.mxu0 %v681
  %901 = vmatprep.subr.mxu0 %v678
  %902 = vmatpush2.msra.mxu0 %v677
  %903 = vmatprep.subr.mxu0 %v674
  %904 = vmatpush2.msra.mxu0 %v673
  %905 = vmatprep.subr.mxu0 %v670
  %906 = vmatpush2.msra.mxu0 %v669
  %907 = vmatprep.subr.mxu0 %v666
  %908 = vmatpush2.msra.mxu0 %v665
  %909 = vmatprep.subr.mxu0 %v662
  %910 = vmatpush2.msra.mxu0 %v661
  %911 = vmatprep.mubr.f32.mxu0 %v591
  %912 = vmatmul.mubr.f32.gmra.mxu0 %v589
  %v913 = vpop.f32.mrf.mxu0
  %v914 = vadd.f32 %v815, %v913
  %v915 = vpop.f32.mrf.mxu0
  %v916 = vadd.f32 %v819, %v915
  %917 = vdwg.mxu0
  %918 = vmatprep.subr.mxu0 %v786
  %919 = vmatpush1.msra.mxu0 %v785
  %920 = vmatprep.subr.mxu0 %v782
  %921 = vmatpush1.msra.mxu0 %v781
  %922 = vmatprep.subr.mxu0 %v778
  %923 = vmatpush1.msra.mxu0 %v777
  %924 = vmatprep.subr.mxu0 %v774
  %925 = vmatpush1.msra.mxu0 %v773
  %926 = vmatprep.subr.mxu0 %v770
  %927 = vmatpush1.msra.mxu0 %v769
  %928 = vmatprep.subr.mxu0 %v766
  %929 = vmatpush1.msra.mxu0 %v765
  %930 = vmatprep.subr.mxu0 %v762
  %931 = vmatpush1.msra.mxu0 %v761
  %932 = vmatprep.subr.mxu0 %v758
  %933 = vmatpush1.msra.mxu0 %v757
  %934 = vmatprep.subr.mxu0 %v754
  %935 = vmatpush1.msra.mxu0 %v753
  %936 = vmatprep.subr.mxu0 %v750
  %937 = vmatpush1.msra.mxu0 %v749
  %938 = vmatprep.subr.mxu0 %v746
  %939 = vmatpush1.msra.mxu0 %v745
  %940 = vmatprep.subr.mxu0 %v742
  %941 = vmatpush1.msra.mxu0 %v741
  %942 = vmatprep.subr.mxu0 %v738
  %943 = vmatpush1.msra.mxu0 %v737
  %944 = vmatprep.subr.mxu0 %v734
  %945 = vmatpush1.msra.mxu0 %v733
  %946 = vmatprep.subr.mxu0 %v730
  %947 = vmatpush1.msra.mxu0 %v729
  %948 = vmatprep.subr.mxu0 %v726
  %949 = vmatpush1.msra.mxu0 %v725
  %950 = vmatprep.subr.mxu0 0.0
  %951 = vmatpush2.msra.mxu0 0.0
  %952 = vmatprep.subr.mxu0 0.0
  %953 = vmatpush2.msra.mxu0 0.0
  %954 = vmatprep.subr.mxu0 0.0
  %955 = vmatpush2.msra.mxu0 0.0
  %956 = vmatprep.subr.mxu0 0.0
  %957 = vmatpush2.msra.mxu0 0.0
  %958 = vmatprep.subr.mxu0 0.0
  %959 = vmatpush2.msra.mxu0 0.0
  %960 = vmatprep.subr.mxu0 0.0
  %961 = vmatpush2.msra.mxu0 0.0
  %962 = vmatprep.subr.mxu0 0.0
  %963 = vmatpush2.msra.mxu0 0.0
  %964 = vmatprep.subr.mxu0 0.0
  %965 = vmatpush2.msra.mxu0 0.0
  %966 = vmatprep.subr.mxu0 0.0
  %967 = vmatpush2.msra.mxu0 0.0
  %968 = vmatprep.subr.mxu0 0.0
  %969 = vmatpush2.msra.mxu0 0.0
  %970 = vmatprep.subr.mxu0 0.0
  %971 = vmatpush2.msra.mxu0 0.0
  %972 = vmatprep.subr.mxu0 %v839
  %973 = vmatpush2.msra.mxu0 %v836
  %974 = vmatprep.subr.mxu0 %v802
  %975 = vmatpush2.msra.mxu0 %v801
  %976 = vmatprep.subr.mxu0 %v798
  %977 = vmatpush2.msra.mxu0 %v797
  %978 = vmatprep.subr.mxu0 %v794
  %979 = vmatpush2.msra.mxu0 %v793
  %980 = vmatprep.subr.mxu0 %v790
  %981 = vmatpush2.msra.mxu0 %v789
  %982 = vmatprep.mubr.f32.mxu0 %v833
  %983 = vmatmul.mubr.f32.gmra.mxu0 %v593
  %v984 = vpop.f32.mrf.mxu0
  %v985 = vadd.f32 %v914, %v984
  %v986 = vpop.f32.mrf.mxu0
  %v987 = vadd.f32 %v916, %v986
  %988 = vdwg.mxu0
  %989 = vmatprep.subr.mxu0 %v660
  %990 = vmatpush1.msra.mxu0 %v659
  %991 = vmatprep.subr.mxu0 %v656
  %992 = vmatpush1.msra.mxu0 %v655
  %993 = vmatprep.subr.mxu0 %v652
  %994 = vmatpush1.msra.mxu0 %v651
  %995 = vmatprep.subr.mxu0 %v648
  %996 = vmatpush1.msra.mxu0 %v647
  %997 = vmatprep.subr.mxu0 %v644
  %998 = vmatpush1.msra.mxu0 %v643
  %999 = vmatprep.subr.mxu0 %v640
  %1000 = vmatpush1.msra.mxu0 %v639
  %1001 = vmatprep.subr.mxu0 %v636
  %1002 = vmatpush1.msra.mxu0 %v635
  %1003 = vmatprep.subr.mxu0 %v632
  %1004 = vmatpush1.msra.mxu0 %v631
  %1005 = vmatprep.subr.mxu0 %v628
  %1006 = vmatpush1.msra.mxu0 %v627
  %1007 = vmatprep.subr.mxu0 %v624
  %1008 = vmatpush1.msra.mxu0 %v623
  %1009 = vmatprep.subr.mxu0 %v620
  %1010 = vmatpush1.msra.mxu0 %v619
  %1011 = vmatprep.subr.mxu0 %v616
  %1012 = vmatpush1.msra.mxu0 %v615
  %1013 = vmatprep.subr.mxu0 %v612
  %1014 = vmatpush1.msra.mxu0 %v611
  %1015 = vmatprep.subr.mxu0 %v608
  %1016 = vmatpush1.msra.mxu0 %v607
  %1017 = vmatprep.subr.mxu0 %v604
  %1018 = vmatpush1.msra.mxu0 %v603
  %1019 = vmatprep.subr.mxu0 %v600
  %1020 = vmatpush1.msra.mxu0 %v599
  %1021 = vmatprep.subr.mxu0 %v724
  %1022 = vmatpush2.msra.mxu0 %v723
  %1023 = vmatprep.subr.mxu0 %v720
  %1024 = vmatpush2.msra.mxu0 %v719
  %1025 = vmatprep.subr.mxu0 %v716
  %1026 = vmatpush2.msra.mxu0 %v715
  %1027 = vmatprep.subr.mxu0 %v712
  %1028 = vmatpush2.msra.mxu0 %v711
  %1029 = vmatprep.subr.mxu0 %v708
  %1030 = vmatpush2.msra.mxu0 %v707
  %1031 = vmatprep.subr.mxu0 %v704
  %1032 = vmatpush2.msra.mxu0 %v703
  %1033 = vmatprep.subr.mxu0 %v700
  %1034 = vmatpush2.msra.mxu0 %v699
  %1035 = vmatprep.subr.mxu0 %v696
  %1036 = vmatpush2.msra.mxu0 %v695
  %1037 = vmatprep.subr.mxu0 %v692
  %1038 = vmatpush2.msra.mxu0 %v691
  %1039 = vmatprep.subr.mxu0 %v688
  %1040 = vmatpush2.msra.mxu0 %v687
  %1041 = vmatprep.subr.mxu0 %v684
  %1042 = vmatpush2.msra.mxu0 %v683
  %1043 = vmatprep.subr.mxu0 %v680
  %1044 = vmatpush2.msra.mxu0 %v679
  %1045 = vmatprep.subr.mxu0 %v676
  %1046 = vmatpush2.msra.mxu0 %v675
  %1047 = vmatprep.subr.mxu0 %v672
  %1048 = vmatpush2.msra.mxu0 %v671
  %1049 = vmatprep.subr.mxu0 %v668
  %1050 = vmatpush2.msra.mxu0 %v667
  %1051 = vmatprep.subr.mxu0 %v664
  %1052 = vmatpush2.msra.mxu0 %v663
  %1053 = vmatprep.mubr.f32.mxu0 %v591
  %1054 = vmatmul.mubr.f32.gmra.mxu0 %v589
  %v1055 = vpop.f32.mrf.mxu0
  %v1056 = vadd.f32 %v823, %v1055
  %v1057 = vpop.f32.mrf.mxu0
  %v1058 = vadd.f32 %v827, %v1057
  %1059 = vdwg.mxu0
  %1060 = vmatprep.subr.mxu0 %v788
  %1061 = vmatpush1.msra.mxu0 %v787
  %1062 = vmatprep.subr.mxu0 %v784
  %1063 = vmatpush1.msra.mxu0 %v783
  %1064 = vmatprep.subr.mxu0 %v780
  %1065 = vmatpush1.msra.mxu0 %v779
  %1066 = vmatprep.subr.mxu0 %v776
  %1067 = vmatpush1.msra.mxu0 %v775
  %1068 = vmatprep.subr.mxu0 %v772
  %1069 = vmatpush1.msra.mxu0 %v771
  %1070 = vmatprep.subr.mxu0 %v768
  %1071 = vmatpush1.msra.mxu0 %v767
  %1072 = vmatprep.subr.mxu0 %v764
  %1073 = vmatpush1.msra.mxu0 %v763
  %1074 = vmatprep.subr.mxu0 %v760
  %1075 = vmatpush1.msra.mxu0 %v759
  %1076 = vmatprep.subr.mxu0 %v756
  %1077 = vmatpush1.msra.mxu0 %v755
  %1078 = vmatprep.subr.mxu0 %v752
  %1079 = vmatpush1.msra.mxu0 %v751
  %1080 = vmatprep.subr.mxu0 %v748
  %1081 = vmatpush1.msra.mxu0 %v747
  %1082 = vmatprep.subr.mxu0 %v744
  %1083 = vmatpush1.msra.mxu0 %v743
  %1084 = vmatprep.subr.mxu0 %v740
  %1085 = vmatpush1.msra.mxu0 %v739
  %1086 = vmatprep.subr.mxu0 %v736
  %1087 = vmatpush1.msra.mxu0 %v735
  %1088 = vmatprep.subr.mxu0 %v732
  %1089 = vmatpush1.msra.mxu0 %v731
  %1090 = vmatprep.subr.mxu0 %v728
  %1091 = vmatpush1.msra.mxu0 %v727
  %1092 = vmatprep.subr.mxu0 0.0
  %1093 = vmatpush2.msra.mxu0 0.0
  %1094 = vmatprep.subr.mxu0 0.0
  %1095 = vmatpush2.msra.mxu0 0.0
  %1096 = vmatprep.subr.mxu0 0.0
  %1097 = vmatpush2.msra.mxu0 0.0
  %1098 = vmatprep.subr.mxu0 0.0
  %1099 = vmatpush2.msra.mxu0 0.0
  %1100 = vmatprep.subr.mxu0 0.0
  %1101 = vmatpush2.msra.mxu0 0.0
  %1102 = vmatprep.subr.mxu0 0.0
  %1103 = vmatpush2.msra.mxu0 0.0
  %1104 = vmatprep.subr.mxu0 0.0
  %1105 = vmatpush2.msra.mxu0 0.0
  %1106 = vmatprep.subr.mxu0 0.0
  %1107 = vmatpush2.msra.mxu0 0.0
  %1108 = vmatprep.subr.mxu0 0.0
  %1109 = vmatpush2.msra.mxu0 0.0
  %1110 = vmatprep.subr.mxu0 0.0
  %1111 = vmatpush2.msra.mxu0 0.0
  %1112 = vmatprep.subr.mxu0 0.0
  %1113 = vmatpush2.msra.mxu0 0.0
  %1114 = vmatprep.subr.mxu0 %v845
  %1115 = vmatpush2.msra.mxu0 %v842
  %1116 = vmatprep.subr.mxu0 %v804
  %1117 = vmatpush2.msra.mxu0 %v803
  %1118 = vmatprep.subr.mxu0 %v800
  %1119 = vmatpush2.msra.mxu0 %v799
  %1120 = vmatprep.subr.mxu0 %v796
  %1121 = vmatpush2.msra.mxu0 %v795
  %1122 = vmatprep.subr.mxu0 %v792
  %1123 = vmatpush2.msra.mxu0 %v791
  %1124 = vmatprep.mubr.f32.mxu0 %v833
  %1125 = vmatmul.mubr.f32.gmra.mxu0 %v593
  %v1126 = vpop.f32.mrf.mxu0
  %v1127 = vadd.f32 %v1056, %v1126
  %v1128 = vpop.f32.mrf.mxu0
  %v1129 = vadd.f32 %v1058, %v1128
  %1130 = vdwg.mxu0
  %s1131 = scalar_lea.vmem %s2, 3392
  %v1132 = vld [vmem:[%s1131] sm:$0xff]
  %v1133 = vld [vmem:[%s1131 + $0x8] sm:$0xff]
  %v1134 = vld [vmem:[%s1131 + $0x10] sm:$0xff]
  %v1135 = vld [vmem:[%s1131 + $0x18] sm:$0xff]
  %v1136 = vld [vmem:[%s1131 + $0x20] sm:$0xff]
  %v1137 = vld [vmem:[%s1131 + $0x28] sm:$0xff]
  %v1138 = vld [vmem:[%s1131 + $0x30] sm:$0xff]
  %v1139 = vld [vmem:[%s1131 + $0x38] sm:$0xff]
  %v1140 = vld [vmem:[%s1131 + $0x40] sm:$0xff]
  %v1141 = vld [vmem:[%s1131 + $0x48] sm:$0xff]
  %v1142 = vld [vmem:[%s1131 + $0x50] sm:$0xff]
  %v1143 = vld [vmem:[%s1131 + $0x58] sm:$0xff]
  %v1144 = vld [vmem:[%s1131 + $0x60] sm:$0xff]
  %v1145 = vld [vmem:[%s1131 + $0x68] sm:$0xff]
  %v1146 = vld [vmem:[%s1131 + $0x70] sm:$0xff]
  %v1147 = vld [vmem:[%s1131 + $0x78] sm:$0xff]
  %v1148 = vld [vmem:[%s1131 + $0x80] sm:$0xff]
  %v1149 = vld [vmem:[%s1131 + $0x88] sm:$0xff]
  %v1150 = vld [vmem:[%s1131 + $0x90] sm:$0xff]
  %v1151 = vld [vmem:[%s1131 + $0x98] sm:$0xff]
  %v1152 = vld [vmem:[%s1131 + $0xa0] sm:$0xff]
  %v1153 = vld [vmem:[%s1131 + $0xa8] sm:$0xff]
  %v1154 = vld [vmem:[%s1131 + $0xb0] sm:$0xff]
  %v1155 = vld [vmem:[%s1131 + $0xb8] sm:$0xff]
  %v1156 = vld [vmem:[%s1131 + $0xc0] sm:$0xff]
  %v1157 = vld [vmem:[%s1131 + $0xc8] sm:$0xff]
  %v1158 = vld [vmem:[%s1131 + $0xd0] sm:$0xff]
  %v1159 = vld [vmem:[%s1131 + $0xd8] sm:$0xff]
  %v1160 = vld [vmem:[%s1131 + $0xe0] sm:$0xff]
  %v1161 = vld [vmem:[%s1131 + $0xe8] sm:$0xff]
  %v1162 = vld [vmem:[%s1131 + $0xf0] sm:$0xff]
  %v1163 = vld [vmem:[%s1131 + $0xf8] sm:$0xff]
  %v1164 = vld [vmem:[%s1131 + $0x100] sm:$0xff]
  %v1165 = vld [vmem:[%s1131 + $0x108] sm:$0xff]
  %v1166 = vld [vmem:[%s1131 + $0x110] sm:$0xff]
  %v1167 = vld [vmem:[%s1131 + $0x118] sm:$0xff]
  %v1168 = vld [vmem:[%s1131 + $0x120] sm:$0xff]
  %v1169 = vld [vmem:[%s1131 + $0x128] sm:$0xff]
  %v1170 = vld [vmem:[%s1131 + $0x130] sm:$0xff]
  %v1171 = vld [vmem:[%s1131 + $0x138] sm:$0xff]
  %v1172 = vld [vmem:[%s1131 + $0x140] sm:$0xff]
  %v1173 = vld [vmem:[%s1131 + $0x148] sm:$0xff]
  %v1174 = vld [vmem:[%s1131 + $0x150] sm:$0xff]
  %v1175 = vld [vmem:[%s1131 + $0x158] sm:$0xff]
  %v1176 = vld [vmem:[%s1131 + $0x160] sm:$0xff]
  %v1177 = vld [vmem:[%s1131 + $0x168] sm:$0xff]
  %v1178 = vld [vmem:[%s1131 + $0x170] sm:$0xff]
  %v1179 = vld [vmem:[%s1131 + $0x178] sm:$0xff]
  %v1180 = vld [vmem:[%s1131 + $0x180] sm:$0xff]
  %v1181 = vld [vmem:[%s1131 + $0x188] sm:$0xff]
  %v1182 = vld [vmem:[%s1131 + $0x190] sm:$0xff]
  %v1183 = vld [vmem:[%s1131 + $0x198] sm:$0xff]
  %v1184 = vld [vmem:[%s1131 + $0x1a0] sm:$0xff]
  %v1185 = vld [vmem:[%s1131 + $0x1a8] sm:$0xff]
  %v1186 = vld [vmem:[%s1131 + $0x1b0] sm:$0xff]
  %v1187 = vld [vmem:[%s1131 + $0x1b8] sm:$0xff]
  %v1188 = vld [vmem:[%s1131 + $0x1c0] sm:$0xff]
  %v1189 = vld [vmem:[%s1131 + $0x1c8] sm:$0xff]
  %v1190 = vld [vmem:[%s1131 + $0x1d0] sm:$0xff]
  %v1191 = vld [vmem:[%s1131 + $0x1d8] sm:$0xff]
  %v1192 = vld [vmem:[%s1131 + $0x1e0] sm:$0xff]
  %v1193 = vld [vmem:[%s1131 + $0x1e8] sm:$0xff]
  %v1194 = vld [vmem:[%s1131 + $0x1f0] sm:$0xff]
  %v1195 = vld [vmem:[%s1131 + $0x1f8] sm:$0xff]
  %v1196 = vld [vmem:[%s1131 + $0x200] sm:$0xff]
  %v1197 = vld [vmem:[%s1131 + $0x208] sm:$0xff]
  %v1198 = vld [vmem:[%s1131 + $0x210] sm:$0xff]
  %v1199 = vld [vmem:[%s1131 + $0x218] sm:$0xff]
  %v1200 = vld [vmem:[%s1131 + $0x220] sm:$0xff]
  %v1201 = vld [vmem:[%s1131 + $0x228] sm:$0xff]
  %v1202 = vld [vmem:[%s1131 + $0x230] sm:$0xff]
  %v1203 = vld [vmem:[%s1131 + $0x238] sm:$0xff]
  %v1204 = vld [vmem:[%s1131 + $0x240] sm:$0xff]
  %v1205 = vld [vmem:[%s1131 + $0x248] sm:$0xff]
  %v1206 = vld [vmem:[%s1131 + $0x250] sm:$0xff]
  %v1207 = vld [vmem:[%s1131 + $0x258] sm:$0xff]
  %v1208 = vld [vmem:[%s1131 + $0x260] sm:$0xff]
  %v1209 = vld [vmem:[%s1131 + $0x268] sm:$0xff]
  %v1210 = vld [vmem:[%s1131 + $0x270] sm:$0xff]
  %v1211 = vld [vmem:[%s1131 + $0x278] sm:$0xff]
  %v1212 = vld [vmem:[%s1131 + $0x280] sm:$0xff]
  %v1213 = vld [vmem:[%s1131 + $0x288] sm:$0xff]
  %v1214 = vld [vmem:[%s1131 + $0x290] sm:$0xff]
  %v1215 = vld [vmem:[%s1131 + $0x298] sm:$0xff]
  %v1216 = vld [vmem:[%s1131 + $0x2a0] sm:$0xff]
  %v1217 = vld [vmem:[%s1131 + $0x2a8] sm:$0xff]
  %v1218 = vld [vmem:[%s1131 + $0x2b0] sm:$0xff]
  %v1219 = vld [vmem:[%s1131 + $0x2b8] sm:$0xff]
  %v1220 = vld [vmem:[%s1131 + $0x2c0] sm:$0xff]
  %v1221 = vld [vmem:[%s1131 + $0x2c8] sm:$0xff]
  %v1222 = vld [vmem:[%s1131 + $0x2d0] sm:$0xff]
  %v1223 = vld [vmem:[%s1131 + $0x2d8] sm:$0xff]
  %v1224 = vld [vmem:[%s1131 + $0x2e0] sm:$0xff]
  %v1225 = vld [vmem:[%s1131 + $0x2e8] sm:$0xff]
  %v1226 = vld [vmem:[%s1131 + $0x2f0] sm:$0xff]
  %v1227 = vld [vmem:[%s1131 + $0x2f8] sm:$0xff]
  %v1228 = vld [vmem:[%s1131 + $0x300] sm:$0xff]
  %v1229 = vld [vmem:[%s1131 + $0x308] sm:$0xff]
  %v1230 = vld [vmem:[%s1131 + $0x310] sm:$0xff]
  %v1231 = vld [vmem:[%s1131 + $0x318] sm:$0xff]
  %v1232 = vld [vmem:[%s1131 + $0x320] sm:$0xff]
  %v1233 = vld [vmem:[%s1131 + $0x328] sm:$0xff]
  %v1234 = vld [vmem:[%s1131 + $0x330] sm:$0xff]
  %v1235 = vld [vmem:[%s1131 + $0x338] sm:$0xff]
  %v1236 = vld [vmem:[%s1131 + $0x340] sm:$0xff]
  %v1237 = vld [vmem:[%s1131 + $0x348] sm:$0xff]
  %v1238 = vld [vmem:[%s1131 + $0x350] sm:$0xff]
  %v1239 = vld [vmem:[%s1131 + $0x358] sm:$0xff]
  %v1240 = vld [vmem:[%s1131 + $0x360] sm:$0xff]
  %v1241 = vld [vmem:[%s1131 + $0x368] sm:$0xff]
  %v1242 = vld [vmem:[%s1131 + $0x370] sm:$0xff]
  %v1243 = vld [vmem:[%s1131 + $0x378] sm:$0xff]
  %v1244 = vld [vmem:[%s1131 + $0x380] sm:$0xff]
  %v1245 = vld [vmem:[%s1131 + $0x388] sm:$0xff]
  %v1246 = vld [vmem:[%s1131 + $0x390] sm:$0xff]
  %v1247 = vld [vmem:[%s1131 + $0x398] sm:$0xff]
  %v1248 = vld [vmem:[%s1131 + $0x3a0] sm:$0xff]
  %v1249 = vld [vmem:[%s1131 + $0x3a8] sm:$0xff]
  %v1250 = vld [vmem:[%s1131 + $0x3b0] sm:$0xff]
  %v1251 = vld [vmem:[%s1131 + $0x3b8] sm:$0xff]
  %v1252 = vld [vmem:[%s1131 + $0x3c0] sm:$0xff]
  %v1253 = vld [vmem:[%s1131 + $0x3c8] sm:$0xff]
  %v1254 = vld [vmem:[%s1131 + $0x3d0] sm:$0xff]
  %v1255 = vld [vmem:[%s1131 + $0x3d8] sm:$0xff]
  %v1256 = vld [vmem:[%s1131 + $0x3e0] sm:$0xff]
  %v1257 = vld [vmem:[%s1131 + $0x3e8] sm:$0xff]
  %v1258 = vld [vmem:[%s1131 + $0x3f0] sm:$0xff]
  %v1259 = vld [vmem:[%s1131 + $0x3f8] sm:$0xff]
  %v1260 = vld [vmem:[%s1131 + $0x400] sm:$0xff]
  %v1261 = vld [vmem:[%s1131 + $0x408] sm:$0xff]
  %v1262 = vld [vmem:[%s1131 + $0x410] sm:$0xff]
  %v1263 = vld [vmem:[%s1131 + $0x418] sm:$0xff]
  %v1264 = vld [vmem:[%s1131 + $0x420] sm:$0xff]
  %v1265 = vld [vmem:[%s1131 + $0x428] sm:$0xff]
  %v1266 = vld [vmem:[%s1131 + $0x430] sm:$0xff]
  %v1267 = vld [vmem:[%s1131 + $0x438] sm:$0xff]
  %v1268 = vld [vmem:[%s1131 + $0x440] sm:$0xff]
  %v1269 = vld [vmem:[%s1131 + $0x448] sm:$0xff]
  %v1270 = vld [vmem:[%s1131 + $0x450] sm:$0xff]
  %v1271 = vld [vmem:[%s1131 + $0x458] sm:$0xff]
  %v1272 = vld [vmem:[%s1131 + $0x460] sm:$0xff]
  %v1273 = vld [vmem:[%s1131 + $0x468] sm:$0xff]
  %v1274 = vld [vmem:[%s1131 + $0x470] sm:$0xff]
  %v1275 = vld [vmem:[%s1131 + $0x478] sm:$0xff]
  %v1276 = vld [vmem:[%s1131 + $0x480] sm:$0xff]
  %v1277 = vld [vmem:[%s1131 + $0x488] sm:$0xff]
  %v1278 = vld [vmem:[%s1131 + $0x490] sm:$0xff]
  %v1279 = vld [vmem:[%s1131 + $0x498] sm:$0xff]
  %v1280 = vld [vmem:[%s1131 + $0x4a0] sm:$0xff]
  %v1281 = vld [vmem:[%s1131 + $0x4a8] sm:$0xff]
  %v1282 = vld [vmem:[%s1131 + $0x4b0] sm:$0xff]
  %v1283 = vld [vmem:[%s1131 + $0x4b8] sm:$0xff]
  %v1284 = vld [vmem:[%s1131 + $0x4c0] sm:$0xff]
  %v1285 = vld [vmem:[%s1131 + $0x4c8] sm:$0xff]
  %v1286 = vld [vmem:[%s1131 + $0x4d0] sm:$0xff]
  %v1287 = vld [vmem:[%s1131 + $0x4d8] sm:$0xff]
  %v1288 = vld [vmem:[%s1131 + $0x4e0] sm:$0xff]
  %v1289 = vld [vmem:[%s1131 + $0x4e8] sm:$0xff]
  %v1290 = vld [vmem:[%s1131 + $0x4f0] sm:$0xff]
  %v1291 = vld [vmem:[%s1131 + $0x4f8] sm:$0xff]
  %v1292 = vld [vmem:[%s1131 + $0x500] sm:$0xff]
  %v1293 = vld [vmem:[%s1131 + $0x508] sm:$0xff]
  %v1294 = vld [vmem:[%s1131 + $0x510] sm:$0xff]
  %v1295 = vld [vmem:[%s1131 + $0x518] sm:$0xff]
  %v1296 = vld [vmem:[%s1131 + $0x520] sm:$0xff]
  %v1297 = vld [vmem:[%s1131 + $0x528] sm:$0xff]
  %v1298 = vld [vmem:[%s1131 + $0x530] sm:$0xff]
  %v1299 = vld [vmem:[%s1131 + $0x538] sm:$0xff]
  %v1300 = vld [vmem:[%s1131 + $0x540] sm:$0xff]
  %v1301 = vld [vmem:[%s1131 + $0x548] sm:$0xff]
  %v1302 = vld [vmem:[%s1131 + $0x550] sm:$0xff]
  %v1303 = vld [vmem:[%s1131 + $0x558] sm:$0xff]
  %v1304 = vld [vmem:[%s1131 + $0x560] sm:$0xff]
  %v1305 = vld [vmem:[%s1131 + $0x568] sm:$0xff]
  %v1306 = vld [vmem:[%s1131 + $0x570] sm:$0xff]
  %v1307 = vld [vmem:[%s1131 + $0x578] sm:$0xff]
  %v1308 = vld [vmem:[%s1131 + $0x580] sm:$0xff]
  %v1309 = vld [vmem:[%s1131 + $0x588] sm:$0xff]
  %v1310 = vld [vmem:[%s1131 + $0x590] sm:$0xff]
  %v1311 = vld [vmem:[%s1131 + $0x598] sm:$0xff]
  %v1312 = vld [vmem:[%s1131 + $0x5a0] sm:$0xff]
  %v1313 = vld [vmem:[%s1131 + $0x5a8] sm:$0xff]
  %v1314 = vld [vmem:[%s1131 + $0x5b0] sm:$0xff]
  %v1315 = vld [vmem:[%s1131 + $0x5b8] sm:$0xff]
  %v1316 = vld [vmem:[%s1131 + $0x5c0] sm:$0xff]
  %v1317 = vld [vmem:[%s1131 + $0x5c8] sm:$0xff]
  %v1318 = vld [vmem:[%s1131 + $0x5d0] sm:$0xff]
  %v1319 = vld [vmem:[%s1131 + $0x5d8] sm:$0xff]
  %v1320 = vld [vmem:[%s1131 + $0x5e0] sm:$0xff]
  %v1321 = vld [vmem:[%s1131 + $0x5e8] sm:$0xff]
  %v1322 = vld [vmem:[%s1131 + $0x5f0] sm:$0xff]
  %v1323 = vld [vmem:[%s1131 + $0x5f8] sm:$0xff]
  %v1324 = vld [vmem:[%s1131 + $0x600] sm:$0xff]
  %v1325 = vld [vmem:[%s1131 + $0x608] sm:$0xff]
  %v1326 = vld [vmem:[%s1131 + $0x610] sm:$0xff]
  %v1327 = vld [vmem:[%s1131 + $0x618] sm:$0xff]
  %v1328 = vld [vmem:[%s1131 + $0x620] sm:$0xff]
  %v1329 = vld [vmem:[%s1131 + $0x628] sm:$0xff]
  %v1330 = vld [vmem:[%s1131 + $0x630] sm:$0xff]
  %v1331 = vld [vmem:[%s1131 + $0x638] sm:$0xff]
  %v1332 = vld [vmem:[%s1131 + $0x640] sm:$0xff]
  %v1333 = vld [vmem:[%s1131 + $0x648] sm:$0xff]
  %v1334 = vld [vmem:[%s1131 + $0x650] sm:$0xff]
  %v1335 = vld [vmem:[%s1131 + $0x658] sm:$0xff]
  %v1336 = vld [vmem:[%s1131 + $0x660] sm:$0xff]
  %v1337 = vld [vmem:[%s1131 + $0x668] sm:$0xff]
  %v1338 = vld [vmem:[%s1131 + $0x670] sm:$0xff]
  %v1339 = vld [vmem:[%s1131 + $0x678] sm:$0xff]
  %v1340 = vld [vmem:[%s1131 + $0x680] sm:$0xf]
  %v1341 = vld [vmem:[%s1131 + $0x688] sm:$0xf]
  %v1342 = vld [vmem:[%s1131 + $0x690] sm:$0xf]
  %v1343 = vld [vmem:[%s1131 + $0x698] sm:$0xf]
  %s1344 = scalar_lea.vmem %s3, 8
  %v1345 = vld [vmem:[%s1344] sm:$0xf]
  %v1347 = vlaneseq
  %v1348 = vshrl.u32 %v1347, 7
  %v1349 = vsub.s32 0, %v1348
  %v1350 = vrot.slane %v1345, %v1349
  %v1351 = vlaneseq
  %v1352 = vshrl.u32 %v1351, 7
  %v1353 = vsub.s32 1, %v1352
  %v1354 = vrot.slane %v1345, %v1353
  %v1355 = vlaneseq
  %v1356 = vshrl.u32 %v1355, 7
  %v1357 = vsub.s32 2, %v1356
  %v1358 = vrot.slane %v1345, %v1357
  %v1359 = vlaneseq
  %v1360 = vshrl.u32 %v1359, 7
  %v1361 = vsub.s32 3, %v1360
  %v1362 = vrot.slane %v1345, %v1361
  %v1368 = vsel %vm271, %v1129, 0
  %v1371 = vsel %vm275, %v1340, 0
  %v1374 = vsel %vm275, %v1341, 0
  %v1377 = vsel %vm275, %v1342, 0
  %v1380 = vsel %vm275, %v1343, 0
  %1382 = vmatprep.subr.mxu0 %v1193
  %1383 = vmatpush1.msra.mxu0 %v1192
  %1384 = vmatprep.subr.mxu0 %v1189
  %1385 = vmatpush1.msra.mxu0 %v1188
  %1386 = vmatprep.subr.mxu0 %v1185
  %1387 = vmatpush1.msra.mxu0 %v1184
  %1388 = vmatprep.subr.mxu0 %v1181
  %1389 = vmatpush1.msra.mxu0 %v1180
  %1390 = vmatprep.subr.mxu0 %v1177
  %1391 = vmatpush1.msra.mxu0 %v1176
  %1392 = vmatprep.subr.mxu0 %v1173
  %1393 = vmatpush1.msra.mxu0 %v1172
  %1394 = vmatprep.subr.mxu0 %v1169
  %1395 = vmatpush1.msra.mxu0 %v1168
  %1396 = vmatprep.subr.mxu0 %v1165
  %1397 = vmatpush1.msra.mxu0 %v1164
  %1398 = vmatprep.subr.mxu0 %v1161
  %1399 = vmatpush1.msra.mxu0 %v1160
  %1400 = vmatprep.subr.mxu0 %v1157
  %1401 = vmatpush1.msra.mxu0 %v1156
  %1402 = vmatprep.subr.mxu0 %v1153
  %1403 = vmatpush1.msra.mxu0 %v1152
  %1404 = vmatprep.subr.mxu0 %v1149
  %1405 = vmatpush1.msra.mxu0 %v1148
  %1406 = vmatprep.subr.mxu0 %v1145
  %1407 = vmatpush1.msra.mxu0 %v1144
  %1408 = vmatprep.subr.mxu0 %v1141
  %1409 = vmatpush1.msra.mxu0 %v1140
  %1410 = vmatprep.subr.mxu0 %v1137
  %1411 = vmatpush1.msra.mxu0 %v1136
  %1412 = vmatprep.subr.mxu0 %v1133
  %1413 = vmatpush1.msra.mxu0 %v1132
  %1414 = vmatprep.subr.mxu0 %v1257
  %1415 = vmatpush2.msra.mxu0 %v1256
  %1416 = vmatprep.subr.mxu0 %v1253
  %1417 = vmatpush2.msra.mxu0 %v1252
  %1418 = vmatprep.subr.mxu0 %v1249
  %1419 = vmatpush2.msra.mxu0 %v1248
  %1420 = vmatprep.subr.mxu0 %v1245
  %1421 = vmatpush2.msra.mxu0 %v1244
  %1422 = vmatprep.subr.mxu0 %v1241
  %1423 = vmatpush2.msra.mxu0 %v1240
  %1424 = vmatprep.subr.mxu0 %v1237
  %1425 = vmatpush2.msra.mxu0 %v1236
  %1426 = vmatprep.subr.mxu0 %v1233
  %1427 = vmatpush2.msra.mxu0 %v1232
  %1428 = vmatprep.subr.mxu0 %v1229
  %1429 = vmatpush2.msra.mxu0 %v1228
  %1430 = vmatprep.subr.mxu0 %v1225
  %1431 = vmatpush2.msra.mxu0 %v1224
  %1432 = vmatprep.subr.mxu0 %v1221
  %1433 = vmatpush2.msra.mxu0 %v1220
  %1434 = vmatprep.subr.mxu0 %v1217
  %1435 = vmatpush2.msra.mxu0 %v1216
  %1436 = vmatprep.subr.mxu0 %v1213
  %1437 = vmatpush2.msra.mxu0 %v1212
  %1438 = vmatprep.subr.mxu0 %v1209
  %1439 = vmatpush2.msra.mxu0 %v1208
  %1440 = vmatprep.subr.mxu0 %v1205
  %1441 = vmatpush2.msra.mxu0 %v1204
  %1442 = vmatprep.subr.mxu0 %v1201
  %1443 = vmatpush2.msra.mxu0 %v1200
  %1444 = vmatprep.subr.mxu0 %v1197
  %1445 = vmatpush2.msra.mxu0 %v1196
  %1446 = vmatprep.mubr.f32.mxu0 %v987
  %1447 = vmatmul.mubr.f32.gmra.mxu0 %v985
  %v1448 = vpop.f32.mrf.mxu0
  %v1449 = vadd.f32 %v1350, %v1448
  %v1450 = vpop.f32.mrf.mxu0
  %v1451 = vadd.f32 %v1354, %v1450
  %1452 = vdwg.mxu0
  %1453 = vmatprep.subr.mxu0 %v1321
  %1454 = vmatpush1.msra.mxu0 %v1320
  %1455 = vmatprep.subr.mxu0 %v1317
  %1456 = vmatpush1.msra.mxu0 %v1316
  %1457 = vmatprep.subr.mxu0 %v1313
  %1458 = vmatpush1.msra.mxu0 %v1312
  %1459 = vmatprep.subr.mxu0 %v1309
  %1460 = vmatpush1.msra.mxu0 %v1308
  %1461 = vmatprep.subr.mxu0 %v1305
  %1462 = vmatpush1.msra.mxu0 %v1304
  %1463 = vmatprep.subr.mxu0 %v1301
  %1464 = vmatpush1.msra.mxu0 %v1300
  %1465 = vmatprep.subr.mxu0 %v1297
  %1466 = vmatpush1.msra.mxu0 %v1296
  %1467 = vmatprep.subr.mxu0 %v1293
  %1468 = vmatpush1.msra.mxu0 %v1292
  %1469 = vmatprep.subr.mxu0 %v1289
  %1470 = vmatpush1.msra.mxu0 %v1288
  %1471 = vmatprep.subr.mxu0 %v1285
  %1472 = vmatpush1.msra.mxu0 %v1284
  %1473 = vmatprep.subr.mxu0 %v1281
  %1474 = vmatpush1.msra.mxu0 %v1280
  %1475 = vmatprep.subr.mxu0 %v1277
  %1476 = vmatpush1.msra.mxu0 %v1276
  %1477 = vmatprep.subr.mxu0 %v1273
  %1478 = vmatpush1.msra.mxu0 %v1272
  %1479 = vmatprep.subr.mxu0 %v1269
  %1480 = vmatpush1.msra.mxu0 %v1268
  %1481 = vmatprep.subr.mxu0 %v1265
  %1482 = vmatpush1.msra.mxu0 %v1264
  %1483 = vmatprep.subr.mxu0 %v1261
  %1484 = vmatpush1.msra.mxu0 %v1260
  %1485 = vmatprep.subr.mxu0 0.0
  %1486 = vmatpush2.msra.mxu0 0.0
  %1487 = vmatprep.subr.mxu0 0.0
  %1488 = vmatpush2.msra.mxu0 0.0
  %1489 = vmatprep.subr.mxu0 0.0
  %1490 = vmatpush2.msra.mxu0 0.0
  %1491 = vmatprep.subr.mxu0 0.0
  %1492 = vmatpush2.msra.mxu0 0.0
  %1493 = vmatprep.subr.mxu0 0.0
  %1494 = vmatpush2.msra.mxu0 0.0
  %1495 = vmatprep.subr.mxu0 0.0
  %1496 = vmatpush2.msra.mxu0 0.0
  %1497 = vmatprep.subr.mxu0 0.0
  %1498 = vmatpush2.msra.mxu0 0.0
  %1499 = vmatprep.subr.mxu0 0.0
  %1500 = vmatpush2.msra.mxu0 0.0
  %1501 = vmatprep.subr.mxu0 0.0
  %1502 = vmatpush2.msra.mxu0 0.0
  %1503 = vmatprep.subr.mxu0 0.0
  %1504 = vmatpush2.msra.mxu0 0.0
  %1505 = vmatprep.subr.mxu0 0.0
  %1506 = vmatpush2.msra.mxu0 0.0
  %1507 = vmatprep.subr.mxu0 %v1374
  %1508 = vmatpush2.msra.mxu0 %v1371
  %1509 = vmatprep.subr.mxu0 %v1337
  %1510 = vmatpush2.msra.mxu0 %v1336
  %1511 = vmatprep.subr.mxu0 %v1333
  %1512 = vmatpush2.msra.mxu0 %v1332
  %1513 = vmatprep.subr.mxu0 %v1329
  %1514 = vmatpush2.msra.mxu0 %v1328
  %1515 = vmatprep.subr.mxu0 %v1325
  %1516 = vmatpush2.msra.mxu0 %v1324
  %1517 = vmatprep.mubr.f32.mxu0 %v1368
  %1518 = vmatmul.mubr.f32.gmra.mxu0 %v1127
  %v1519 = vpop.f32.mrf.mxu0
  %v1520 = vadd.f32 %v1449, %v1519
  %v1521 = vpop.f32.mrf.mxu0
  %v1522 = vadd.f32 %v1451, %v1521
  %1523 = vdwg.mxu0
  %1524 = vmatprep.subr.mxu0 %v1195
  %1525 = vmatpush1.msra.mxu0 %v1194
  %1526 = vmatprep.subr.mxu0 %v1191
  %1527 = vmatpush1.msra.mxu0 %v1190
  %1528 = vmatprep.subr.mxu0 %v1187
  %1529 = vmatpush1.msra.mxu0 %v1186
  %1530 = vmatprep.subr.mxu0 %v1183
  %1531 = vmatpush1.msra.mxu0 %v1182
  %1532 = vmatprep.subr.mxu0 %v1179
  %1533 = vmatpush1.msra.mxu0 %v1178
  %1534 = vmatprep.subr.mxu0 %v1175
  %1535 = vmatpush1.msra.mxu0 %v1174
  %1536 = vmatprep.subr.mxu0 %v1171
  %1537 = vmatpush1.msra.mxu0 %v1170
  %1538 = vmatprep.subr.mxu0 %v1167
  %1539 = vmatpush1.msra.mxu0 %v1166
  %1540 = vmatprep.subr.mxu0 %v1163
  %1541 = vmatpush1.msra.mxu0 %v1162
  %1542 = vmatprep.subr.mxu0 %v1159
  %1543 = vmatpush1.msra.mxu0 %v1158
  %1544 = vmatprep.subr.mxu0 %v1155
  %1545 = vmatpush1.msra.mxu0 %v1154
  %1546 = vmatprep.subr.mxu0 %v1151
  %1547 = vmatpush1.msra.mxu0 %v1150
  %1548 = vmatprep.subr.mxu0 %v1147
  %1549 = vmatpush1.msra.mxu0 %v1146
  %1550 = vmatprep.subr.mxu0 %v1143
  %1551 = vmatpush1.msra.mxu0 %v1142
  %1552 = vmatprep.subr.mxu0 %v1139
  %1553 = vmatpush1.msra.mxu0 %v1138
  %1554 = vmatprep.subr.mxu0 %v1135
  %1555 = vmatpush1.msra.mxu0 %v1134
  %1556 = vmatprep.subr.mxu0 %v1259
  %1557 = vmatpush2.msra.mxu0 %v1258
  %1558 = vmatprep.subr.mxu0 %v1255
  %1559 = vmatpush2.msra.mxu0 %v1254
  %1560 = vmatprep.subr.mxu0 %v1251
  %1561 = vmatpush2.msra.mxu0 %v1250
  %1562 = vmatprep.subr.mxu0 %v1247
  %1563 = vmatpush2.msra.mxu0 %v1246
  %1564 = vmatprep.subr.mxu0 %v1243
  %1565 = vmatpush2.msra.mxu0 %v1242
  %1566 = vmatprep.subr.mxu0 %v1239
  %1567 = vmatpush2.msra.mxu0 %v1238
  %1568 = vmatprep.subr.mxu0 %v1235
  %1569 = vmatpush2.msra.mxu0 %v1234
  %1570 = vmatprep.subr.mxu0 %v1231
  %1571 = vmatpush2.msra.mxu0 %v1230
  %1572 = vmatprep.subr.mxu0 %v1227
  %1573 = vmatpush2.msra.mxu0 %v1226
  %1574 = vmatprep.subr.mxu0 %v1223
  %1575 = vmatpush2.msra.mxu0 %v1222
  %1576 = vmatprep.subr.mxu0 %v1219
  %1577 = vmatpush2.msra.mxu0 %v1218
  %1578 = vmatprep.subr.mxu0 %v1215
  %1579 = vmatpush2.msra.mxu0 %v1214
  %1580 = vmatprep.subr.mxu0 %v1211
  %1581 = vmatpush2.msra.mxu0 %v1210
  %1582 = vmatprep.subr.mxu0 %v1207
  %1583 = vmatpush2.msra.mxu0 %v1206
  %1584 = vmatprep.subr.mxu0 %v1203
  %1585 = vmatpush2.msra.mxu0 %v1202
  %1586 = vmatprep.subr.mxu0 %v1199
  %1587 = vmatpush2.msra.mxu0 %v1198
  %1588 = vmatprep.mubr.f32.mxu0 %v987
  %1589 = vmatmul.mubr.f32.gmra.mxu0 %v985
  %v1590 = vpop.f32.mrf.mxu0
  %v1591 = vadd.f32 %v1358, %v1590
  %v1592 = vpop.f32.mrf.mxu0
  %v1593 = vadd.f32 %v1362, %v1592
  %1594 = vdwg.mxu0
  %1595 = vmatprep.subr.mxu0 %v1323
  %1596 = vmatpush1.msra.mxu0 %v1322
  %1597 = vmatprep.subr.mxu0 %v1319
  %1598 = vmatpush1.msra.mxu0 %v1318
  %1599 = vmatprep.subr.mxu0 %v1315
  %1600 = vmatpush1.msra.mxu0 %v1314
  %1601 = vmatprep.subr.mxu0 %v1311
  %1602 = vmatpush1.msra.mxu0 %v1310
  %1603 = vmatprep.subr.mxu0 %v1307
  %1604 = vmatpush1.msra.mxu0 %v1306
  %1605 = vmatprep.subr.mxu0 %v1303
  %1606 = vmatpush1.msra.mxu0 %v1302
  %1607 = vmatprep.subr.mxu0 %v1299
  %1608 = vmatpush1.msra.mxu0 %v1298
  %1609 = vmatprep.subr.mxu0 %v1295
  %1610 = vmatpush1.msra.mxu0 %v1294
  %1611 = vmatprep.subr.mxu0 %v1291
  %1612 = vmatpush1.msra.mxu0 %v1290
  %1613 = vmatprep.subr.mxu0 %v1287
  %1614 = vmatpush1.msra.mxu0 %v1286
  %1615 = vmatprep.subr.mxu0 %v1283
  %1616 = vmatpush1.msra.mxu0 %v1282
  %1617 = vmatprep.subr.mxu0 %v1279
  %1618 = vmatpush1.msra.mxu0 %v1278
  %1619 = vmatprep.subr.mxu0 %v1275
  %1620 = vmatpush1.msra.mxu0 %v1274
  %1621 = vmatprep.subr.mxu0 %v1271
  %1622 = vmatpush1.msra.mxu0 %v1270
  %1623 = vmatprep.subr.mxu0 %v1267
  %1624 = vmatpush1.msra.mxu0 %v1266
  %1625 = vmatprep.subr.mxu0 %v1263
  %1626 = vmatpush1.msra.mxu0 %v1262
  %1627 = vmatprep.subr.mxu0 0.0
  %1628 = vmatpush2.msra.mxu0 0.0
  %1629 = vmatprep.subr.mxu0 0.0
  %1630 = vmatpush2.msra.mxu0 0.0
  %1631 = vmatprep.subr.mxu0 0.0
  %1632 = vmatpush2.msra.mxu0 0.0
  %1633 = vmatprep.subr.mxu0 0.0
  %1634 = vmatpush2.msra.mxu0 0.0
  %1635 = vmatprep.subr.mxu0 0.0
  %1636 = vmatpush2.msra.mxu0 0.0
  %1637 = vmatprep.subr.mxu0 0.0
  %1638 = vmatpush2.msra.mxu0 0.0
  %1639 = vmatprep.subr.mxu0 0.0
  %1640 = vmatpush2.msra.mxu0 0.0
  %1641 = vmatprep.subr.mxu0 0.0
  %1642 = vmatpush2.msra.mxu0 0.0
  %1643 = vmatprep.subr.mxu0 0.0
  %1644 = vmatpush2.msra.mxu0 0.0
  %1645 = vmatprep.subr.mxu0 0.0
  %1646 = vmatpush2.msra.mxu0 0.0
  %1647 = vmatprep.subr.mxu0 0.0
  %1648 = vmatpush2.msra.mxu0 0.0
  %1649 = vmatprep.subr.mxu0 %v1380
  %1650 = vmatpush2.msra.mxu0 %v1377
  %1651 = vmatprep.subr.mxu0 %v1339
  %1652 = vmatpush2.msra.mxu0 %v1338
  %1653 = vmatprep.subr.mxu0 %v1335
  %1654 = vmatpush2.msra.mxu0 %v1334
  %1655 = vmatprep.subr.mxu0 %v1331
  %1656 = vmatpush2.msra.mxu0 %v1330
  %1657 = vmatprep.subr.mxu0 %v1327
  %1658 = vmatpush2.msra.mxu0 %v1326
  %1659 = vmatprep.mubr.f32.mxu0 %v1368
  %1660 = vmatmul.mubr.f32.gmra.mxu0 %v1127
  %v1661 = vpop.f32.mrf.mxu0
  %v1662 = vadd.f32 %v1591, %v1661
  %v1663 = vpop.f32.mrf.mxu0
  %v1664 = vadd.f32 %v1593, %v1663
  %1665 = vdwg.mxu0
  %v1666 = vld [vmem:[%s5] sm:$0xff]
  %v1667 = vld [vmem:[%s5 + $0x8] sm:$0xff]
  %v1668 = vld [vmem:[%s5 + $0x10] sm:$0xff]
  %v1669 = vld [vmem:[%s5 + $0x18] sm:$0xff]
  %v1670 = vld [vmem:[%s5 + $0x20] sm:$0xff]
  %v1671 = vld [vmem:[%s5 + $0x28] sm:$0xff]
  %v1672 = vld [vmem:[%s5 + $0x30] sm:$0xff]
  %v1673 = vld [vmem:[%s5 + $0x38] sm:$0xff]
  %v1674 = vld [vmem:[%s5 + $0x40] sm:$0xff]
  %v1675 = vld [vmem:[%s5 + $0x48] sm:$0xff]
  %v1676 = vld [vmem:[%s5 + $0x50] sm:$0xff]
  %v1677 = vld [vmem:[%s5 + $0x58] sm:$0xff]
  %v1678 = vld [vmem:[%s5 + $0x60] sm:$0xff]
  %v1679 = vld [vmem:[%s5 + $0x68] sm:$0xff]
  %v1680 = vld [vmem:[%s5 + $0x70] sm:$0xff]
  %v1681 = vld [vmem:[%s5 + $0x78] sm:$0xff]
  %v1682 = vld [vmem:[%s5 + $0x80] sm:$0xff]
  %v1683 = vld [vmem:[%s5 + $0x88] sm:$0xff]
  %v1684 = vld [vmem:[%s5 + $0x90] sm:$0xff]
  %v1685 = vld [vmem:[%s5 + $0x98] sm:$0xff]
  %v1686 = vld [vmem:[%s5 + $0xa0] sm:$0xff]
  %v1687 = vld [vmem:[%s5 + $0xa8] sm:$0xff]
  %v1688 = vld [vmem:[%s5 + $0xb0] sm:$0xff]
  %v1689 = vld [vmem:[%s5 + $0xb8] sm:$0xff]
  %v1690 = vld [vmem:[%s5 + $0xc0] sm:$0xff]
  %v1691 = vld [vmem:[%s5 + $0xc8] sm:$0xff]
  %v1692 = vld [vmem:[%s5 + $0xd0] sm:$0xff]
  %v1693 = vld [vmem:[%s5 + $0xd8] sm:$0xff]
  %v1694 = vld [vmem:[%s5 + $0xe0] sm:$0xff]
  %v1695 = vld [vmem:[%s5 + $0xe8] sm:$0xff]
  %v1696 = vld [vmem:[%s5 + $0xf0] sm:$0xff]
  %v1697 = vld [vmem:[%s5 + $0xf8] sm:$0xff]
  %v1698 = vld [vmem:[%s5 + $0x100] sm:$0xff]
  %v1699 = vld [vmem:[%s5 + $0x108] sm:$0xff]
  %v1700 = vld [vmem:[%s5 + $0x110] sm:$0xff]
  %v1701 = vld [vmem:[%s5 + $0x118] sm:$0xff]
  %v1702 = vld [vmem:[%s5 + $0x120] sm:$0xff]
  %v1703 = vld [vmem:[%s5 + $0x128] sm:$0xff]
  %v1704 = vld [vmem:[%s5 + $0x130] sm:$0xff]
  %v1705 = vld [vmem:[%s5 + $0x138] sm:$0xff]
  %v1706 = vld [vmem:[%s5 + $0x140] sm:$0xff]
  %v1707 = vld [vmem:[%s5 + $0x148] sm:$0xff]
  %v1708 = vld [vmem:[%s5 + $0x150] sm:$0xff]
  %v1709 = vld [vmem:[%s5 + $0x158] sm:$0xff]
  %v1710 = vld [vmem:[%s5 + $0x160] sm:$0xff]
  %v1711 = vld [vmem:[%s5 + $0x168] sm:$0xff]
  %v1712 = vld [vmem:[%s5 + $0x170] sm:$0xff]
  %v1713 = vld [vmem:[%s5 + $0x178] sm:$0xff]
  %v1714 = vld [vmem:[%s5 + $0x180] sm:$0xff]
  %v1715 = vld [vmem:[%s5 + $0x188] sm:$0xff]
  %v1716 = vld [vmem:[%s5 + $0x190] sm:$0xff]
  %v1717 = vld [vmem:[%s5 + $0x198] sm:$0xff]
  %v1718 = vld [vmem:[%s5 + $0x1a0] sm:$0xf]
  %v1719 = vld [vmem:[%s6] sm:$0xff]
  %v1720 = vld [vmem:[%s6 + $0x8] sm:$0xff]
  %v1721 = vld [vmem:[%s6 + $0x10] sm:$0xff]
  %v1722 = vld [vmem:[%s6 + $0x18] sm:$0xff]
  %v1723 = vld [vmem:[%s6 + $0x20] sm:$0xff]
  %v1724 = vld [vmem:[%s6 + $0x28] sm:$0xff]
  %v1725 = vld [vmem:[%s6 + $0x30] sm:$0xff]
  %v1726 = vld [vmem:[%s6 + $0x38] sm:$0xff]
  %v1727 = vld [vmem:[%s6 + $0x40] sm:$0xff]
  %v1728 = vld [vmem:[%s6 + $0x48] sm:$0xff]
  %v1729 = vld [vmem:[%s6 + $0x50] sm:$0xff]
  %v1730 = vld [vmem:[%s6 + $0x58] sm:$0xff]
  %v1731 = vld [vmem:[%s6 + $0x60] sm:$0xff]
  %v1732 = vld [vmem:[%s6 + $0x68] sm:$0xff]
  %v1733 = vld [vmem:[%s6 + $0x70] sm:$0xff]
  %v1734 = vld [vmem:[%s6 + $0x78] sm:$0xff]
  %v1735 = vsel %vm271, %v1664, -inf
  %v1736 = vmax.f32 %v1520, %v1522
  %v1737 = vmax.f32 %v1662, %v1735
  %v1738 = vmax.f32 %v1736, %v1737
  %1739 = vmax.xlane.f32.xlu0 %v1738
  %v1740 = vpop.xlane.xlu0 %1739
  %v1741 = vsub.f32 %v1520, %v1740
  %v1742 = vsub.f32 %v1522, %v1740
  %v1743 = vsub.f32 %v1662, %v1740
  %v1744 = vsub.f32 %v1664, %v1740
  %v1745 = vmul.f32 %v1741, 1.442695
  %v1746 = vpow.pop %v1745
  %v1747 = vmul.f32 %v1742, 1.442695
  %v1748 = vpow.pop %v1747
  %v1749 = vmul.f32 %v1743, 1.442695
  %v1750 = vpow.pop %v1749
  %v1751 = vmul.f32 %v1744, 1.442695
  %v1752 = vpow.pop %v1751
  %v1754 = vsel %vm271, %v1752, 0
  %v1757 = vsel %vm275, %v1718, 0
  %1759 = vmatprep.subr.mxu0 0.0
  %1760 = vmatpush1.msra.mxu0 %v1681
  %1761 = vmatprep.subr.mxu0 0.0
  %1762 = vmatpush1.msra.mxu0 %v1680
  %1763 = vmatprep.subr.mxu0 0.0
  %1764 = vmatpush1.msra.mxu0 %v1679
  %1765 = vmatprep.subr.mxu0 0.0
  %1766 = vmatpush1.msra.mxu0 %v1678
  %1767 = vmatprep.subr.mxu0 0.0
  %1768 = vmatpush1.msra.mxu0 %v1677
  %1769 = vmatprep.subr.mxu0 0.0
  %1770 = vmatpush1.msra.mxu0 %v1676
  %1771 = vmatprep.subr.mxu0 0.0
  %1772 = vmatpush1.msra.mxu0 %v1675
  %1773 = vmatprep.subr.mxu0 0.0
  %1774 = vmatpush1.msra.mxu0 %v1674
  %1775 = vmatprep.subr.mxu0 0.0
  %1776 = vmatpush1.msra.mxu0 %v1673
  %1777 = vmatprep.subr.mxu0 0.0
  %1778 = vmatpush1.msra.mxu0 %v1672
  %1779 = vmatprep.subr.mxu0 0.0
  %1780 = vmatpush1.msra.mxu0 %v1671
  %1781 = vmatprep.subr.mxu0 0.0
  %1782 = vmatpush1.msra.mxu0 %v1670
  %1783 = vmatprep.subr.mxu0 0.0
  %1784 = vmatpush1.msra.mxu0 %v1669
  %1785 = vmatprep.subr.mxu0 0.0
  %1786 = vmatpush1.msra.mxu0 %v1668
  %1787 = vmatprep.subr.mxu0 0.0
  %1788 = vmatpush1.msra.mxu0 %v1667
  %1789 = vmatprep.subr.mxu0 0.0
  %1790 = vmatpush1.msra.mxu0 %v1666
  %1791 = vmatprep.subr.mxu0 0.0
  %1792 = vmatpush2.msra.mxu0 %v1697
  %1793 = vmatprep.subr.mxu0 0.0
  %1794 = vmatpush2.msra.mxu0 %v1696
  %1795 = vmatprep.subr.mxu0 0.0
  %1796 = vmatpush2.msra.mxu0 %v1695
  %1797 = vmatprep.subr.mxu0 0.0
  %1798 = vmatpush2.msra.mxu0 %v1694
  %1799 = vmatprep.subr.mxu0 0.0
  %1800 = vmatpush2.msra.mxu0 %v1693
  %1801 = vmatprep.subr.mxu0 0.0
  %1802 = vmatpush2.msra.mxu0 %v1692
  %1803 = vmatprep.subr.mxu0 0.0
  %1804 = vmatpush2.msra.mxu0 %v1691
  %1805 = vmatprep.subr.mxu0 0.0
  %1806 = vmatpush2.msra.mxu0 %v1690
  %1807 = vmatprep.subr.mxu0 0.0
  %1808 = vmatpush2.msra.mxu0 %v1689
  %1809 = vmatprep.subr.mxu0 0.0
  %1810 = vmatpush2.msra.mxu0 %v1688
  %1811 = vmatprep.subr.mxu0 0.0
  %1812 = vmatpush2.msra.mxu0 %v1687
  %1813 = vmatprep.subr.mxu0 0.0
  %1814 = vmatpush2.msra.mxu0 %v1686
  %1815 = vmatprep.subr.mxu0 0.0
  %1816 = vmatpush2.msra.mxu0 %v1685
  %1817 = vmatprep.subr.mxu0 0.0
  %1818 = vmatpush2.msra.mxu0 %v1684
  %1819 = vmatprep.subr.mxu0 0.0
  %1820 = vmatpush2.msra.mxu0 %v1683
  %1821 = vmatprep.subr.mxu0 0.0
  %1822 = vmatpush2.msra.mxu0 %v1682
  %1823 = vmatprep.mubr.f32.mxu0 %v1748
  %1824 = vmatmul.mubr.f32.gmra.mxu0 %v1746
  %v1825 = vpop.f32.mrf.mxu0
  %v1826 = vadd.f32 0.0, %v1825
  %v1827 = vpop.f32.mrf.mxu0
  %1828 = vdwg.mxu0
  %1829 = vmatprep.subr.mxu0 0.0
  %1830 = vmatpush1.msra.mxu0 %v1713
  %1831 = vmatprep.subr.mxu0 0.0
  %1832 = vmatpush1.msra.mxu0 %v1712
  %1833 = vmatprep.subr.mxu0 0.0
  %1834 = vmatpush1.msra.mxu0 %v1711
  %1835 = vmatprep.subr.mxu0 0.0
  %1836 = vmatpush1.msra.mxu0 %v1710
  %1837 = vmatprep.subr.mxu0 0.0
  %1838 = vmatpush1.msra.mxu0 %v1709
  %1839 = vmatprep.subr.mxu0 0.0
  %1840 = vmatpush1.msra.mxu0 %v1708
  %1841 = vmatprep.subr.mxu0 0.0
  %1842 = vmatpush1.msra.mxu0 %v1707
  %1843 = vmatprep.subr.mxu0 0.0
  %1844 = vmatpush1.msra.mxu0 %v1706
  %1845 = vmatprep.subr.mxu0 0.0
  %1846 = vmatpush1.msra.mxu0 %v1705
  %1847 = vmatprep.subr.mxu0 0.0
  %1848 = vmatpush1.msra.mxu0 %v1704
  %1849 = vmatprep.subr.mxu0 0.0
  %1850 = vmatpush1.msra.mxu0 %v1703
  %1851 = vmatprep.subr.mxu0 0.0
  %1852 = vmatpush1.msra.mxu0 %v1702
  %1853 = vmatprep.subr.mxu0 0.0
  %1854 = vmatpush1.msra.mxu0 %v1701
  %1855 = vmatprep.subr.mxu0 0.0
  %1856 = vmatpush1.msra.mxu0 %v1700
  %1857 = vmatprep.subr.mxu0 0.0
  %1858 = vmatpush1.msra.mxu0 %v1699
  %1859 = vmatprep.subr.mxu0 0.0
  %1860 = vmatpush1.msra.mxu0 %v1698
  %1861 = vmatprep.subr.mxu0 0.0
  %1862 = vmatpush2.msra.mxu0 0.0
  %1863 = vmatprep.subr.mxu0 0.0
  %1864 = vmatpush2.msra.mxu0 0.0
  %1865 = vmatprep.subr.mxu0 0.0
  %1866 = vmatpush2.msra.mxu0 0.0
  %1867 = vmatprep.subr.mxu0 0.0
  %1868 = vmatpush2.msra.mxu0 0.0
  %1869 = vmatprep.subr.mxu0 0.0
  %1870 = vmatpush2.msra.mxu0 0.0
  %1871 = vmatprep.subr.mxu0 0.0
  %1872 = vmatpush2.msra.mxu0 0.0
  %1873 = vmatprep.subr.mxu0 0.0
  %1874 = vmatpush2.msra.mxu0 0.0
  %1875 = vmatprep.subr.mxu0 0.0
  %1876 = vmatpush2.msra.mxu0 0.0
  %1877 = vmatprep.subr.mxu0 0.0
  %1878 = vmatpush2.msra.mxu0 0.0
  %1879 = vmatprep.subr.mxu0 0.0
  %1880 = vmatpush2.msra.mxu0 0.0
  %1881 = vmatprep.subr.mxu0 0.0
  %1882 = vmatpush2.msra.mxu0 0.0
  %1883 = vmatprep.subr.mxu0 0.0
  %1884 = vmatpush2.msra.mxu0 %v1757
  %1885 = vmatprep.subr.mxu0 0.0
  %1886 = vmatpush2.msra.mxu0 %v1717
  %1887 = vmatprep.subr.mxu0 0.0
  %1888 = vmatpush2.msra.mxu0 %v1716
  %1889 = vmatprep.subr.mxu0 0.0
  %1890 = vmatpush2.msra.mxu0 %v1715
  %1891 = vmatprep.subr.mxu0 0.0
  %1892 = vmatpush2.msra.mxu0 %v1714
  %1893 = vmatprep.mubr.f32.mxu0 %v1754
  %1894 = vmatmul.mubr.f32.gmra.mxu0 %v1750
  %v1895 = vpop.f32.mrf.mxu0
  %v1896 = vadd.f32 %v1826, %v1895
  %v1897 = vpop.f32.mrf.mxu0
  %1898 = vdwg.mxu0
  %vm1899 = vcmask 261120
  %v1901 = vsel %vm1899, %v1896, 0
  %1903 = vmatprep.subr.mxu0 0.0
  %1904 = vmatpush1.msra.mxu0 0.0
  %1905 = vmatprep.subr.mxu0 0.0
  %1906 = vmatpush1.msra.mxu0 0.0
  %1907 = vmatprep.subr.mxu0 0.0
  %1908 = vmatpush1.msra.mxu0 0.0
  %1909 = vmatprep.subr.mxu0 0.0
  %1910 = vmatpush1.msra.mxu0 0.0
  %1911 = vmatprep.subr.mxu0 0.0
  %1912 = vmatpush1.msra.mxu0 0.0
  %1913 = vmatprep.subr.mxu0 0.0
  %1914 = vmatpush1.msra.mxu0 0.0
  %1915 = vmatprep.subr.mxu0 0.0
  %1916 = vmatpush1.msra.mxu0 0.0
  %1917 = vmatprep.subr.mxu0 0.0
  %1918 = vmatpush1.msra.mxu0 0.0
  %1919 = vmatprep.subr.mxu0 0.0
  %1920 = vmatpush1.msra.mxu0 0.0
  %1921 = vmatprep.subr.mxu0 0.0
  %1922 = vmatpush1.msra.mxu0 0.0
  %1923 = vmatprep.subr.mxu0 0.0
  %1924 = vmatpush1.msra.mxu0 0.0
  %1925 = vmatprep.subr.mxu0 0.0
  %1926 = vmatpush1.msra.mxu0 0.0
  %1927 = vmatprep.subr.mxu0 %v1732
  %1928 = vmatpush1.msra.mxu0 %v1731
  %1929 = vmatprep.subr.mxu0 %v1728
  %1930 = vmatpush1.msra.mxu0 %v1727
  %1931 = vmatprep.subr.mxu0 %v1724
  %1932 = vmatpush1.msra.mxu0 %v1723
  %1933 = vmatprep.subr.mxu0 %v1720
  %1934 = vmatpush1.msra.mxu0 %v1719
  %1935 = vmatprep.subr.mxu0 0.0
  %1936 = vmatpush2.msra.mxu0 0.0
  %1937 = vmatprep.subr.mxu0 0.0
  %1938 = vmatpush2.msra.mxu0 0.0
  %1939 = vmatprep.subr.mxu0 0.0
  %1940 = vmatpush2.msra.mxu0 0.0
  %1941 = vmatprep.subr.mxu0 0.0
  %1942 = vmatpush2.msra.mxu0 0.0
  %1943 = vmatprep.subr.mxu0 0.0
  %1944 = vmatpush2.msra.mxu0 0.0
  %1945 = vmatprep.subr.mxu0 0.0
  %1946 = vmatpush2.msra.mxu0 0.0
  %1947 = vmatprep.subr.mxu0 0.0
  %1948 = vmatpush2.msra.mxu0 0.0
  %1949 = vmatprep.subr.mxu0 0.0
  %1950 = vmatpush2.msra.mxu0 0.0
  %1951 = vmatprep.subr.mxu0 0.0
  %1952 = vmatpush2.msra.mxu0 0.0
  %1953 = vmatprep.subr.mxu0 0.0
  %1954 = vmatpush2.msra.mxu0 0.0
  %1955 = vmatprep.subr.mxu0 0.0
  %1956 = vmatpush2.msra.mxu0 0.0
  %1957 = vmatprep.subr.mxu0 0.0
  %1958 = vmatpush2.msra.mxu0 0.0
  %1959 = vmatprep.subr.mxu0 0.0
  %1960 = vmatpush2.msra.mxu0 0.0
  %1961 = vmatprep.subr.mxu0 0.0
  %1962 = vmatpush2.msra.mxu0 0.0
  %1963 = vmatprep.subr.mxu0 0.0
  %1964 = vmatpush2.msra.mxu0 0.0
  %1965 = vmatprep.subr.mxu0 0.0
  %1966 = vmatpush2.msra.mxu0 0.0
  %1967 = vmatprep.mubr.f32.mxu0 0.0
  %1968 = vmatmul.mubr.f32.gmra.mxu0 %v1901
  %v1969 = vpop.f32.mrf.mxu0
  %v1970 = vadd.f32 0.0, %v1969
  %v1971 = vpop.f32.mrf.mxu0
  %v1972 = vadd.f32 0.0, %v1971
  %1973 = vdwg.mxu0
  %1974 = vmatprep.subr.mxu0 0.0
  %1975 = vmatpush1.msra.mxu0 0.0
  %1976 = vmatprep.subr.mxu0 0.0
  %1977 = vmatpush1.msra.mxu0 0.0
  %1978 = vmatprep.subr.mxu0 0.0
  %1979 = vmatpush1.msra.mxu0 0.0
  %1980 = vmatprep.subr.mxu0 0.0
  %1981 = vmatpush1.msra.mxu0 0.0
  %1982 = vmatprep.subr.mxu0 0.0
  %1983 = vmatpush1.msra.mxu0 0.0
  %1984 = vmatprep.subr.mxu0 0.0
  %1985 = vmatpush1.msra.mxu0 0.0
  %1986 = vmatprep.subr.mxu0 0.0
  %1987 = vmatpush1.msra.mxu0 0.0
  %1988 = vmatprep.subr.mxu0 0.0
  %1989 = vmatpush1.msra.mxu0 0.0
  %1990 = vmatprep.subr.mxu0 0.0
  %1991 = vmatpush1.msra.mxu0 0.0
  %1992 = vmatprep.subr.mxu0 0.0
  %1993 = vmatpush1.msra.mxu0 0.0
  %1994 = vmatprep.subr.mxu0 0.0
  %1995 = vmatpush1.msra.mxu0 0.0
  %1996 = vmatprep.subr.mxu0 0.0
  %1997 = vmatpush1.msra.mxu0 0.0
  %1998 = vmatprep.subr.mxu0 %v1734
  %1999 = vmatpush1.msra.mxu0 %v1733
  %2000 = vmatprep.subr.mxu0 %v1730
  %2001 = vmatpush1.msra.mxu0 %v1729
  %2002 = vmatprep.subr.mxu0 %v1726
  %2003 = vmatpush1.msra.mxu0 %v1725
  %2004 = vmatprep.subr.mxu0 %v1722
  %2005 = vmatpush1.msra.mxu0 %v1721
  %2006 = vmatprep.subr.mxu0 0.0
  %2007 = vmatpush2.msra.mxu0 0.0
  %2008 = vmatprep.subr.mxu0 0.0
  %2009 = vmatpush2.msra.mxu0 0.0
  %2010 = vmatprep.subr.mxu0 0.0
  %2011 = vmatpush2.msra.mxu0 0.0
  %2012 = vmatprep.subr.mxu0 0.0
  %2013 = vmatpush2.msra.mxu0 0.0
  %2014 = vmatprep.subr.mxu0 0.0
  %2015 = vmatpush2.msra.mxu0 0.0
  %2016 = vmatprep.subr.mxu0 0.0
  %2017 = vmatpush2.msra.mxu0 0.0
  %2018 = vmatprep.subr.mxu0 0.0
  %2019 = vmatpush2.msra.mxu0 0.0
  %2020 = vmatprep.subr.mxu0 0.0
  %2021 = vmatpush2.msra.mxu0 0.0
  %2022 = vmatprep.subr.mxu0 0.0
  %2023 = vmatpush2.msra.mxu0 0.0
  %2024 = vmatprep.subr.mxu0 0.0
  %2025 = vmatpush2.msra.mxu0 0.0
  %2026 = vmatprep.subr.mxu0 0.0
  %2027 = vmatpush2.msra.mxu0 0.0
  %2028 = vmatprep.subr.mxu0 0.0
  %2029 = vmatpush2.msra.mxu0 0.0
  %2030 = vmatprep.subr.mxu0 0.0
  %2031 = vmatpush2.msra.mxu0 0.0
  %2032 = vmatprep.subr.mxu0 0.0
  %2033 = vmatpush2.msra.mxu0 0.0
  %2034 = vmatprep.subr.mxu0 0.0
  %2035 = vmatpush2.msra.mxu0 0.0
  %2036 = vmatprep.subr.mxu0 0.0
  %2037 = vmatpush2.msra.mxu0 0.0
  %2038 = vmatprep.mubr.f32.mxu0 0.0
  %2039 = vmatmul.mubr.f32.gmra.mxu0 %v1901
  %v2040 = vpop.f32.mrf.mxu0
  %v2041 = vadd.f32 0.0, %v2040
  %v2042 = vpop.f32.mrf.mxu0
  %v2043 = vadd.f32 0.0, %v2042
  %2044 = vdwg.mxu0
  %v2045 = vmax.f32 %v1970, 1e-30
  %v2046 = vmax.f32 %v1972, 1e-30
  %v2047 = vmax.f32 %v2041, 1e-30
  %v2048 = vmax.f32 %v2043, 1e-30
  %v2049 = vrcp.pop %v2045
  %v2050 = vrcp.pop %v2046
  %v2051 = vrcp.pop %v2047
  %v2052 = vrcp.pop %v2048
  %v2053 = vmul.f32 %v1746, %v2049
  %v2054 = vmul.f32 %v1748, %v2050
  %v2055 = vmul.f32 %v1750, %v2051
  %v2056 = vmul.f32 %v1752, %v2052
  %s2057 = scalar_lea.vmem %s2, 5088
  %v2058 = vld [vmem:[%s2057] sm:$0xff]
  %v2059 = vld [vmem:[%s2057 + $0x8] sm:$0xff]
  %v2060 = vld [vmem:[%s2057 + $0x10] sm:$0xff]
  %v2061 = vld [vmem:[%s2057 + $0x18] sm:$0xff]
  %v2062 = vld [vmem:[%s2057 + $0x20] sm:$0xff]
  %v2063 = vld [vmem:[%s2057 + $0x28] sm:$0xff]
  %v2064 = vld [vmem:[%s2057 + $0x30] sm:$0xff]
  %v2065 = vld [vmem:[%s2057 + $0x38] sm:$0xff]
  %v2066 = vld [vmem:[%s2057 + $0x40] sm:$0xff]
  %v2067 = vld [vmem:[%s2057 + $0x48] sm:$0xff]
  %v2068 = vld [vmem:[%s2057 + $0x50] sm:$0xff]
  %v2069 = vld [vmem:[%s2057 + $0x58] sm:$0xff]
  %v2070 = vld [vmem:[%s2057 + $0x60] sm:$0xff]
  %v2071 = vld [vmem:[%s2057 + $0x68] sm:$0xff]
  %v2072 = vld [vmem:[%s2057 + $0x70] sm:$0xff]
  %v2073 = vld [vmem:[%s2057 + $0x78] sm:$0xff]
  %v2074 = vld [vmem:[%s2057 + $0x80] sm:$0xff]
  %v2075 = vld [vmem:[%s2057 + $0x88] sm:$0xff]
  %v2076 = vld [vmem:[%s2057 + $0x90] sm:$0xff]
  %v2077 = vld [vmem:[%s2057 + $0x98] sm:$0xff]
  %v2078 = vld [vmem:[%s2057 + $0xa0] sm:$0xff]
  %v2079 = vld [vmem:[%s2057 + $0xa8] sm:$0xff]
  %v2080 = vld [vmem:[%s2057 + $0xb0] sm:$0xff]
  %v2081 = vld [vmem:[%s2057 + $0xb8] sm:$0xff]
  %v2082 = vld [vmem:[%s2057 + $0xc0] sm:$0xff]
  %v2083 = vld [vmem:[%s2057 + $0xc8] sm:$0xff]
  %v2084 = vld [vmem:[%s2057 + $0xd0] sm:$0xff]
  %v2085 = vld [vmem:[%s2057 + $0xd8] sm:$0xff]
  %v2086 = vld [vmem:[%s2057 + $0xe0] sm:$0xff]
  %v2087 = vld [vmem:[%s2057 + $0xe8] sm:$0xff]
  %v2088 = vld [vmem:[%s2057 + $0xf0] sm:$0xff]
  %v2089 = vld [vmem:[%s2057 + $0xf8] sm:$0xff]
  %v2090 = vld [vmem:[%s2057 + $0x100] sm:$0xff]
  %v2091 = vld [vmem:[%s2057 + $0x108] sm:$0xff]
  %v2092 = vld [vmem:[%s2057 + $0x110] sm:$0xff]
  %v2093 = vld [vmem:[%s2057 + $0x118] sm:$0xff]
  %v2094 = vld [vmem:[%s2057 + $0x120] sm:$0xff]
  %v2095 = vld [vmem:[%s2057 + $0x128] sm:$0xff]
  %v2096 = vld [vmem:[%s2057 + $0x130] sm:$0xff]
  %v2097 = vld [vmem:[%s2057 + $0x138] sm:$0xff]
  %v2098 = vld [vmem:[%s2057 + $0x140] sm:$0xff]
  %v2099 = vld [vmem:[%s2057 + $0x148] sm:$0xff]
  %v2100 = vld [vmem:[%s2057 + $0x150] sm:$0xff]
  %v2101 = vld [vmem:[%s2057 + $0x158] sm:$0xff]
  %v2102 = vld [vmem:[%s2057 + $0x160] sm:$0xff]
  %v2103 = vld [vmem:[%s2057 + $0x168] sm:$0xff]
  %v2104 = vld [vmem:[%s2057 + $0x170] sm:$0xff]
  %v2105 = vld [vmem:[%s2057 + $0x178] sm:$0xff]
  %v2106 = vld [vmem:[%s2057 + $0x180] sm:$0xff]
  %v2107 = vld [vmem:[%s2057 + $0x188] sm:$0xff]
  %v2108 = vld [vmem:[%s2057 + $0x190] sm:$0xff]
  %v2109 = vld [vmem:[%s2057 + $0x198] sm:$0xff]
  %v2110 = vld [vmem:[%s2057 + $0x1a0] sm:$0xff]
  %v2111 = vld [vmem:[%s2057 + $0x1a8] sm:$0xff]
  %v2112 = vld [vmem:[%s2057 + $0x1b0] sm:$0xff]
  %v2113 = vld [vmem:[%s2057 + $0x1b8] sm:$0xff]
  %v2114 = vld [vmem:[%s2057 + $0x1c0] sm:$0xff]
  %v2115 = vld [vmem:[%s2057 + $0x1c8] sm:$0xff]
  %v2116 = vld [vmem:[%s2057 + $0x1d0] sm:$0xff]
  %v2117 = vld [vmem:[%s2057 + $0x1d8] sm:$0xff]
  %v2118 = vld [vmem:[%s2057 + $0x1e0] sm:$0xff]
  %v2119 = vld [vmem:[%s2057 + $0x1e8] sm:$0xff]
  %v2120 = vld [vmem:[%s2057 + $0x1f0] sm:$0xff]
  %v2121 = vld [vmem:[%s2057 + $0x1f8] sm:$0xff]
  %v2122 = vld [vmem:[%s2057 + $0x200] sm:$0xff]
  %v2123 = vld [vmem:[%s2057 + $0x208] sm:$0xff]
  %v2124 = vld [vmem:[%s2057 + $0x210] sm:$0xff]
  %v2125 = vld [vmem:[%s2057 + $0x218] sm:$0xff]
  %v2126 = vld [vmem:[%s2057 + $0x220] sm:$0xff]
  %v2127 = vld [vmem:[%s2057 + $0x228] sm:$0xff]
  %v2128 = vld [vmem:[%s2057 + $0x230] sm:$0xff]
  %v2129 = vld [vmem:[%s2057 + $0x238] sm:$0xff]
  %v2130 = vld [vmem:[%s2057 + $0x240] sm:$0xff]
  %v2131 = vld [vmem:[%s2057 + $0x248] sm:$0xff]
  %v2132 = vld [vmem:[%s2057 + $0x250] sm:$0xff]
  %v2133 = vld [vmem:[%s2057 + $0x258] sm:$0xff]
  %v2134 = vld [vmem:[%s2057 + $0x260] sm:$0xff]
  %v2135 = vld [vmem:[%s2057 + $0x268] sm:$0xff]
  %v2136 = vld [vmem:[%s2057 + $0x270] sm:$0xff]
  %v2137 = vld [vmem:[%s2057 + $0x278] sm:$0xff]
  %v2138 = vld [vmem:[%s2057 + $0x280] sm:$0xff]
  %v2139 = vld [vmem:[%s2057 + $0x288] sm:$0xff]
  %v2140 = vld [vmem:[%s2057 + $0x290] sm:$0xff]
  %v2141 = vld [vmem:[%s2057 + $0x298] sm:$0xff]
  %v2142 = vld [vmem:[%s2057 + $0x2a0] sm:$0xff]
  %v2143 = vld [vmem:[%s2057 + $0x2a8] sm:$0xff]
  %v2144 = vld [vmem:[%s2057 + $0x2b0] sm:$0xff]
  %v2145 = vld [vmem:[%s2057 + $0x2b8] sm:$0xff]
  %v2146 = vld [vmem:[%s2057 + $0x2c0] sm:$0xff]
  %v2147 = vld [vmem:[%s2057 + $0x2c8] sm:$0xff]
  %v2148 = vld [vmem:[%s2057 + $0x2d0] sm:$0xff]
  %v2149 = vld [vmem:[%s2057 + $0x2d8] sm:$0xff]
  %v2150 = vld [vmem:[%s2057 + $0x2e0] sm:$0xff]
  %v2151 = vld [vmem:[%s2057 + $0x2e8] sm:$0xff]
  %v2152 = vld [vmem:[%s2057 + $0x2f0] sm:$0xff]
  %v2153 = vld [vmem:[%s2057 + $0x2f8] sm:$0xff]
  %v2154 = vld [vmem:[%s2057 + $0x300] sm:$0xff]
  %v2155 = vld [vmem:[%s2057 + $0x308] sm:$0xff]
  %v2156 = vld [vmem:[%s2057 + $0x310] sm:$0xff]
  %v2157 = vld [vmem:[%s2057 + $0x318] sm:$0xff]
  %v2158 = vld [vmem:[%s2057 + $0x320] sm:$0xff]
  %v2159 = vld [vmem:[%s2057 + $0x328] sm:$0xff]
  %v2160 = vld [vmem:[%s2057 + $0x330] sm:$0xff]
  %v2161 = vld [vmem:[%s2057 + $0x338] sm:$0xff]
  %v2162 = vld [vmem:[%s2057 + $0x340] sm:$0xff]
  %v2163 = vld [vmem:[%s2057 + $0x348] sm:$0xff]
  %v2164 = vld [vmem:[%s2057 + $0x350] sm:$0xff]
  %v2165 = vld [vmem:[%s2057 + $0x358] sm:$0xff]
  %v2166 = vld [vmem:[%s2057 + $0x360] sm:$0xff]
  %v2167 = vld [vmem:[%s2057 + $0x368] sm:$0xff]
  %v2168 = vld [vmem:[%s2057 + $0x370] sm:$0xff]
  %v2169 = vld [vmem:[%s2057 + $0x378] sm:$0xff]
  %v2170 = vld [vmem:[%s2057 + $0x380] sm:$0xff]
  %v2171 = vld [vmem:[%s2057 + $0x388] sm:$0xff]
  %v2172 = vld [vmem:[%s2057 + $0x390] sm:$0xff]
  %v2173 = vld [vmem:[%s2057 + $0x398] sm:$0xff]
  %v2174 = vld [vmem:[%s2057 + $0x3a0] sm:$0xff]
  %v2175 = vld [vmem:[%s2057 + $0x3a8] sm:$0xff]
  %v2176 = vld [vmem:[%s2057 + $0x3b0] sm:$0xff]
  %v2177 = vld [vmem:[%s2057 + $0x3b8] sm:$0xff]
  %v2178 = vld [vmem:[%s2057 + $0x3c0] sm:$0xff]
  %v2179 = vld [vmem:[%s2057 + $0x3c8] sm:$0xff]
  %v2180 = vld [vmem:[%s2057 + $0x3d0] sm:$0xff]
  %v2181 = vld [vmem:[%s2057 + $0x3d8] sm:$0xff]
  %v2182 = vld [vmem:[%s2057 + $0x3e0] sm:$0xff]
  %v2183 = vld [vmem:[%s2057 + $0x3e8] sm:$0xff]
  %v2184 = vld [vmem:[%s2057 + $0x3f0] sm:$0xff]
  %v2185 = vld [vmem:[%s2057 + $0x3f8] sm:$0xff]
  %v2186 = vld [vmem:[%s2057 + $0x400] sm:$0xff]
  %v2187 = vld [vmem:[%s2057 + $0x408] sm:$0xff]
  %v2188 = vld [vmem:[%s2057 + $0x410] sm:$0xff]
  %v2189 = vld [vmem:[%s2057 + $0x418] sm:$0xff]
  %v2190 = vld [vmem:[%s2057 + $0x420] sm:$0xff]
  %v2191 = vld [vmem:[%s2057 + $0x428] sm:$0xff]
  %v2192 = vld [vmem:[%s2057 + $0x430] sm:$0xff]
  %v2193 = vld [vmem:[%s2057 + $0x438] sm:$0xff]
  %v2194 = vld [vmem:[%s2057 + $0x440] sm:$0xff]
  %v2195 = vld [vmem:[%s2057 + $0x448] sm:$0xff]
  %v2196 = vld [vmem:[%s2057 + $0x450] sm:$0xff]
  %v2197 = vld [vmem:[%s2057 + $0x458] sm:$0xff]
  %v2198 = vld [vmem:[%s2057 + $0x460] sm:$0xff]
  %v2199 = vld [vmem:[%s2057 + $0x468] sm:$0xff]
  %v2200 = vld [vmem:[%s2057 + $0x470] sm:$0xff]
  %v2201 = vld [vmem:[%s2057 + $0x478] sm:$0xff]
  %v2202 = vld [vmem:[%s2057 + $0x480] sm:$0xff]
  %v2203 = vld [vmem:[%s2057 + $0x488] sm:$0xff]
  %v2204 = vld [vmem:[%s2057 + $0x490] sm:$0xff]
  %v2205 = vld [vmem:[%s2057 + $0x498] sm:$0xff]
  %v2206 = vld [vmem:[%s2057 + $0x4a0] sm:$0xff]
  %v2207 = vld [vmem:[%s2057 + $0x4a8] sm:$0xff]
  %v2208 = vld [vmem:[%s2057 + $0x4b0] sm:$0xff]
  %v2209 = vld [vmem:[%s2057 + $0x4b8] sm:$0xff]
  %v2210 = vld [vmem:[%s2057 + $0x4c0] sm:$0xff]
  %v2211 = vld [vmem:[%s2057 + $0x4c8] sm:$0xff]
  %v2212 = vld [vmem:[%s2057 + $0x4d0] sm:$0xff]
  %v2213 = vld [vmem:[%s2057 + $0x4d8] sm:$0xff]
  %v2214 = vld [vmem:[%s2057 + $0x4e0] sm:$0xff]
  %v2215 = vld [vmem:[%s2057 + $0x4e8] sm:$0xff]
  %v2216 = vld [vmem:[%s2057 + $0x4f0] sm:$0xff]
  %v2217 = vld [vmem:[%s2057 + $0x4f8] sm:$0xff]
  %v2218 = vld [vmem:[%s2057 + $0x500] sm:$0xff]
  %v2219 = vld [vmem:[%s2057 + $0x508] sm:$0xff]
  %v2220 = vld [vmem:[%s2057 + $0x510] sm:$0xff]
  %v2221 = vld [vmem:[%s2057 + $0x518] sm:$0xff]
  %v2222 = vld [vmem:[%s2057 + $0x520] sm:$0xff]
  %v2223 = vld [vmem:[%s2057 + $0x528] sm:$0xff]
  %v2224 = vld [vmem:[%s2057 + $0x530] sm:$0xff]
  %v2225 = vld [vmem:[%s2057 + $0x538] sm:$0xff]
  %v2226 = vld [vmem:[%s2057 + $0x540] sm:$0xff]
  %v2227 = vld [vmem:[%s2057 + $0x548] sm:$0xff]
  %v2228 = vld [vmem:[%s2057 + $0x550] sm:$0xff]
  %v2229 = vld [vmem:[%s2057 + $0x558] sm:$0xff]
  %v2230 = vld [vmem:[%s2057 + $0x560] sm:$0xff]
  %v2231 = vld [vmem:[%s2057 + $0x568] sm:$0xff]
  %v2232 = vld [vmem:[%s2057 + $0x570] sm:$0xff]
  %v2233 = vld [vmem:[%s2057 + $0x578] sm:$0xff]
  %v2234 = vld [vmem:[%s2057 + $0x580] sm:$0xff]
  %v2235 = vld [vmem:[%s2057 + $0x588] sm:$0xff]
  %v2236 = vld [vmem:[%s2057 + $0x590] sm:$0xff]
  %v2237 = vld [vmem:[%s2057 + $0x598] sm:$0xff]
  %v2238 = vld [vmem:[%s2057 + $0x5a0] sm:$0xff]
  %v2239 = vld [vmem:[%s2057 + $0x5a8] sm:$0xff]
  %v2240 = vld [vmem:[%s2057 + $0x5b0] sm:$0xff]
  %v2241 = vld [vmem:[%s2057 + $0x5b8] sm:$0xff]
  %v2242 = vld [vmem:[%s2057 + $0x5c0] sm:$0xff]
  %v2243 = vld [vmem:[%s2057 + $0x5c8] sm:$0xff]
  %v2244 = vld [vmem:[%s2057 + $0x5d0] sm:$0xff]
  %v2245 = vld [vmem:[%s2057 + $0x5d8] sm:$0xff]
  %v2246 = vld [vmem:[%s2057 + $0x5e0] sm:$0xff]
  %v2247 = vld [vmem:[%s2057 + $0x5e8] sm:$0xff]
  %v2248 = vld [vmem:[%s2057 + $0x5f0] sm:$0xff]
  %v2249 = vld [vmem:[%s2057 + $0x5f8] sm:$0xff]
  %v2250 = vld [vmem:[%s2057 + $0x600] sm:$0xff]
  %v2251 = vld [vmem:[%s2057 + $0x608] sm:$0xff]
  %v2252 = vld [vmem:[%s2057 + $0x610] sm:$0xff]
  %v2253 = vld [vmem:[%s2057 + $0x618] sm:$0xff]
  %v2254 = vld [vmem:[%s2057 + $0x620] sm:$0xff]
  %v2255 = vld [vmem:[%s2057 + $0x628] sm:$0xff]
  %v2256 = vld [vmem:[%s2057 + $0x630] sm:$0xff]
  %v2257 = vld [vmem:[%s2057 + $0x638] sm:$0xff]
  %v2258 = vld [vmem:[%s2057 + $0x640] sm:$0xff]
  %v2259 = vld [vmem:[%s2057 + $0x648] sm:$0xff]
  %v2260 = vld [vmem:[%s2057 + $0x650] sm:$0xff]
  %v2261 = vld [vmem:[%s2057 + $0x658] sm:$0xff]
  %v2262 = vld [vmem:[%s2057 + $0x660] sm:$0xff]
  %v2263 = vld [vmem:[%s2057 + $0x668] sm:$0xff]
  %v2264 = vld [vmem:[%s2057 + $0x670] sm:$0xff]
  %v2265 = vld [vmem:[%s2057 + $0x678] sm:$0xff]
  %v2266 = vld [vmem:[%s2057 + $0x680] sm:$0xf]
  %v2267 = vld [vmem:[%s2057 + $0x688] sm:$0xf]
  %v2268 = vld [vmem:[%s2057 + $0x690] sm:$0xf]
  %v2269 = vld [vmem:[%s2057 + $0x698] sm:$0xf]
  %s2270 = scalar_lea.vmem %s3, 12
  %v2271 = vld [vmem:[%s2270] sm:$0xf]
  %v2273 = vlaneseq
  %v2274 = vshrl.u32 %v2273, 7
  %v2275 = vsub.s32 0, %v2274
  %v2276 = vrot.slane %v2271, %v2275
  %v2277 = vlaneseq
  %v2278 = vshrl.u32 %v2277, 7
  %v2279 = vsub.s32 1, %v2278
  %v2280 = vrot.slane %v2271, %v2279
  %v2281 = vlaneseq
  %v2282 = vshrl.u32 %v2281, 7
  %v2283 = vsub.s32 2, %v2282
  %v2284 = vrot.slane %v2271, %v2283
  %v2285 = vlaneseq
  %v2286 = vshrl.u32 %v2285, 7
  %v2287 = vsub.s32 3, %v2286
  %v2288 = vrot.slane %v2271, %v2287
  %v2294 = vsel %vm271, %v36, 0
  %v2297 = vsel %vm275, %v2266, 0
  %v2300 = vsel %vm275, %v2267, 0
  %v2303 = vsel %vm275, %v2268, 0
  %v2306 = vsel %vm275, %v2269, 0
  %2308 = vmatprep.subr.mxu0 %v2119
  %2309 = vmatpush1.msra.mxu0 %v2118
  %2310 = vmatprep.subr.mxu0 %v2115
  %2311 = vmatpush1.msra.mxu0 %v2114
  %2312 = vmatprep.subr.mxu0 %v2111
  %2313 = vmatpush1.msra.mxu0 %v2110
  %2314 = vmatprep.subr.mxu0 %v2107
  %2315 = vmatpush1.msra.mxu0 %v2106
  %2316 = vmatprep.subr.mxu0 %v2103
  %2317 = vmatpush1.msra.mxu0 %v2102
  %2318 = vmatprep.subr.mxu0 %v2099
  %2319 = vmatpush1.msra.mxu0 %v2098
  %2320 = vmatprep.subr.mxu0 %v2095
  %2321 = vmatpush1.msra.mxu0 %v2094
  %2322 = vmatprep.subr.mxu0 %v2091
  %2323 = vmatpush1.msra.mxu0 %v2090
  %2324 = vmatprep.subr.mxu0 %v2087
  %2325 = vmatpush1.msra.mxu0 %v2086
  %2326 = vmatprep.subr.mxu0 %v2083
  %2327 = vmatpush1.msra.mxu0 %v2082
  %2328 = vmatprep.subr.mxu0 %v2079
  %2329 = vmatpush1.msra.mxu0 %v2078
  %2330 = vmatprep.subr.mxu0 %v2075
  %2331 = vmatpush1.msra.mxu0 %v2074
  %2332 = vmatprep.subr.mxu0 %v2071
  %2333 = vmatpush1.msra.mxu0 %v2070
  %2334 = vmatprep.subr.mxu0 %v2067
  %2335 = vmatpush1.msra.mxu0 %v2066
  %2336 = vmatprep.subr.mxu0 %v2063
  %2337 = vmatpush1.msra.mxu0 %v2062
  %2338 = vmatprep.subr.mxu0 %v2059
  %2339 = vmatpush1.msra.mxu0 %v2058
  %2340 = vmatprep.subr.mxu0 %v2183
  %2341 = vmatpush2.msra.mxu0 %v2182
  %2342 = vmatprep.subr.mxu0 %v2179
  %2343 = vmatpush2.msra.mxu0 %v2178
  %2344 = vmatprep.subr.mxu0 %v2175
  %2345 = vmatpush2.msra.mxu0 %v2174
  %2346 = vmatprep.subr.mxu0 %v2171
  %2347 = vmatpush2.msra.mxu0 %v2170
  %2348 = vmatprep.subr.mxu0 %v2167
  %2349 = vmatpush2.msra.mxu0 %v2166
  %2350 = vmatprep.subr.mxu0 %v2163
  %2351 = vmatpush2.msra.mxu0 %v2162
  %2352 = vmatprep.subr.mxu0 %v2159
  %2353 = vmatpush2.msra.mxu0 %v2158
  %2354 = vmatprep.subr.mxu0 %v2155
  %2355 = vmatpush2.msra.mxu0 %v2154
  %2356 = vmatprep.subr.mxu0 %v2151
  %2357 = vmatpush2.msra.mxu0 %v2150
  %2358 = vmatprep.subr.mxu0 %v2147
  %2359 = vmatpush2.msra.mxu0 %v2146
  %2360 = vmatprep.subr.mxu0 %v2143
  %2361 = vmatpush2.msra.mxu0 %v2142
  %2362 = vmatprep.subr.mxu0 %v2139
  %2363 = vmatpush2.msra.mxu0 %v2138
  %2364 = vmatprep.subr.mxu0 %v2135
  %2365 = vmatpush2.msra.mxu0 %v2134
  %2366 = vmatprep.subr.mxu0 %v2131
  %2367 = vmatpush2.msra.mxu0 %v2130
  %2368 = vmatprep.subr.mxu0 %v2127
  %2369 = vmatpush2.msra.mxu0 %v2126
  %2370 = vmatprep.subr.mxu0 %v2123
  %2371 = vmatpush2.msra.mxu0 %v2122
  %2372 = vmatprep.mubr.f32.mxu0 %v34
  %2373 = vmatmul.mubr.f32.gmra.mxu0 %v33
  %v2374 = vpop.f32.mrf.mxu0
  %v2375 = vadd.f32 %v2276, %v2374
  %v2376 = vpop.f32.mrf.mxu0
  %v2377 = vadd.f32 %v2280, %v2376
  %2378 = vdwg.mxu0
  %2379 = vmatprep.subr.mxu0 %v2247
  %2380 = vmatpush1.msra.mxu0 %v2246
  %2381 = vmatprep.subr.mxu0 %v2243
  %2382 = vmatpush1.msra.mxu0 %v2242
  %2383 = vmatprep.subr.mxu0 %v2239
  %2384 = vmatpush1.msra.mxu0 %v2238
  %2385 = vmatprep.subr.mxu0 %v2235
  %2386 = vmatpush1.msra.mxu0 %v2234
  %2387 = vmatprep.subr.mxu0 %v2231
  %2388 = vmatpush1.msra.mxu0 %v2230
  %2389 = vmatprep.subr.mxu0 %v2227
  %2390 = vmatpush1.msra.mxu0 %v2226
  %2391 = vmatprep.subr.mxu0 %v2223
  %2392 = vmatpush1.msra.mxu0 %v2222
  %2393 = vmatprep.subr.mxu0 %v2219
  %2394 = vmatpush1.msra.mxu0 %v2218
  %2395 = vmatprep.subr.mxu0 %v2215
  %2396 = vmatpush1.msra.mxu0 %v2214
  %2397 = vmatprep.subr.mxu0 %v2211
  %2398 = vmatpush1.msra.mxu0 %v2210
  %2399 = vmatprep.subr.mxu0 %v2207
  %2400 = vmatpush1.msra.mxu0 %v2206
  %2401 = vmatprep.subr.mxu0 %v2203
  %2402 = vmatpush1.msra.mxu0 %v2202
  %2403 = vmatprep.subr.mxu0 %v2199
  %2404 = vmatpush1.msra.mxu0 %v2198
  %2405 = vmatprep.subr.mxu0 %v2195
  %2406 = vmatpush1.msra.mxu0 %v2194
  %2407 = vmatprep.subr.mxu0 %v2191
  %2408 = vmatpush1.msra.mxu0 %v2190
  %2409 = vmatprep.subr.mxu0 %v2187
  %2410 = vmatpush1.msra.mxu0 %v2186
  %2411 = vmatprep.subr.mxu0 0.0
  %2412 = vmatpush2.msra.mxu0 0.0
  %2413 = vmatprep.subr.mxu0 0.0
  %2414 = vmatpush2.msra.mxu0 0.0
  %2415 = vmatprep.subr.mxu0 0.0
  %2416 = vmatpush2.msra.mxu0 0.0
  %2417 = vmatprep.subr.mxu0 0.0
  %2418 = vmatpush2.msra.mxu0 0.0
  %2419 = vmatprep.subr.mxu0 0.0
  %2420 = vmatpush2.msra.mxu0 0.0
  %2421 = vmatprep.subr.mxu0 0.0
  %2422 = vmatpush2.msra.mxu0 0.0
  %2423 = vmatprep.subr.mxu0 0.0
  %2424 = vmatpush2.msra.mxu0 0.0
  %2425 = vmatprep.subr.mxu0 0.0
  %2426 = vmatpush2.msra.mxu0 0.0
  %2427 = vmatprep.subr.mxu0 0.0
  %2428 = vmatpush2.msra.mxu0 0.0
  %2429 = vmatprep.subr.mxu0 0.0
  %2430 = vmatpush2.msra.mxu0 0.0
  %2431 = vmatprep.subr.mxu0 0.0
  %2432 = vmatpush2.msra.mxu0 0.0
  %2433 = vmatprep.subr.mxu0 %v2300
  %2434 = vmatpush2.msra.mxu0 %v2297
  %2435 = vmatprep.subr.mxu0 %v2263
  %2436 = vmatpush2.msra.mxu0 %v2262
  %2437 = vmatprep.subr.mxu0 %v2259
  %2438 = vmatpush2.msra.mxu0 %v2258
  %2439 = vmatprep.subr.mxu0 %v2255
  %2440 = vmatpush2.msra.mxu0 %v2254
  %2441 = vmatprep.subr.mxu0 %v2251
  %2442 = vmatpush2.msra.mxu0 %v2250
  %2443 = vmatprep.mubr.f32.mxu0 %v2294
  %2444 = vmatmul.mubr.f32.gmra.mxu0 %v35
  %v2445 = vpop.f32.mrf.mxu0
  %v2446 = vadd.f32 %v2375, %v2445
  %v2447 = vpop.f32.mrf.mxu0
  %v2448 = vadd.f32 %v2377, %v2447
  %2449 = vdwg.mxu0
  %2450 = vmatprep.subr.mxu0 %v2121
  %2451 = vmatpush1.msra.mxu0 %v2120
  %2452 = vmatprep.subr.mxu0 %v2117
  %2453 = vmatpush1.msra.mxu0 %v2116
  %2454 = vmatprep.subr.mxu0 %v2113
  %2455 = vmatpush1.msra.mxu0 %v2112
  %2456 = vmatprep.subr.mxu0 %v2109
  %2457 = vmatpush1.msra.mxu0 %v2108
  %2458 = vmatprep.subr.mxu0 %v2105
  %2459 = vmatpush1.msra.mxu0 %v2104
  %2460 = vmatprep.subr.mxu0 %v2101
  %2461 = vmatpush1.msra.mxu0 %v2100
  %2462 = vmatprep.subr.mxu0 %v2097
  %2463 = vmatpush1.msra.mxu0 %v2096
  %2464 = vmatprep.subr.mxu0 %v2093
  %2465 = vmatpush1.msra.mxu0 %v2092
  %2466 = vmatprep.subr.mxu0 %v2089
  %2467 = vmatpush1.msra.mxu0 %v2088
  %2468 = vmatprep.subr.mxu0 %v2085
  %2469 = vmatpush1.msra.mxu0 %v2084
  %2470 = vmatprep.subr.mxu0 %v2081
  %2471 = vmatpush1.msra.mxu0 %v2080
  %2472 = vmatprep.subr.mxu0 %v2077
  %2473 = vmatpush1.msra.mxu0 %v2076
  %2474 = vmatprep.subr.mxu0 %v2073
  %2475 = vmatpush1.msra.mxu0 %v2072
  %2476 = vmatprep.subr.mxu0 %v2069
  %2477 = vmatpush1.msra.mxu0 %v2068
  %2478 = vmatprep.subr.mxu0 %v2065
  %2479 = vmatpush1.msra.mxu0 %v2064
  %2480 = vmatprep.subr.mxu0 %v2061
  %2481 = vmatpush1.msra.mxu0 %v2060
  %2482 = vmatprep.subr.mxu0 %v2185
  %2483 = vmatpush2.msra.mxu0 %v2184
  %2484 = vmatprep.subr.mxu0 %v2181
  %2485 = vmatpush2.msra.mxu0 %v2180
  %2486 = vmatprep.subr.mxu0 %v2177
  %2487 = vmatpush2.msra.mxu0 %v2176
  %2488 = vmatprep.subr.mxu0 %v2173
  %2489 = vmatpush2.msra.mxu0 %v2172
  %2490 = vmatprep.subr.mxu0 %v2169
  %2491 = vmatpush2.msra.mxu0 %v2168
  %2492 = vmatprep.subr.mxu0 %v2165
  %2493 = vmatpush2.msra.mxu0 %v2164
  %2494 = vmatprep.subr.mxu0 %v2161
  %2495 = vmatpush2.msra.mxu0 %v2160
  %2496 = vmatprep.subr.mxu0 %v2157
  %2497 = vmatpush2.msra.mxu0 %v2156
  %2498 = vmatprep.subr.mxu0 %v2153
  %2499 = vmatpush2.msra.mxu0 %v2152
  %2500 = vmatprep.subr.mxu0 %v2149
  %2501 = vmatpush2.msra.mxu0 %v2148
  %2502 = vmatprep.subr.mxu0 %v2145
  %2503 = vmatpush2.msra.mxu0 %v2144
  %2504 = vmatprep.subr.mxu0 %v2141
  %2505 = vmatpush2.msra.mxu0 %v2140
  %2506 = vmatprep.subr.mxu0 %v2137
  %2507 = vmatpush2.msra.mxu0 %v2136
  %2508 = vmatprep.subr.mxu0 %v2133
  %2509 = vmatpush2.msra.mxu0 %v2132
  %2510 = vmatprep.subr.mxu0 %v2129
  %2511 = vmatpush2.msra.mxu0 %v2128
  %2512 = vmatprep.subr.mxu0 %v2125
  %2513 = vmatpush2.msra.mxu0 %v2124
  %2514 = vmatprep.mubr.f32.mxu0 %v34
  %2515 = vmatmul.mubr.f32.gmra.mxu0 %v33
  %v2516 = vpop.f32.mrf.mxu0
  %v2517 = vadd.f32 %v2284, %v2516
  %v2518 = vpop.f32.mrf.mxu0
  %v2519 = vadd.f32 %v2288, %v2518
  %2520 = vdwg.mxu0
  %2521 = vmatprep.subr.mxu0 %v2249
  %2522 = vmatpush1.msra.mxu0 %v2248
  %2523 = vmatprep.subr.mxu0 %v2245
  %2524 = vmatpush1.msra.mxu0 %v2244
  %2525 = vmatprep.subr.mxu0 %v2241
  %2526 = vmatpush1.msra.mxu0 %v2240
  %2527 = vmatprep.subr.mxu0 %v2237
  %2528 = vmatpush1.msra.mxu0 %v2236
  %2529 = vmatprep.subr.mxu0 %v2233
  %2530 = vmatpush1.msra.mxu0 %v2232
  %2531 = vmatprep.subr.mxu0 %v2229
  %2532 = vmatpush1.msra.mxu0 %v2228
  %2533 = vmatprep.subr.mxu0 %v2225
  %2534 = vmatpush1.msra.mxu0 %v2224
  %2535 = vmatprep.subr.mxu0 %v2221
  %2536 = vmatpush1.msra.mxu0 %v2220
  %2537 = vmatprep.subr.mxu0 %v2217
  %2538 = vmatpush1.msra.mxu0 %v2216
  %2539 = vmatprep.subr.mxu0 %v2213
  %2540 = vmatpush1.msra.mxu0 %v2212
  %2541 = vmatprep.subr.mxu0 %v2209
  %2542 = vmatpush1.msra.mxu0 %v2208
  %2543 = vmatprep.subr.mxu0 %v2205
  %2544 = vmatpush1.msra.mxu0 %v2204
  %2545 = vmatprep.subr.mxu0 %v2201
  %2546 = vmatpush1.msra.mxu0 %v2200
  %2547 = vmatprep.subr.mxu0 %v2197
  %2548 = vmatpush1.msra.mxu0 %v2196
  %2549 = vmatprep.subr.mxu0 %v2193
  %2550 = vmatpush1.msra.mxu0 %v2192
  %2551 = vmatprep.subr.mxu0 %v2189
  %2552 = vmatpush1.msra.mxu0 %v2188
  %2553 = vmatprep.subr.mxu0 0.0
  %2554 = vmatpush2.msra.mxu0 0.0
  %2555 = vmatprep.subr.mxu0 0.0
  %2556 = vmatpush2.msra.mxu0 0.0
  %2557 = vmatprep.subr.mxu0 0.0
  %2558 = vmatpush2.msra.mxu0 0.0
  %2559 = vmatprep.subr.mxu0 0.0
  %2560 = vmatpush2.msra.mxu0 0.0
  %2561 = vmatprep.subr.mxu0 0.0
  %2562 = vmatpush2.msra.mxu0 0.0
  %2563 = vmatprep.subr.mxu0 0.0
  %2564 = vmatpush2.msra.mxu0 0.0
  %2565 = vmatprep.subr.mxu0 0.0
  %2566 = vmatpush2.msra.mxu0 0.0
  %2567 = vmatprep.subr.mxu0 0.0
  %2568 = vmatpush2.msra.mxu0 0.0
  %2569 = vmatprep.subr.mxu0 0.0
  %2570 = vmatpush2.msra.mxu0 0.0
  %2571 = vmatprep.subr.mxu0 0.0
  %2572 = vmatpush2.msra.mxu0 0.0
  %2573 = vmatprep.subr.mxu0 0.0
  %2574 = vmatpush2.msra.mxu0 0.0
  %2575 = vmatprep.subr.mxu0 %v2306
  %2576 = vmatpush2.msra.mxu0 %v2303
  %2577 = vmatprep.subr.mxu0 %v2265
  %2578 = vmatpush2.msra.mxu0 %v2264
  %2579 = vmatprep.subr.mxu0 %v2261
  %2580 = vmatpush2.msra.mxu0 %v2260
  %2581 = vmatprep.subr.mxu0 %v2257
  %2582 = vmatpush2.msra.mxu0 %v2256
  %2583 = vmatprep.subr.mxu0 %v2253
  %2584 = vmatpush2.msra.mxu0 %v2252
  %2585 = vmatprep.mubr.f32.mxu0 %v2294
  %2586 = vmatmul.mubr.f32.gmra.mxu0 %v35
  %v2587 = vpop.f32.mrf.mxu0
  %v2588 = vadd.f32 %v2517, %v2587
  %v2589 = vpop.f32.mrf.mxu0
  %v2590 = vadd.f32 %v2519, %v2589
  %2591 = vdwg.mxu0
  %s2592 = scalar_lea.vmem %s5, 424
  %v2593 = vld [vmem:[%s2592] sm:$0xff]
  %v2594 = vld [vmem:[%s2592 + $0x8] sm:$0xff]
  %v2595 = vld [vmem:[%s2592 + $0x10] sm:$0xff]
  %v2596 = vld [vmem:[%s2592 + $0x18] sm:$0xff]
  %v2597 = vld [vmem:[%s2592 + $0x20] sm:$0xff]
  %v2598 = vld [vmem:[%s2592 + $0x28] sm:$0xff]
  %v2599 = vld [vmem:[%s2592 + $0x30] sm:$0xff]
  %v2600 = vld [vmem:[%s2592 + $0x38] sm:$0xff]
  %v2601 = vld [vmem:[%s2592 + $0x40] sm:$0xff]
  %v2602 = vld [vmem:[%s2592 + $0x48] sm:$0xff]
  %v2603 = vld [vmem:[%s2592 + $0x50] sm:$0xff]
  %v2604 = vld [vmem:[%s2592 + $0x58] sm:$0xff]
  %v2605 = vld [vmem:[%s2592 + $0x60] sm:$0xff]
  %v2606 = vld [vmem:[%s2592 + $0x68] sm:$0xff]
  %v2607 = vld [vmem:[%s2592 + $0x70] sm:$0xff]
  %v2608 = vld [vmem:[%s2592 + $0x78] sm:$0xff]
  %v2609 = vld [vmem:[%s2592 + $0x80] sm:$0xff]
  %v2610 = vld [vmem:[%s2592 + $0x88] sm:$0xff]
  %v2611 = vld [vmem:[%s2592 + $0x90] sm:$0xff]
  %v2612 = vld [vmem:[%s2592 + $0x98] sm:$0xff]
  %v2613 = vld [vmem:[%s2592 + $0xa0] sm:$0xff]
  %v2614 = vld [vmem:[%s2592 + $0xa8] sm:$0xff]
  %v2615 = vld [vmem:[%s2592 + $0xb0] sm:$0xff]
  %v2616 = vld [vmem:[%s2592 + $0xb8] sm:$0xff]
  %v2617 = vld [vmem:[%s2592 + $0xc0] sm:$0xff]
  %v2618 = vld [vmem:[%s2592 + $0xc8] sm:$0xff]
  %v2619 = vld [vmem:[%s2592 + $0xd0] sm:$0xff]
  %v2620 = vld [vmem:[%s2592 + $0xd8] sm:$0xff]
  %v2621 = vld [vmem:[%s2592 + $0xe0] sm:$0xff]
  %v2622 = vld [vmem:[%s2592 + $0xe8] sm:$0xff]
  %v2623 = vld [vmem:[%s2592 + $0xf0] sm:$0xff]
  %v2624 = vld [vmem:[%s2592 + $0xf8] sm:$0xff]
  %v2625 = vld [vmem:[%s2592 + $0x100] sm:$0xff]
  %v2626 = vld [vmem:[%s2592 + $0x108] sm:$0xff]
  %v2627 = vld [vmem:[%s2592 + $0x110] sm:$0xff]
  %v2628 = vld [vmem:[%s2592 + $0x118] sm:$0xff]
  %v2629 = vld [vmem:[%s2592 + $0x120] sm:$0xff]
  %v2630 = vld [vmem:[%s2592 + $0x128] sm:$0xff]
  %v2631 = vld [vmem:[%s2592 + $0x130] sm:$0xff]
  %v2632 = vld [vmem:[%s2592 + $0x138] sm:$0xff]
  %v2633 = vld [vmem:[%s2592 + $0x140] sm:$0xff]
  %v2634 = vld [vmem:[%s2592 + $0x148] sm:$0xff]
  %v2635 = vld [vmem:[%s2592 + $0x150] sm:$0xff]
  %v2636 = vld [vmem:[%s2592 + $0x158] sm:$0xff]
  %v2637 = vld [vmem:[%s2592 + $0x160] sm:$0xff]
  %v2638 = vld [vmem:[%s2592 + $0x168] sm:$0xff]
  %v2639 = vld [vmem:[%s2592 + $0x170] sm:$0xff]
  %v2640 = vld [vmem:[%s2592 + $0x178] sm:$0xff]
  %v2641 = vld [vmem:[%s2592 + $0x180] sm:$0xff]
  %v2642 = vld [vmem:[%s2592 + $0x188] sm:$0xff]
  %v2643 = vld [vmem:[%s2592 + $0x190] sm:$0xff]
  %v2644 = vld [vmem:[%s2592 + $0x198] sm:$0xff]
  %v2645 = vld [vmem:[%s2592 + $0x1a0] sm:$0xf]
  %s2646 = scalar_lea.vmem %s6, 128
  %v2647 = vld [vmem:[%s2646] sm:$0xff]
  %v2648 = vld [vmem:[%s2646 + $0x8] sm:$0xff]
  %v2649 = vld [vmem:[%s2646 + $0x10] sm:$0xff]
  %v2650 = vld [vmem:[%s2646 + $0x18] sm:$0xff]
  %v2651 = vld [vmem:[%s2646 + $0x20] sm:$0xff]
  %v2652 = vld [vmem:[%s2646 + $0x28] sm:$0xff]
  %v2653 = vld [vmem:[%s2646 + $0x30] sm:$0xff]
  %v2654 = vld [vmem:[%s2646 + $0x38] sm:$0xff]
  %v2655 = vld [vmem:[%s2646 + $0x40] sm:$0xff]
  %v2656 = vld [vmem:[%s2646 + $0x48] sm:$0xff]
  %v2657 = vld [vmem:[%s2646 + $0x50] sm:$0xff]
  %v2658 = vld [vmem:[%s2646 + $0x58] sm:$0xff]
  %v2659 = vld [vmem:[%s2646 + $0x60] sm:$0xff]
  %v2660 = vld [vmem:[%s2646 + $0x68] sm:$0xff]
  %v2661 = vld [vmem:[%s2646 + $0x70] sm:$0xff]
  %v2662 = vld [vmem:[%s2646 + $0x78] sm:$0xff]
  %v2663 = vsel %vm271, %v2590, -inf
  %v2664 = vmax.f32 %v2446, %v2448
  %v2665 = vmax.f32 %v2588, %v2663
  %v2666 = vmax.f32 %v2664, %v2665
  %2667 = vmax.xlane.f32.xlu0 %v2666
  %v2668 = vpop.xlane.xlu0 %2667
  %v2669 = vsub.f32 %v2446, %v2668
  %v2670 = vsub.f32 %v2448, %v2668
  %v2671 = vsub.f32 %v2588, %v2668
  %v2672 = vsub.f32 %v2590, %v2668
  %v2673 = vmul.f32 %v2669, 1.442695
  %v2674 = vpow.pop %v2673
  %v2675 = vmul.f32 %v2670, 1.442695
  %v2676 = vpow.pop %v2675
  %v2677 = vmul.f32 %v2671, 1.442695
  %v2678 = vpow.pop %v2677
  %v2679 = vmul.f32 %v2672, 1.442695
  %v2680 = vpow.pop %v2679
  %v2682 = vsel %vm271, %v2680, 0
  %v2685 = vsel %vm275, %v2645, 0
  %2687 = vmatprep.subr.mxu0 0.0
  %2688 = vmatpush1.msra.mxu0 %v2608
  %2689 = vmatprep.subr.mxu0 0.0
  %2690 = vmatpush1.msra.mxu0 %v2607
  %2691 = vmatprep.subr.mxu0 0.0
  %2692 = vmatpush1.msra.mxu0 %v2606
  %2693 = vmatprep.subr.mxu0 0.0
  %2694 = vmatpush1.msra.mxu0 %v2605
  %2695 = vmatprep.subr.mxu0 0.0
  %2696 = vmatpush1.msra.mxu0 %v2604
  %2697 = vmatprep.subr.mxu0 0.0
  %2698 = vmatpush1.msra.mxu0 %v2603
  %2699 = vmatprep.subr.mxu0 0.0
  %2700 = vmatpush1.msra.mxu0 %v2602
  %2701 = vmatprep.subr.mxu0 0.0
  %2702 = vmatpush1.msra.mxu0 %v2601
  %2703 = vmatprep.subr.mxu0 0.0
  %2704 = vmatpush1.msra.mxu0 %v2600
  %2705 = vmatprep.subr.mxu0 0.0
  %2706 = vmatpush1.msra.mxu0 %v2599
  %2707 = vmatprep.subr.mxu0 0.0
  %2708 = vmatpush1.msra.mxu0 %v2598
  %2709 = vmatprep.subr.mxu0 0.0
  %2710 = vmatpush1.msra.mxu0 %v2597
  %2711 = vmatprep.subr.mxu0 0.0
  %2712 = vmatpush1.msra.mxu0 %v2596
  %2713 = vmatprep.subr.mxu0 0.0
  %2714 = vmatpush1.msra.mxu0 %v2595
  %2715 = vmatprep.subr.mxu0 0.0
  %2716 = vmatpush1.msra.mxu0 %v2594
  %2717 = vmatprep.subr.mxu0 0.0
  %2718 = vmatpush1.msra.mxu0 %v2593
  %2719 = vmatprep.subr.mxu0 0.0
  %2720 = vmatpush2.msra.mxu0 %v2624
  %2721 = vmatprep.subr.mxu0 0.0
  %2722 = vmatpush2.msra.mxu0 %v2623
  %2723 = vmatprep.subr.mxu0 0.0
  %2724 = vmatpush2.msra.mxu0 %v2622
  %2725 = vmatprep.subr.mxu0 0.0
  %2726 = vmatpush2.msra.mxu0 %v2621
  %2727 = vmatprep.subr.mxu0 0.0
  %2728 = vmatpush2.msra.mxu0 %v2620
  %2729 = vmatprep.subr.mxu0 0.0
  %2730 = vmatpush2.msra.mxu0 %v2619
  %2731 = vmatprep.subr.mxu0 0.0
  %2732 = vmatpush2.msra.mxu0 %v2618
  %2733 = vmatprep.subr.mxu0 0.0
  %2734 = vmatpush2.msra.mxu0 %v2617
  %2735 = vmatprep.subr.mxu0 0.0
  %2736 = vmatpush2.msra.mxu0 %v2616
  %2737 = vmatprep.subr.mxu0 0.0
  %2738 = vmatpush2.msra.mxu0 %v2615
  %2739 = vmatprep.subr.mxu0 0.0
  %2740 = vmatpush2.msra.mxu0 %v2614
  %2741 = vmatprep.subr.mxu0 0.0
  %2742 = vmatpush2.msra.mxu0 %v2613
  %2743 = vmatprep.subr.mxu0 0.0
  %2744 = vmatpush2.msra.mxu0 %v2612
  %2745 = vmatprep.subr.mxu0 0.0
  %2746 = vmatpush2.msra.mxu0 %v2611
  %2747 = vmatprep.subr.mxu0 0.0
  %2748 = vmatpush2.msra.mxu0 %v2610
  %2749 = vmatprep.subr.mxu0 0.0
  %2750 = vmatpush2.msra.mxu0 %v2609
  %2751 = vmatprep.mubr.f32.mxu0 %v2676
  %2752 = vmatmul.mubr.f32.gmra.mxu0 %v2674
  %v2753 = vpop.f32.mrf.mxu0
  %v2754 = vadd.f32 0.0, %v2753
  %v2755 = vpop.f32.mrf.mxu0
  %2756 = vdwg.mxu0
  %2757 = vmatprep.subr.mxu0 0.0
  %2758 = vmatpush1.msra.mxu0 %v2640
  %2759 = vmatprep.subr.mxu0 0.0
  %2760 = vmatpush1.msra.mxu0 %v2639
  %2761 = vmatprep.subr.mxu0 0.0
  %2762 = vmatpush1.msra.mxu0 %v2638
  %2763 = vmatprep.subr.mxu0 0.0
  %2764 = vmatpush1.msra.mxu0 %v2637
  %2765 = vmatprep.subr.mxu0 0.0
  %2766 = vmatpush1.msra.mxu0 %v2636
  %2767 = vmatprep.subr.mxu0 0.0
  %2768 = vmatpush1.msra.mxu0 %v2635
  %2769 = vmatprep.subr.mxu0 0.0
  %2770 = vmatpush1.msra.mxu0 %v2634
  %2771 = vmatprep.subr.mxu0 0.0
  %2772 = vmatpush1.msra.mxu0 %v2633
  %2773 = vmatprep.subr.mxu0 0.0
  %2774 = vmatpush1.msra.mxu0 %v2632
  %2775 = vmatprep.subr.mxu0 0.0
  %2776 = vmatpush1.msra.mxu0 %v2631
  %2777 = vmatprep.subr.mxu0 0.0
  %2778 = vmatpush1.msra.mxu0 %v2630
  %2779 = vmatprep.subr.mxu0 0.0
  %2780 = vmatpush1.msra.mxu0 %v2629
  %2781 = vmatprep.subr.mxu0 0.0
  %2782 = vmatpush1.msra.mxu0 %v2628
  %2783 = vmatprep.subr.mxu0 0.0
  %2784 = vmatpush1.msra.mxu0 %v2627
  %2785 = vmatprep.subr.mxu0 0.0
  %2786 = vmatpush1.msra.mxu0 %v2626
  %2787 = vmatprep.subr.mxu0 0.0
  %2788 = vmatpush1.msra.mxu0 %v2625
  %2789 = vmatprep.subr.mxu0 0.0
  %2790 = vmatpush2.msra.mxu0 0.0
  %2791 = vmatprep.subr.mxu0 0.0
  %2792 = vmatpush2.msra.mxu0 0.0
  %2793 = vmatprep.subr.mxu0 0.0
  %2794 = vmatpush2.msra.mxu0 0.0
  %2795 = vmatprep.subr.mxu0 0.0
  %2796 = vmatpush2.msra.mxu0 0.0
  %2797 = vmatprep.subr.mxu0 0.0
  %2798 = vmatpush2.msra.mxu0 0.0
  %2799 = vmatprep.subr.mxu0 0.0
  %2800 = vmatpush2.msra.mxu0 0.0
  %2801 = vmatprep.subr.mxu0 0.0
  %2802 = vmatpush2.msra.mxu0 0.0
  %2803 = vmatprep.subr.mxu0 0.0
  %2804 = vmatpush2.msra.mxu0 0.0
  %2805 = vmatprep.subr.mxu0 0.0
  %2806 = vmatpush2.msra.mxu0 0.0
  %2807 = vmatprep.subr.mxu0 0.0
  %2808 = vmatpush2.msra.mxu0 0.0
  %2809 = vmatprep.subr.mxu0 0.0
  %2810 = vmatpush2.msra.mxu0 0.0
  %2811 = vmatprep.subr.mxu0 0.0
  %2812 = vmatpush2.msra.mxu0 %v2685
  %2813 = vmatprep.subr.mxu0 0.0
  %2814 = vmatpush2.msra.mxu0 %v2644
  %2815 = vmatprep.subr.mxu0 0.0
  %2816 = vmatpush2.msra.mxu0 %v2643
  %2817 = vmatprep.subr.mxu0 0.0
  %2818 = vmatpush2.msra.mxu0 %v2642
  %2819 = vmatprep.subr.mxu0 0.0
  %2820 = vmatpush2.msra.mxu0 %v2641
  %2821 = vmatprep.mubr.f32.mxu0 %v2682
  %2822 = vmatmul.mubr.f32.gmra.mxu0 %v2678
  %v2823 = vpop.f32.mrf.mxu0
  %v2824 = vadd.f32 %v2754, %v2823
  %v2825 = vpop.f32.mrf.mxu0
  %2826 = vdwg.mxu0
  %v2828 = vsel %vm1899, %v2824, 0
  %2830 = vmatprep.subr.mxu0 0.0
  %2831 = vmatpush1.msra.mxu0 0.0
  %2832 = vmatprep.subr.mxu0 0.0
  %2833 = vmatpush1.msra.mxu0 0.0
  %2834 = vmatprep.subr.mxu0 0.0
  %2835 = vmatpush1.msra.mxu0 0.0
  %2836 = vmatprep.subr.mxu0 0.0
  %2837 = vmatpush1.msra.mxu0 0.0
  %2838 = vmatprep.subr.mxu0 0.0
  %2839 = vmatpush1.msra.mxu0 0.0
  %2840 = vmatprep.subr.mxu0 0.0
  %2841 = vmatpush1.msra.mxu0 0.0
  %2842 = vmatprep.subr.mxu0 0.0
  %2843 = vmatpush1.msra.mxu0 0.0
  %2844 = vmatprep.subr.mxu0 0.0
  %2845 = vmatpush1.msra.mxu0 0.0
  %2846 = vmatprep.subr.mxu0 0.0
  %2847 = vmatpush1.msra.mxu0 0.0
  %2848 = vmatprep.subr.mxu0 0.0
  %2849 = vmatpush1.msra.mxu0 0.0
  %2850 = vmatprep.subr.mxu0 0.0
  %2851 = vmatpush1.msra.mxu0 0.0
  %2852 = vmatprep.subr.mxu0 0.0
  %2853 = vmatpush1.msra.mxu0 0.0
  %2854 = vmatprep.subr.mxu0 %v2660
  %2855 = vmatpush1.msra.mxu0 %v2659
  %2856 = vmatprep.subr.mxu0 %v2656
  %2857 = vmatpush1.msra.mxu0 %v2655
  %2858 = vmatprep.subr.mxu0 %v2652
  %2859 = vmatpush1.msra.mxu0 %v2651
  %2860 = vmatprep.subr.mxu0 %v2648
  %2861 = vmatpush1.msra.mxu0 %v2647
  %2862 = vmatprep.subr.mxu0 0.0
  %2863 = vmatpush2.msra.mxu0 0.0
  %2864 = vmatprep.subr.mxu0 0.0
  %2865 = vmatpush2.msra.mxu0 0.0
  %2866 = vmatprep.subr.mxu0 0.0
  %2867 = vmatpush2.msra.mxu0 0.0
  %2868 = vmatprep.subr.mxu0 0.0
  %2869 = vmatpush2.msra.mxu0 0.0
  %2870 = vmatprep.subr.mxu0 0.0
  %2871 = vmatpush2.msra.mxu0 0.0
  %2872 = vmatprep.subr.mxu0 0.0
  %2873 = vmatpush2.msra.mxu0 0.0
  %2874 = vmatprep.subr.mxu0 0.0
  %2875 = vmatpush2.msra.mxu0 0.0
  %2876 = vmatprep.subr.mxu0 0.0
  %2877 = vmatpush2.msra.mxu0 0.0
  %2878 = vmatprep.subr.mxu0 0.0
  %2879 = vmatpush2.msra.mxu0 0.0
  %2880 = vmatprep.subr.mxu0 0.0
  %2881 = vmatpush2.msra.mxu0 0.0
  %2882 = vmatprep.subr.mxu0 0.0
  %2883 = vmatpush2.msra.mxu0 0.0
  %2884 = vmatprep.subr.mxu0 0.0
  %2885 = vmatpush2.msra.mxu0 0.0
  %2886 = vmatprep.subr.mxu0 0.0
  %2887 = vmatpush2.msra.mxu0 0.0
  %2888 = vmatprep.subr.mxu0 0.0
  %2889 = vmatpush2.msra.mxu0 0.0
  %2890 = vmatprep.subr.mxu0 0.0
  %2891 = vmatpush2.msra.mxu0 0.0
  %2892 = vmatprep.subr.mxu0 0.0
  %2893 = vmatpush2.msra.mxu0 0.0
  %2894 = vmatprep.mubr.f32.mxu0 0.0
  %2895 = vmatmul.mubr.f32.gmra.mxu0 %v2828
  %v2896 = vpop.f32.mrf.mxu0
  %v2897 = vadd.f32 0.0, %v2896
  %v2898 = vpop.f32.mrf.mxu0
  %v2899 = vadd.f32 0.0, %v2898
  %2900 = vdwg.mxu0
  %2901 = vmatprep.subr.mxu0 0.0
  %2902 = vmatpush1.msra.mxu0 0.0
  %2903 = vmatprep.subr.mxu0 0.0
  %2904 = vmatpush1.msra.mxu0 0.0
  %2905 = vmatprep.subr.mxu0 0.0
  %2906 = vmatpush1.msra.mxu0 0.0
  %2907 = vmatprep.subr.mxu0 0.0
  %2908 = vmatpush1.msra.mxu0 0.0
  %2909 = vmatprep.subr.mxu0 0.0
  %2910 = vmatpush1.msra.mxu0 0.0
  %2911 = vmatprep.subr.mxu0 0.0
  %2912 = vmatpush1.msra.mxu0 0.0
  %2913 = vmatprep.subr.mxu0 0.0
  %2914 = vmatpush1.msra.mxu0 0.0
  %2915 = vmatprep.subr.mxu0 0.0
  %2916 = vmatpush1.msra.mxu0 0.0
  %2917 = vmatprep.subr.mxu0 0.0
  %2918 = vmatpush1.msra.mxu0 0.0
  %2919 = vmatprep.subr.mxu0 0.0
  %2920 = vmatpush1.msra.mxu0 0.0
  %2921 = vmatprep.subr.mxu0 0.0
  %2922 = vmatpush1.msra.mxu0 0.0
  %2923 = vmatprep.subr.mxu0 0.0
  %2924 = vmatpush1.msra.mxu0 0.0
  %2925 = vmatprep.subr.mxu0 %v2662
  %2926 = vmatpush1.msra.mxu0 %v2661
  %2927 = vmatprep.subr.mxu0 %v2658
  %2928 = vmatpush1.msra.mxu0 %v2657
  %2929 = vmatprep.subr.mxu0 %v2654
  %2930 = vmatpush1.msra.mxu0 %v2653
  %2931 = vmatprep.subr.mxu0 %v2650
  %2932 = vmatpush1.msra.mxu0 %v2649
  %2933 = vmatprep.subr.mxu0 0.0
  %2934 = vmatpush2.msra.mxu0 0.0
  %2935 = vmatprep.subr.mxu0 0.0
  %2936 = vmatpush2.msra.mxu0 0.0
  %2937 = vmatprep.subr.mxu0 0.0
  %2938 = vmatpush2.msra.mxu0 0.0
  %2939 = vmatprep.subr.mxu0 0.0
  %2940 = vmatpush2.msra.mxu0 0.0
  %2941 = vmatprep.subr.mxu0 0.0
  %2942 = vmatpush2.msra.mxu0 0.0
  %2943 = vmatprep.subr.mxu0 0.0
  %2944 = vmatpush2.msra.mxu0 0.0
  %2945 = vmatprep.subr.mxu0 0.0
  %2946 = vmatpush2.msra.mxu0 0.0
  %2947 = vmatprep.subr.mxu0 0.0
  %2948 = vmatpush2.msra.mxu0 0.0
  %2949 = vmatprep.subr.mxu0 0.0
  %2950 = vmatpush2.msra.mxu0 0.0
  %2951 = vmatprep.subr.mxu0 0.0
  %2952 = vmatpush2.msra.mxu0 0.0
  %2953 = vmatprep.subr.mxu0 0.0
  %2954 = vmatpush2.msra.mxu0 0.0
  %2955 = vmatprep.subr.mxu0 0.0
  %2956 = vmatpush2.msra.mxu0 0.0
  %2957 = vmatprep.subr.mxu0 0.0
  %2958 = vmatpush2.msra.mxu0 0.0
  %2959 = vmatprep.subr.mxu0 0.0
  %2960 = vmatpush2.msra.mxu0 0.0
  %2961 = vmatprep.subr.mxu0 0.0
  %2962 = vmatpush2.msra.mxu0 0.0
  %2963 = vmatprep.subr.mxu0 0.0
  %2964 = vmatpush2.msra.mxu0 0.0
  %2965 = vmatprep.mubr.f32.mxu0 0.0
  %2966 = vmatmul.mubr.f32.gmra.mxu0 %v2828
  %v2967 = vpop.f32.mrf.mxu0
  %v2968 = vadd.f32 0.0, %v2967
  %v2969 = vpop.f32.mrf.mxu0
  %v2970 = vadd.f32 0.0, %v2969
  %2971 = vdwg.mxu0
  %v2972 = vmax.f32 %v2897, 1e-30
  %v2973 = vmax.f32 %v2899, 1e-30
  %v2974 = vmax.f32 %v2968, 1e-30
  %v2975 = vmax.f32 %v2970, 1e-30
  %v2976 = vrcp.pop %v2972
  %v2977 = vrcp.pop %v2973
  %v2978 = vrcp.pop %v2974
  %v2979 = vrcp.pop %v2975
  %v2980 = vmul.f32 %v2674, %v2976
  %v2981 = vmul.f32 %v2676, %v2977
  %v2982 = vmul.f32 %v2678, %v2978
  %v2983 = vmul.f32 %v2680, %v2979
  %v2984 = vmul.f32 %v2053, %v985
  %v2985 = vmul.f32 %v2054, %v987
  %v2986 = vmul.f32 %v2055, %v1127
  %v2987 = vmul.f32 %v2056, %v1129
  %v2988 = vld [vmem:[%s4] sm:$0xff]
  %v2989 = vld [vmem:[%s4 + $0x8] sm:$0xff]
  %v2990 = vld [vmem:[%s4 + $0x10] sm:$0xff]
  %v2991 = vld [vmem:[%s4 + $0x18] sm:$0xff]
  %v2992 = vld [vmem:[%s4 + $0x20] sm:$0xff]
  %v2993 = vld [vmem:[%s4 + $0x28] sm:$0xff]
  %v2994 = vld [vmem:[%s4 + $0x30] sm:$0xff]
  %v2995 = vld [vmem:[%s4 + $0x38] sm:$0xff]
  %v2996 = vld [vmem:[%s4 + $0x40] sm:$0xff]
  %v2997 = vld [vmem:[%s4 + $0x48] sm:$0xff]
  %v2998 = vld [vmem:[%s4 + $0x50] sm:$0xff]
  %v2999 = vld [vmem:[%s4 + $0x58] sm:$0xff]
  %v3000 = vld [vmem:[%s4 + $0x60] sm:$0xff]
  %v3001 = vld [vmem:[%s4 + $0x68] sm:$0xff]
  %v3002 = vld [vmem:[%s4 + $0x70] sm:$0xff]
  %v3003 = vld [vmem:[%s4 + $0x78] sm:$0xff]
  %v3004 = vld [vmem:[%s4 + $0x80] sm:$0xff]
  %v3005 = vld [vmem:[%s4 + $0x88] sm:$0xff]
  %v3006 = vld [vmem:[%s4 + $0x90] sm:$0xff]
  %v3007 = vld [vmem:[%s4 + $0x98] sm:$0xff]
  %v3008 = vld [vmem:[%s4 + $0xa0] sm:$0xff]
  %v3009 = vld [vmem:[%s4 + $0xa8] sm:$0xff]
  %v3010 = vld [vmem:[%s4 + $0xb0] sm:$0xff]
  %v3011 = vld [vmem:[%s4 + $0xb8] sm:$0xff]
  %v3012 = vld [vmem:[%s4 + $0xc0] sm:$0xff]
  %v3013 = vld [vmem:[%s4 + $0xc8] sm:$0xff]
  %v3014 = vld [vmem:[%s4 + $0xd0] sm:$0xff]
  %v3015 = vld [vmem:[%s4 + $0xd8] sm:$0xff]
  %v3016 = vld [vmem:[%s4 + $0xe0] sm:$0xff]
  %v3017 = vld [vmem:[%s4 + $0xe8] sm:$0xff]
  %v3018 = vld [vmem:[%s4 + $0xf0] sm:$0xff]
  %v3019 = vld [vmem:[%s4 + $0xf8] sm:$0xff]
  %v3020 = vld [vmem:[%s4 + $0x100] sm:$0xff]
  %v3021 = vld [vmem:[%s4 + $0x108] sm:$0xff]
  %v3022 = vld [vmem:[%s4 + $0x110] sm:$0xff]
  %v3023 = vld [vmem:[%s4 + $0x118] sm:$0xff]
  %v3024 = vld [vmem:[%s4 + $0x120] sm:$0xff]
  %v3025 = vld [vmem:[%s4 + $0x128] sm:$0xff]
  %v3026 = vld [vmem:[%s4 + $0x130] sm:$0xff]
  %v3027 = vld [vmem:[%s4 + $0x138] sm:$0xff]
  %v3028 = vld [vmem:[%s4 + $0x140] sm:$0xff]
  %v3029 = vld [vmem:[%s4 + $0x148] sm:$0xff]
  %v3030 = vld [vmem:[%s4 + $0x150] sm:$0xff]
  %v3031 = vld [vmem:[%s4 + $0x158] sm:$0xff]
  %v3032 = vld [vmem:[%s4 + $0x160] sm:$0xff]
  %v3033 = vld [vmem:[%s4 + $0x168] sm:$0xff]
  %v3034 = vld [vmem:[%s4 + $0x170] sm:$0xff]
  %v3035 = vld [vmem:[%s4 + $0x178] sm:$0xff]
  %v3036 = vld [vmem:[%s4 + $0x180] sm:$0xff]
  %v3037 = vld [vmem:[%s4 + $0x188] sm:$0xff]
  %v3038 = vld [vmem:[%s4 + $0x190] sm:$0xff]
  %v3039 = vld [vmem:[%s4 + $0x198] sm:$0xff]
  %v3040 = vld [vmem:[%s4 + $0x1a0] sm:$0xf]
  %s3041 = scalar_lea.vmem %s4, 424
  %v3042 = vld [vmem:[%s3041] sm:$0xff]
  %v3043 = vld [vmem:[%s3041 + $0x8] sm:$0xff]
  %v3044 = vld [vmem:[%s3041 + $0x10] sm:$0xff]
  %v3045 = vld [vmem:[%s3041 + $0x18] sm:$0xff]
  %v3046 = vld [vmem:[%s3041 + $0x20] sm:$0xff]
  %v3047 = vld [vmem:[%s3041 + $0x28] sm:$0xff]
  %v3048 = vld [vmem:[%s3041 + $0x30] sm:$0xff]
  %v3049 = vld [vmem:[%s3041 + $0x38] sm:$0xff]
  %v3050 = vld [vmem:[%s3041 + $0x40] sm:$0xff]
  %v3051 = vld [vmem:[%s3041 + $0x48] sm:$0xff]
  %v3052 = vld [vmem:[%s3041 + $0x50] sm:$0xff]
  %v3053 = vld [vmem:[%s3041 + $0x58] sm:$0xff]
  %v3054 = vld [vmem:[%s3041 + $0x60] sm:$0xff]
  %v3055 = vld [vmem:[%s3041 + $0x68] sm:$0xff]
  %v3056 = vld [vmem:[%s3041 + $0x70] sm:$0xff]
  %v3057 = vld [vmem:[%s3041 + $0x78] sm:$0xff]
  %v3058 = vld [vmem:[%s3041 + $0x80] sm:$0xff]
  %v3059 = vld [vmem:[%s3041 + $0x88] sm:$0xff]
  %v3060 = vld [vmem:[%s3041 + $0x90] sm:$0xff]
  %v3061 = vld [vmem:[%s3041 + $0x98] sm:$0xff]
  %v3062 = vld [vmem:[%s3041 + $0xa0] sm:$0xff]
  %v3063 = vld [vmem:[%s3041 + $0xa8] sm:$0xff]
  %v3064 = vld [vmem:[%s3041 + $0xb0] sm:$0xff]
  %v3065 = vld [vmem:[%s3041 + $0xb8] sm:$0xff]
  %v3066 = vld [vmem:[%s3041 + $0xc0] sm:$0xff]
  %v3067 = vld [vmem:[%s3041 + $0xc8] sm:$0xff]
  %v3068 = vld [vmem:[%s3041 + $0xd0] sm:$0xff]
  %v3069 = vld [vmem:[%s3041 + $0xd8] sm:$0xff]
  %v3070 = vld [vmem:[%s3041 + $0xe0] sm:$0xff]
  %v3071 = vld [vmem:[%s3041 + $0xe8] sm:$0xff]
  %v3072 = vld [vmem:[%s3041 + $0xf0] sm:$0xff]
  %v3073 = vld [vmem:[%s3041 + $0xf8] sm:$0xff]
  %v3074 = vld [vmem:[%s3041 + $0x100] sm:$0xff]
  %v3075 = vld [vmem:[%s3041 + $0x108] sm:$0xff]
  %v3076 = vld [vmem:[%s3041 + $0x110] sm:$0xff]
  %v3077 = vld [vmem:[%s3041 + $0x118] sm:$0xff]
  %v3078 = vld [vmem:[%s3041 + $0x120] sm:$0xff]
  %v3079 = vld [vmem:[%s3041 + $0x128] sm:$0xff]
  %v3080 = vld [vmem:[%s3041 + $0x130] sm:$0xff]
  %v3081 = vld [vmem:[%s3041 + $0x138] sm:$0xff]
  %v3082 = vld [vmem:[%s3041 + $0x140] sm:$0xff]
  %v3083 = vld [vmem:[%s3041 + $0x148] sm:$0xff]
  %v3084 = vld [vmem:[%s3041 + $0x150] sm:$0xff]
  %v3085 = vld [vmem:[%s3041 + $0x158] sm:$0xff]
  %v3086 = vld [vmem:[%s3041 + $0x160] sm:$0xff]
  %v3087 = vld [vmem:[%s3041 + $0x168] sm:$0xff]
  %v3088 = vld [vmem:[%s3041 + $0x170] sm:$0xff]
  %v3089 = vld [vmem:[%s3041 + $0x178] sm:$0xff]
  %v3090 = vld [vmem:[%s3041 + $0x180] sm:$0xff]
  %v3091 = vld [vmem:[%s3041 + $0x188] sm:$0xff]
  %v3092 = vld [vmem:[%s3041 + $0x190] sm:$0xff]
  %v3093 = vld [vmem:[%s3041 + $0x198] sm:$0xff]
  %v3094 = vld [vmem:[%s3041 + $0x1a0] sm:$0xf]
  %v3096 = vsel %vm271, %v2056, 0
  %v3099 = vsel %vm275, %v3094, 0
  %3101 = vmatprep.subr.mxu0 0.0
  %3102 = vmatpush1.msra.mxu0 %v3057
  %3103 = vmatprep.subr.mxu0 0.0
  %3104 = vmatpush1.msra.mxu0 %v3056
  %3105 = vmatprep.subr.mxu0 0.0
  %3106 = vmatpush1.msra.mxu0 %v3055
  %3107 = vmatprep.subr.mxu0 0.0
  %3108 = vmatpush1.msra.mxu0 %v3054
  %3109 = vmatprep.subr.mxu0 0.0
  %3110 = vmatpush1.msra.mxu0 %v3053
  %3111 = vmatprep.subr.mxu0 0.0
  %3112 = vmatpush1.msra.mxu0 %v3052
  %3113 = vmatprep.subr.mxu0 0.0
  %3114 = vmatpush1.msra.mxu0 %v3051
  %3115 = vmatprep.subr.mxu0 0.0
  %3116 = vmatpush1.msra.mxu0 %v3050
  %3117 = vmatprep.subr.mxu0 0.0
  %3118 = vmatpush1.msra.mxu0 %v3049
  %3119 = vmatprep.subr.mxu0 0.0
  %3120 = vmatpush1.msra.mxu0 %v3048
  %3121 = vmatprep.subr.mxu0 0.0
  %3122 = vmatpush1.msra.mxu0 %v3047
  %3123 = vmatprep.subr.mxu0 0.0
  %3124 = vmatpush1.msra.mxu0 %v3046
  %3125 = vmatprep.subr.mxu0 0.0
  %3126 = vmatpush1.msra.mxu0 %v3045
  %3127 = vmatprep.subr.mxu0 0.0
  %3128 = vmatpush1.msra.mxu0 %v3044
  %3129 = vmatprep.subr.mxu0 0.0
  %3130 = vmatpush1.msra.mxu0 %v3043
  %3131 = vmatprep.subr.mxu0 0.0
  %3132 = vmatpush1.msra.mxu0 %v3042
  %3133 = vmatprep.subr.mxu0 0.0
  %3134 = vmatpush2.msra.mxu0 %v3073
  %3135 = vmatprep.subr.mxu0 0.0
  %3136 = vmatpush2.msra.mxu0 %v3072
  %3137 = vmatprep.subr.mxu0 0.0
  %3138 = vmatpush2.msra.mxu0 %v3071
  %3139 = vmatprep.subr.mxu0 0.0
  %3140 = vmatpush2.msra.mxu0 %v3070
  %3141 = vmatprep.subr.mxu0 0.0
  %3142 = vmatpush2.msra.mxu0 %v3069
  %3143 = vmatprep.subr.mxu0 0.0
  %3144 = vmatpush2.msra.mxu0 %v3068
  %3145 = vmatprep.subr.mxu0 0.0
  %3146 = vmatpush2.msra.mxu0 %v3067
  %3147 = vmatprep.subr.mxu0 0.0
  %3148 = vmatpush2.msra.mxu0 %v3066
  %3149 = vmatprep.subr.mxu0 0.0
  %3150 = vmatpush2.msra.mxu0 %v3065
  %3151 = vmatprep.subr.mxu0 0.0
  %3152 = vmatpush2.msra.mxu0 %v3064
  %3153 = vmatprep.subr.mxu0 0.0
  %3154 = vmatpush2.msra.mxu0 %v3063
  %3155 = vmatprep.subr.mxu0 0.0
  %3156 = vmatpush2.msra.mxu0 %v3062
  %3157 = vmatprep.subr.mxu0 0.0
  %3158 = vmatpush2.msra.mxu0 %v3061
  %3159 = vmatprep.subr.mxu0 0.0
  %3160 = vmatpush2.msra.mxu0 %v3060
  %3161 = vmatprep.subr.mxu0 0.0
  %3162 = vmatpush2.msra.mxu0 %v3059
  %3163 = vmatprep.subr.mxu0 0.0
  %3164 = vmatpush2.msra.mxu0 %v3058
  %3165 = vmatprep.mubr.f32.mxu0 %v2054
  %3166 = vmatmul.mubr.f32.gmra.mxu0 %v2053
  %v3167 = vpop.f32.mrf.mxu0
  %v3168 = vadd.f32 0.0, %v3167
  %v3169 = vpop.f32.mrf.mxu0
  %3170 = vdwg.mxu0
  %3171 = vmatprep.subr.mxu0 0.0
  %3172 = vmatpush1.msra.mxu0 %v3089
  %3173 = vmatprep.subr.mxu0 0.0
  %3174 = vmatpush1.msra.mxu0 %v3088
  %3175 = vmatprep.subr.mxu0 0.0
  %3176 = vmatpush1.msra.mxu0 %v3087
  %3177 = vmatprep.subr.mxu0 0.0
  %3178 = vmatpush1.msra.mxu0 %v3086
  %3179 = vmatprep.subr.mxu0 0.0
  %3180 = vmatpush1.msra.mxu0 %v3085
  %3181 = vmatprep.subr.mxu0 0.0
  %3182 = vmatpush1.msra.mxu0 %v3084
  %3183 = vmatprep.subr.mxu0 0.0
  %3184 = vmatpush1.msra.mxu0 %v3083
  %3185 = vmatprep.subr.mxu0 0.0
  %3186 = vmatpush1.msra.mxu0 %v3082
  %3187 = vmatprep.subr.mxu0 0.0
  %3188 = vmatpush1.msra.mxu0 %v3081
  %3189 = vmatprep.subr.mxu0 0.0
  %3190 = vmatpush1.msra.mxu0 %v3080
  %3191 = vmatprep.subr.mxu0 0.0
  %3192 = vmatpush1.msra.mxu0 %v3079
  %3193 = vmatprep.subr.mxu0 0.0
  %3194 = vmatpush1.msra.mxu0 %v3078
  %3195 = vmatprep.subr.mxu0 0.0
  %3196 = vmatpush1.msra.mxu0 %v3077
  %3197 = vmatprep.subr.mxu0 0.0
  %3198 = vmatpush1.msra.mxu0 %v3076
  %3199 = vmatprep.subr.mxu0 0.0
  %3200 = vmatpush1.msra.mxu0 %v3075
  %3201 = vmatprep.subr.mxu0 0.0
  %3202 = vmatpush1.msra.mxu0 %v3074
  %3203 = vmatprep.subr.mxu0 0.0
  %3204 = vmatpush2.msra.mxu0 0.0
  %3205 = vmatprep.subr.mxu0 0.0
  %3206 = vmatpush2.msra.mxu0 0.0
  %3207 = vmatprep.subr.mxu0 0.0
  %3208 = vmatpush2.msra.mxu0 0.0
  %3209 = vmatprep.subr.mxu0 0.0
  %3210 = vmatpush2.msra.mxu0 0.0
  %3211 = vmatprep.subr.mxu0 0.0
  %3212 = vmatpush2.msra.mxu0 0.0
  %3213 = vmatprep.subr.mxu0 0.0
  %3214 = vmatpush2.msra.mxu0 0.0
  %3215 = vmatprep.subr.mxu0 0.0
  %3216 = vmatpush2.msra.mxu0 0.0
  %3217 = vmatprep.subr.mxu0 0.0
  %3218 = vmatpush2.msra.mxu0 0.0
  %3219 = vmatprep.subr.mxu0 0.0
  %3220 = vmatpush2.msra.mxu0 0.0
  %3221 = vmatprep.subr.mxu0 0.0
  %3222 = vmatpush2.msra.mxu0 0.0
  %3223 = vmatprep.subr.mxu0 0.0
  %3224 = vmatpush2.msra.mxu0 0.0
  %3225 = vmatprep.subr.mxu0 0.0
  %3226 = vmatpush2.msra.mxu0 %v3099
  %3227 = vmatprep.subr.mxu0 0.0
  %3228 = vmatpush2.msra.mxu0 %v3093
  %3229 = vmatprep.subr.mxu0 0.0
  %3230 = vmatpush2.msra.mxu0 %v3092
  %3231 = vmatprep.subr.mxu0 0.0
  %3232 = vmatpush2.msra.mxu0 %v3091
  %3233 = vmatprep.subr.mxu0 0.0
  %3234 = vmatpush2.msra.mxu0 %v3090
  %3235 = vmatprep.mubr.f32.mxu0 %v3096
  %3236 = vmatmul.mubr.f32.gmra.mxu0 %v2055
  %v3237 = vpop.f32.mrf.mxu0
  %v3238 = vadd.f32 %v3168, %v3237
  %v3239 = vpop.f32.mrf.mxu0
  %3240 = vdwg.mxu0
  %v3242 = vsel %vm271, %v2987, 0
  %v3245 = vsel %vm275, %v3040, 0
  %3247 = vmatprep.subr.mxu0 0.0
  %3248 = vmatpush1.msra.mxu0 %v3003
  %3249 = vmatprep.subr.mxu0 0.0
  %3250 = vmatpush1.msra.mxu0 %v3002
  %3251 = vmatprep.subr.mxu0 0.0
  %3252 = vmatpush1.msra.mxu0 %v3001
  %3253 = vmatprep.subr.mxu0 0.0
  %3254 = vmatpush1.msra.mxu0 %v3000
  %3255 = vmatprep.subr.mxu0 0.0
  %3256 = vmatpush1.msra.mxu0 %v2999
  %3257 = vmatprep.subr.mxu0 0.0
  %3258 = vmatpush1.msra.mxu0 %v2998
  %3259 = vmatprep.subr.mxu0 0.0
  %3260 = vmatpush1.msra.mxu0 %v2997
  %3261 = vmatprep.subr.mxu0 0.0
  %3262 = vmatpush1.msra.mxu0 %v2996
  %3263 = vmatprep.subr.mxu0 0.0
  %3264 = vmatpush1.msra.mxu0 %v2995
  %3265 = vmatprep.subr.mxu0 0.0
  %3266 = vmatpush1.msra.mxu0 %v2994
  %3267 = vmatprep.subr.mxu0 0.0
  %3268 = vmatpush1.msra.mxu0 %v2993
  %3269 = vmatprep.subr.mxu0 0.0
  %3270 = vmatpush1.msra.mxu0 %v2992
  %3271 = vmatprep.subr.mxu0 0.0
  %3272 = vmatpush1.msra.mxu0 %v2991
  %3273 = vmatprep.subr.mxu0 0.0
  %3274 = vmatpush1.msra.mxu0 %v2990
  %3275 = vmatprep.subr.mxu0 0.0
  %3276 = vmatpush1.msra.mxu0 %v2989
  %3277 = vmatprep.subr.mxu0 0.0
  %3278 = vmatpush1.msra.mxu0 %v2988
  %3279 = vmatprep.subr.mxu0 0.0
  %3280 = vmatpush2.msra.mxu0 %v3019
  %3281 = vmatprep.subr.mxu0 0.0
  %3282 = vmatpush2.msra.mxu0 %v3018
  %3283 = vmatprep.subr.mxu0 0.0
  %3284 = vmatpush2.msra.mxu0 %v3017
  %3285 = vmatprep.subr.mxu0 0.0
  %3286 = vmatpush2.msra.mxu0 %v3016
  %3287 = vmatprep.subr.mxu0 0.0
  %3288 = vmatpush2.msra.mxu0 %v3015
  %3289 = vmatprep.subr.mxu0 0.0
  %3290 = vmatpush2.msra.mxu0 %v3014
  %3291 = vmatprep.subr.mxu0 0.0
  %3292 = vmatpush2.msra.mxu0 %v3013
  %3293 = vmatprep.subr.mxu0 0.0
  %3294 = vmatpush2.msra.mxu0 %v3012
  %3295 = vmatprep.subr.mxu0 0.0
  %3296 = vmatpush2.msra.mxu0 %v3011
  %3297 = vmatprep.subr.mxu0 0.0
  %3298 = vmatpush2.msra.mxu0 %v3010
  %3299 = vmatprep.subr.mxu0 0.0
  %3300 = vmatpush2.msra.mxu0 %v3009
  %3301 = vmatprep.subr.mxu0 0.0
  %3302 = vmatpush2.msra.mxu0 %v3008
  %3303 = vmatprep.subr.mxu0 0.0
  %3304 = vmatpush2.msra.mxu0 %v3007
  %3305 = vmatprep.subr.mxu0 0.0
  %3306 = vmatpush2.msra.mxu0 %v3006
  %3307 = vmatprep.subr.mxu0 0.0
  %3308 = vmatpush2.msra.mxu0 %v3005
  %3309 = vmatprep.subr.mxu0 0.0
  %3310 = vmatpush2.msra.mxu0 %v3004
  %3311 = vmatprep.mubr.f32.mxu0 %v2985
  %3312 = vmatmul.mubr.f32.gmra.mxu0 %v2984
  %v3313 = vpop.f32.mrf.mxu0
  %v3314 = vadd.f32 %v3238, %v3313
  %v3315 = vpop.f32.mrf.mxu0
  %3316 = vdwg.mxu0
  %3317 = vmatprep.subr.mxu0 0.0
  %3318 = vmatpush1.msra.mxu0 %v3035
  %3319 = vmatprep.subr.mxu0 0.0
  %3320 = vmatpush1.msra.mxu0 %v3034
  %3321 = vmatprep.subr.mxu0 0.0
  %3322 = vmatpush1.msra.mxu0 %v3033
  %3323 = vmatprep.subr.mxu0 0.0
  %3324 = vmatpush1.msra.mxu0 %v3032
  %3325 = vmatprep.subr.mxu0 0.0
  %3326 = vmatpush1.msra.mxu0 %v3031
  %3327 = vmatprep.subr.mxu0 0.0
  %3328 = vmatpush1.msra.mxu0 %v3030
  %3329 = vmatprep.subr.mxu0 0.0
  %3330 = vmatpush1.msra.mxu0 %v3029
  %3331 = vmatprep.subr.mxu0 0.0
  %3332 = vmatpush1.msra.mxu0 %v3028
  %3333 = vmatprep.subr.mxu0 0.0
  %3334 = vmatpush1.msra.mxu0 %v3027
  %3335 = vmatprep.subr.mxu0 0.0
  %3336 = vmatpush1.msra.mxu0 %v3026
  %3337 = vmatprep.subr.mxu0 0.0
  %3338 = vmatpush1.msra.mxu0 %v3025
  %3339 = vmatprep.subr.mxu0 0.0
  %3340 = vmatpush1.msra.mxu0 %v3024
  %3341 = vmatprep.subr.mxu0 0.0
  %3342 = vmatpush1.msra.mxu0 %v3023
  %3343 = vmatprep.subr.mxu0 0.0
  %3344 = vmatpush1.msra.mxu0 %v3022
  %3345 = vmatprep.subr.mxu0 0.0
  %3346 = vmatpush1.msra.mxu0 %v3021
  %3347 = vmatprep.subr.mxu0 0.0
  %3348 = vmatpush1.msra.mxu0 %v3020
  %3349 = vmatprep.subr.mxu0 0.0
  %3350 = vmatpush2.msra.mxu0 0.0
  %3351 = vmatprep.subr.mxu0 0.0
  %3352 = vmatpush2.msra.mxu0 0.0
  %3353 = vmatprep.subr.mxu0 0.0
  %3354 = vmatpush2.msra.mxu0 0.0
  %3355 = vmatprep.subr.mxu0 0.0
  %3356 = vmatpush2.msra.mxu0 0.0
  %3357 = vmatprep.subr.mxu0 0.0
  %3358 = vmatpush2.msra.mxu0 0.0
  %3359 = vmatprep.subr.mxu0 0.0
  %3360 = vmatpush2.msra.mxu0 0.0
  %3361 = vmatprep.subr.mxu0 0.0
  %3362 = vmatpush2.msra.mxu0 0.0
  %3363 = vmatprep.subr.mxu0 0.0
  %3364 = vmatpush2.msra.mxu0 0.0
  %3365 = vmatprep.subr.mxu0 0.0
  %3366 = vmatpush2.msra.mxu0 0.0
  %3367 = vmatprep.subr.mxu0 0.0
  %3368 = vmatpush2.msra.mxu0 0.0
  %3369 = vmatprep.subr.mxu0 0.0
  %3370 = vmatpush2.msra.mxu0 0.0
  %3371 = vmatprep.subr.mxu0 0.0
  %3372 = vmatpush2.msra.mxu0 %v3245
  %3373 = vmatprep.subr.mxu0 0.0
  %3374 = vmatpush2.msra.mxu0 %v3039
  %3375 = vmatprep.subr.mxu0 0.0
  %3376 = vmatpush2.msra.mxu0 %v3038
  %3377 = vmatprep.subr.mxu0 0.0
  %3378 = vmatpush2.msra.mxu0 %v3037
  %3379 = vmatprep.subr.mxu0 0.0
  %3380 = vmatpush2.msra.mxu0 %v3036
  %3381 = vmatprep.mubr.f32.mxu0 %v3242
  %3382 = vmatmul.mubr.f32.gmra.mxu0 %v2986
  %v3383 = vpop.f32.mrf.mxu0
  %v3384 = vadd.f32 %v3314, %v3383
  %v3385 = vpop.f32.mrf.mxu0
  %3386 = vdwg.mxu0
  %v3387 = vmul.f32 %v2980, %v33
  %v3388 = vmul.f32 %v2981, %v34
  %v3389 = vmul.f32 %v2982, %v35
  %v3390 = vmul.f32 %v2983, %v36
  %s3391 = scalar_lea.vmem %s4, 848
  %v3392 = vld [vmem:[%s3391] sm:$0xff]
  %v3393 = vld [vmem:[%s3391 + $0x8] sm:$0xff]
  %v3394 = vld [vmem:[%s3391 + $0x10] sm:$0xff]
  %v3395 = vld [vmem:[%s3391 + $0x18] sm:$0xff]
  %v3396 = vld [vmem:[%s3391 + $0x20] sm:$0xff]
  %v3397 = vld [vmem:[%s3391 + $0x28] sm:$0xff]
  %v3398 = vld [vmem:[%s3391 + $0x30] sm:$0xff]
  %v3399 = vld [vmem:[%s3391 + $0x38] sm:$0xff]
  %v3400 = vld [vmem:[%s3391 + $0x40] sm:$0xff]
  %v3401 = vld [vmem:[%s3391 + $0x48] sm:$0xff]
  %v3402 = vld [vmem:[%s3391 + $0x50] sm:$0xff]
  %v3403 = vld [vmem:[%s3391 + $0x58] sm:$0xff]
  %v3404 = vld [vmem:[%s3391 + $0x60] sm:$0xff]
  %v3405 = vld [vmem:[%s3391 + $0x68] sm:$0xff]
  %v3406 = vld [vmem:[%s3391 + $0x70] sm:$0xff]
  %v3407 = vld [vmem:[%s3391 + $0x78] sm:$0xff]
  %v3408 = vld [vmem:[%s3391 + $0x80] sm:$0xff]
  %v3409 = vld [vmem:[%s3391 + $0x88] sm:$0xff]
  %v3410 = vld [vmem:[%s3391 + $0x90] sm:$0xff]
  %v3411 = vld [vmem:[%s3391 + $0x98] sm:$0xff]
  %v3412 = vld [vmem:[%s3391 + $0xa0] sm:$0xff]
  %v3413 = vld [vmem:[%s3391 + $0xa8] sm:$0xff]
  %v3414 = vld [vmem:[%s3391 + $0xb0] sm:$0xff]
  %v3415 = vld [vmem:[%s3391 + $0xb8] sm:$0xff]
  %v3416 = vld [vmem:[%s3391 + $0xc0] sm:$0xff]
  %v3417 = vld [vmem:[%s3391 + $0xc8] sm:$0xff]
  %v3418 = vld [vmem:[%s3391 + $0xd0] sm:$0xff]
  %v3419 = vld [vmem:[%s3391 + $0xd8] sm:$0xff]
  %v3420 = vld [vmem:[%s3391 + $0xe0] sm:$0xff]
  %v3421 = vld [vmem:[%s3391 + $0xe8] sm:$0xff]
  %v3422 = vld [vmem:[%s3391 + $0xf0] sm:$0xff]
  %v3423 = vld [vmem:[%s3391 + $0xf8] sm:$0xff]
  %v3424 = vld [vmem:[%s3391 + $0x100] sm:$0xff]
  %v3425 = vld [vmem:[%s3391 + $0x108] sm:$0xff]
  %v3426 = vld [vmem:[%s3391 + $0x110] sm:$0xff]
  %v3427 = vld [vmem:[%s3391 + $0x118] sm:$0xff]
  %v3428 = vld [vmem:[%s3391 + $0x120] sm:$0xff]
  %v3429 = vld [vmem:[%s3391 + $0x128] sm:$0xff]
  %v3430 = vld [vmem:[%s3391 + $0x130] sm:$0xff]
  %v3431 = vld [vmem:[%s3391 + $0x138] sm:$0xff]
  %v3432 = vld [vmem:[%s3391 + $0x140] sm:$0xff]
  %v3433 = vld [vmem:[%s3391 + $0x148] sm:$0xff]
  %v3434 = vld [vmem:[%s3391 + $0x150] sm:$0xff]
  %v3435 = vld [vmem:[%s3391 + $0x158] sm:$0xff]
  %v3436 = vld [vmem:[%s3391 + $0x160] sm:$0xff]
  %v3437 = vld [vmem:[%s3391 + $0x168] sm:$0xff]
  %v3438 = vld [vmem:[%s3391 + $0x170] sm:$0xff]
  %v3439 = vld [vmem:[%s3391 + $0x178] sm:$0xff]
  %v3440 = vld [vmem:[%s3391 + $0x180] sm:$0xff]
  %v3441 = vld [vmem:[%s3391 + $0x188] sm:$0xff]
  %v3442 = vld [vmem:[%s3391 + $0x190] sm:$0xff]
  %v3443 = vld [vmem:[%s3391 + $0x198] sm:$0xff]
  %v3444 = vld [vmem:[%s3391 + $0x1a0] sm:$0xf]
  %v3446 = vsel %vm271, %v3390, 0
  %v3449 = vsel %vm275, %v3444, 0
  %3451 = vmatprep.subr.mxu0 0.0
  %3452 = vmatpush1.msra.mxu0 %v3407
  %3453 = vmatprep.subr.mxu0 0.0
  %3454 = vmatpush1.msra.mxu0 %v3406
  %3455 = vmatprep.subr.mxu0 0.0
  %3456 = vmatpush1.msra.mxu0 %v3405
  %3457 = vmatprep.subr.mxu0 0.0
  %3458 = vmatpush1.msra.mxu0 %v3404
  %3459 = vmatprep.subr.mxu0 0.0
  %3460 = vmatpush1.msra.mxu0 %v3403
  %3461 = vmatprep.subr.mxu0 0.0
  %3462 = vmatpush1.msra.mxu0 %v3402
  %3463 = vmatprep.subr.mxu0 0.0
  %3464 = vmatpush1.msra.mxu0 %v3401
  %3465 = vmatprep.subr.mxu0 0.0
  %3466 = vmatpush1.msra.mxu0 %v3400
  %3467 = vmatprep.subr.mxu0 0.0
  %3468 = vmatpush1.msra.mxu0 %v3399
  %3469 = vmatprep.subr.mxu0 0.0
  %3470 = vmatpush1.msra.mxu0 %v3398
  %3471 = vmatprep.subr.mxu0 0.0
  %3472 = vmatpush1.msra.mxu0 %v3397
  %3473 = vmatprep.subr.mxu0 0.0
  %3474 = vmatpush1.msra.mxu0 %v3396
  %3475 = vmatprep.subr.mxu0 0.0
  %3476 = vmatpush1.msra.mxu0 %v3395
  %3477 = vmatprep.subr.mxu0 0.0
  %3478 = vmatpush1.msra.mxu0 %v3394
  %3479 = vmatprep.subr.mxu0 0.0
  %3480 = vmatpush1.msra.mxu0 %v3393
  %3481 = vmatprep.subr.mxu0 0.0
  %3482 = vmatpush1.msra.mxu0 %v3392
  %3483 = vmatprep.subr.mxu0 0.0
  %3484 = vmatpush2.msra.mxu0 %v3423
  %3485 = vmatprep.subr.mxu0 0.0
  %3486 = vmatpush2.msra.mxu0 %v3422
  %3487 = vmatprep.subr.mxu0 0.0
  %3488 = vmatpush2.msra.mxu0 %v3421
  %3489 = vmatprep.subr.mxu0 0.0
  %3490 = vmatpush2.msra.mxu0 %v3420
  %3491 = vmatprep.subr.mxu0 0.0
  %3492 = vmatpush2.msra.mxu0 %v3419
  %3493 = vmatprep.subr.mxu0 0.0
  %3494 = vmatpush2.msra.mxu0 %v3418
  %3495 = vmatprep.subr.mxu0 0.0
  %3496 = vmatpush2.msra.mxu0 %v3417
  %3497 = vmatprep.subr.mxu0 0.0
  %3498 = vmatpush2.msra.mxu0 %v3416
  %3499 = vmatprep.subr.mxu0 0.0
  %3500 = vmatpush2.msra.mxu0 %v3415
  %3501 = vmatprep.subr.mxu0 0.0
  %3502 = vmatpush2.msra.mxu0 %v3414
  %3503 = vmatprep.subr.mxu0 0.0
  %3504 = vmatpush2.msra.mxu0 %v3413
  %3505 = vmatprep.subr.mxu0 0.0
  %3506 = vmatpush2.msra.mxu0 %v3412
  %3507 = vmatprep.subr.mxu0 0.0
  %3508 = vmatpush2.msra.mxu0 %v3411
  %3509 = vmatprep.subr.mxu0 0.0
  %3510 = vmatpush2.msra.mxu0 %v3410
  %3511 = vmatprep.subr.mxu0 0.0
  %3512 = vmatpush2.msra.mxu0 %v3409
  %3513 = vmatprep.subr.mxu0 0.0
  %3514 = vmatpush2.msra.mxu0 %v3408
  %3515 = vmatprep.mubr.f32.mxu0 %v3388
  %3516 = vmatmul.mubr.f32.gmra.mxu0 %v3387
  %v3517 = vpop.f32.mrf.mxu0
  %v3518 = vadd.f32 0.0, %v3517
  %v3519 = vpop.f32.mrf.mxu0
  %3520 = vdwg.mxu0
  %3521 = vmatprep.subr.mxu0 0.0
  %3522 = vmatpush1.msra.mxu0 %v3439
  %3523 = vmatprep.subr.mxu0 0.0
  %3524 = vmatpush1.msra.mxu0 %v3438
  %3525 = vmatprep.subr.mxu0 0.0
  %3526 = vmatpush1.msra.mxu0 %v3437
  %3527 = vmatprep.subr.mxu0 0.0
  %3528 = vmatpush1.msra.mxu0 %v3436
  %3529 = vmatprep.subr.mxu0 0.0
  %3530 = vmatpush1.msra.mxu0 %v3435
  %3531 = vmatprep.subr.mxu0 0.0
  %3532 = vmatpush1.msra.mxu0 %v3434
  %3533 = vmatprep.subr.mxu0 0.0
  %3534 = vmatpush1.msra.mxu0 %v3433
  %3535 = vmatprep.subr.mxu0 0.0
  %3536 = vmatpush1.msra.mxu0 %v3432
  %3537 = vmatprep.subr.mxu0 0.0
  %3538 = vmatpush1.msra.mxu0 %v3431
  %3539 = vmatprep.subr.mxu0 0.0
  %3540 = vmatpush1.msra.mxu0 %v3430
  %3541 = vmatprep.subr.mxu0 0.0
  %3542 = vmatpush1.msra.mxu0 %v3429
  %3543 = vmatprep.subr.mxu0 0.0
  %3544 = vmatpush1.msra.mxu0 %v3428
  %3545 = vmatprep.subr.mxu0 0.0
  %3546 = vmatpush1.msra.mxu0 %v3427
  %3547 = vmatprep.subr.mxu0 0.0
  %3548 = vmatpush1.msra.mxu0 %v3426
  %3549 = vmatprep.subr.mxu0 0.0
  %3550 = vmatpush1.msra.mxu0 %v3425
  %3551 = vmatprep.subr.mxu0 0.0
  %3552 = vmatpush1.msra.mxu0 %v3424
  %3553 = vmatprep.subr.mxu0 0.0
  %3554 = vmatpush2.msra.mxu0 0.0
  %3555 = vmatprep.subr.mxu0 0.0
  %3556 = vmatpush2.msra.mxu0 0.0
  %3557 = vmatprep.subr.mxu0 0.0
  %3558 = vmatpush2.msra.mxu0 0.0
  %3559 = vmatprep.subr.mxu0 0.0
  %3560 = vmatpush2.msra.mxu0 0.0
  %3561 = vmatprep.subr.mxu0 0.0
  %3562 = vmatpush2.msra.mxu0 0.0
  %3563 = vmatprep.subr.mxu0 0.0
  %3564 = vmatpush2.msra.mxu0 0.0
  %3565 = vmatprep.subr.mxu0 0.0
  %3566 = vmatpush2.msra.mxu0 0.0
  %3567 = vmatprep.subr.mxu0 0.0
  %3568 = vmatpush2.msra.mxu0 0.0
  %3569 = vmatprep.subr.mxu0 0.0
  %3570 = vmatpush2.msra.mxu0 0.0
  %3571 = vmatprep.subr.mxu0 0.0
  %3572 = vmatpush2.msra.mxu0 0.0
  %3573 = vmatprep.subr.mxu0 0.0
  %3574 = vmatpush2.msra.mxu0 0.0
  %3575 = vmatprep.subr.mxu0 0.0
  %3576 = vmatpush2.msra.mxu0 %v3449
  %3577 = vmatprep.subr.mxu0 0.0
  %3578 = vmatpush2.msra.mxu0 %v3443
  %3579 = vmatprep.subr.mxu0 0.0
  %3580 = vmatpush2.msra.mxu0 %v3442
  %3581 = vmatprep.subr.mxu0 0.0
  %3582 = vmatpush2.msra.mxu0 %v3441
  %3583 = vmatprep.subr.mxu0 0.0
  %3584 = vmatpush2.msra.mxu0 %v3440
  %3585 = vmatprep.mubr.f32.mxu0 %v3446
  %3586 = vmatmul.mubr.f32.gmra.mxu0 %v3389
  %v3587 = vpop.f32.mrf.mxu0
  %v3588 = vadd.f32 %v3518, %v3587
  %v3589 = vpop.f32.mrf.mxu0
  %3590 = vdwg.mxu0
  %v3591 = vadd.f32 %v3384, %v3588
  %s3592 = scalar_lea.vmem %s4, 1272
  %v3593 = vld [vmem:[%s3592] sm:$0xff]
  %v3594 = vld [vmem:[%s3592 + $0x8] sm:$0xff]
  %v3595 = vld [vmem:[%s3592 + $0x10] sm:$0xff]
  %v3596 = vld [vmem:[%s3592 + $0x18] sm:$0xff]
  %v3597 = vld [vmem:[%s3592 + $0x20] sm:$0xff]
  %v3598 = vld [vmem:[%s3592 + $0x28] sm:$0xff]
  %v3599 = vld [vmem:[%s3592 + $0x30] sm:$0xff]
  %v3600 = vld [vmem:[%s3592 + $0x38] sm:$0xff]
  %v3601 = vld [vmem:[%s3592 + $0x40] sm:$0xff]
  %v3602 = vld [vmem:[%s3592 + $0x48] sm:$0xff]
  %v3603 = vld [vmem:[%s3592 + $0x50] sm:$0xff]
  %v3604 = vld [vmem:[%s3592 + $0x58] sm:$0xff]
  %v3605 = vld [vmem:[%s3592 + $0x60] sm:$0xff]
  %v3606 = vld [vmem:[%s3592 + $0x68] sm:$0xff]
  %v3607 = vld [vmem:[%s3592 + $0x70] sm:$0xff]
  %v3608 = vld [vmem:[%s3592 + $0x78] sm:$0xff]
  %v3609 = vld [vmem:[%s3592 + $0x80] sm:$0xff]
  %v3610 = vld [vmem:[%s3592 + $0x88] sm:$0xff]
  %v3611 = vld [vmem:[%s3592 + $0x90] sm:$0xff]
  %v3612 = vld [vmem:[%s3592 + $0x98] sm:$0xff]
  %v3613 = vld [vmem:[%s3592 + $0xa0] sm:$0xff]
  %v3614 = vld [vmem:[%s3592 + $0xa8] sm:$0xff]
  %v3615 = vld [vmem:[%s3592 + $0xb0] sm:$0xff]
  %v3616 = vld [vmem:[%s3592 + $0xb8] sm:$0xff]
  %v3617 = vld [vmem:[%s3592 + $0xc0] sm:$0xff]
  %v3618 = vld [vmem:[%s3592 + $0xc8] sm:$0xff]
  %v3619 = vld [vmem:[%s3592 + $0xd0] sm:$0xff]
  %v3620 = vld [vmem:[%s3592 + $0xd8] sm:$0xff]
  %v3621 = vld [vmem:[%s3592 + $0xe0] sm:$0xff]
  %v3622 = vld [vmem:[%s3592 + $0xe8] sm:$0xff]
  %v3623 = vld [vmem:[%s3592 + $0xf0] sm:$0xff]
  %v3624 = vld [vmem:[%s3592 + $0xf8] sm:$0xff]
  %v3625 = vld [vmem:[%s3592 + $0x100] sm:$0xff]
  %v3626 = vld [vmem:[%s3592 + $0x108] sm:$0xff]
  %v3627 = vld [vmem:[%s3592 + $0x110] sm:$0xff]
  %v3628 = vld [vmem:[%s3592 + $0x118] sm:$0xff]
  %v3629 = vld [vmem:[%s3592 + $0x120] sm:$0xff]
  %v3630 = vld [vmem:[%s3592 + $0x128] sm:$0xff]
  %v3631 = vld [vmem:[%s3592 + $0x130] sm:$0xff]
  %v3632 = vld [vmem:[%s3592 + $0x138] sm:$0xff]
  %v3633 = vld [vmem:[%s3592 + $0x140] sm:$0xff]
  %v3634 = vld [vmem:[%s3592 + $0x148] sm:$0xff]
  %v3635 = vld [vmem:[%s3592 + $0x150] sm:$0xff]
  %v3636 = vld [vmem:[%s3592 + $0x158] sm:$0xff]
  %v3637 = vld [vmem:[%s3592 + $0x160] sm:$0xff]
  %v3638 = vld [vmem:[%s3592 + $0x168] sm:$0xff]
  %v3639 = vld [vmem:[%s3592 + $0x170] sm:$0xff]
  %v3640 = vld [vmem:[%s3592 + $0x178] sm:$0xff]
  %v3641 = vld [vmem:[%s3592 + $0x180] sm:$0xff]
  %v3642 = vld [vmem:[%s3592 + $0x188] sm:$0xff]
  %v3643 = vld [vmem:[%s3592 + $0x190] sm:$0xff]
  %v3644 = vld [vmem:[%s3592 + $0x198] sm:$0xff]
  %v3645 = vld [vmem:[%s3592 + $0x1a0] sm:$0xf]
  %v3647 = vsel %vm271, %v2983, 0
  %v3650 = vsel %vm275, %v3645, 0
  %3652 = vmatprep.subr.mxu0 0.0
  %3653 = vmatpush1.msra.mxu0 %v3608
  %3654 = vmatprep.subr.mxu0 0.0
  %3655 = vmatpush1.msra.mxu0 %v3607
  %3656 = vmatprep.subr.mxu0 0.0
  %3657 = vmatpush1.msra.mxu0 %v3606
  %3658 = vmatprep.subr.mxu0 0.0
  %3659 = vmatpush1.msra.mxu0 %v3605
  %3660 = vmatprep.subr.mxu0 0.0
  %3661 = vmatpush1.msra.mxu0 %v3604
  %3662 = vmatprep.subr.mxu0 0.0
  %3663 = vmatpush1.msra.mxu0 %v3603
  %3664 = vmatprep.subr.mxu0 0.0
  %3665 = vmatpush1.msra.mxu0 %v3602
  %3666 = vmatprep.subr.mxu0 0.0
  %3667 = vmatpush1.msra.mxu0 %v3601
  %3668 = vmatprep.subr.mxu0 0.0
  %3669 = vmatpush1.msra.mxu0 %v3600
  %3670 = vmatprep.subr.mxu0 0.0
  %3671 = vmatpush1.msra.mxu0 %v3599
  %3672 = vmatprep.subr.mxu0 0.0
  %3673 = vmatpush1.msra.mxu0 %v3598
  %3674 = vmatprep.subr.mxu0 0.0
  %3675 = vmatpush1.msra.mxu0 %v3597
  %3676 = vmatprep.subr.mxu0 0.0
  %3677 = vmatpush1.msra.mxu0 %v3596
  %3678 = vmatprep.subr.mxu0 0.0
  %3679 = vmatpush1.msra.mxu0 %v3595
  %3680 = vmatprep.subr.mxu0 0.0
  %3681 = vmatpush1.msra.mxu0 %v3594
  %3682 = vmatprep.subr.mxu0 0.0
  %3683 = vmatpush1.msra.mxu0 %v3593
  %3684 = vmatprep.subr.mxu0 0.0
  %3685 = vmatpush2.msra.mxu0 %v3624
  %3686 = vmatprep.subr.mxu0 0.0
  %3687 = vmatpush2.msra.mxu0 %v3623
  %3688 = vmatprep.subr.mxu0 0.0
  %3689 = vmatpush2.msra.mxu0 %v3622
  %3690 = vmatprep.subr.mxu0 0.0
  %3691 = vmatpush2.msra.mxu0 %v3621
  %3692 = vmatprep.subr.mxu0 0.0
  %3693 = vmatpush2.msra.mxu0 %v3620
  %3694 = vmatprep.subr.mxu0 0.0
  %3695 = vmatpush2.msra.mxu0 %v3619
  %3696 = vmatprep.subr.mxu0 0.0
  %3697 = vmatpush2.msra.mxu0 %v3618
  %3698 = vmatprep.subr.mxu0 0.0
  %3699 = vmatpush2.msra.mxu0 %v3617
  %3700 = vmatprep.subr.mxu0 0.0
  %3701 = vmatpush2.msra.mxu0 %v3616
  %3702 = vmatprep.subr.mxu0 0.0
  %3703 = vmatpush2.msra.mxu0 %v3615
  %3704 = vmatprep.subr.mxu0 0.0
  %3705 = vmatpush2.msra.mxu0 %v3614
  %3706 = vmatprep.subr.mxu0 0.0
  %3707 = vmatpush2.msra.mxu0 %v3613
  %3708 = vmatprep.subr.mxu0 0.0
  %3709 = vmatpush2.msra.mxu0 %v3612
  %3710 = vmatprep.subr.mxu0 0.0
  %3711 = vmatpush2.msra.mxu0 %v3611
  %3712 = vmatprep.subr.mxu0 0.0
  %3713 = vmatpush2.msra.mxu0 %v3610
  %3714 = vmatprep.subr.mxu0 0.0
  %3715 = vmatpush2.msra.mxu0 %v3609
  %3716 = vmatprep.mubr.f32.mxu0 %v2981
  %3717 = vmatmul.mubr.f32.gmra.mxu0 %v2980
  %v3718 = vpop.f32.mrf.mxu0
  %v3719 = vadd.f32 0.0, %v3718
  %v3720 = vpop.f32.mrf.mxu0
  %3721 = vdwg.mxu0
  %3722 = vmatprep.subr.mxu0 0.0
  %3723 = vmatpush1.msra.mxu0 %v3640
  %3724 = vmatprep.subr.mxu0 0.0
  %3725 = vmatpush1.msra.mxu0 %v3639
  %3726 = vmatprep.subr.mxu0 0.0
  %3727 = vmatpush1.msra.mxu0 %v3638
  %3728 = vmatprep.subr.mxu0 0.0
  %3729 = vmatpush1.msra.mxu0 %v3637
  %3730 = vmatprep.subr.mxu0 0.0
  %3731 = vmatpush1.msra.mxu0 %v3636
  %3732 = vmatprep.subr.mxu0 0.0
  %3733 = vmatpush1.msra.mxu0 %v3635
  %3734 = vmatprep.subr.mxu0 0.0
  %3735 = vmatpush1.msra.mxu0 %v3634
  %3736 = vmatprep.subr.mxu0 0.0
  %3737 = vmatpush1.msra.mxu0 %v3633
  %3738 = vmatprep.subr.mxu0 0.0
  %3739 = vmatpush1.msra.mxu0 %v3632
  %3740 = vmatprep.subr.mxu0 0.0
  %3741 = vmatpush1.msra.mxu0 %v3631
  %3742 = vmatprep.subr.mxu0 0.0
  %3743 = vmatpush1.msra.mxu0 %v3630
  %3744 = vmatprep.subr.mxu0 0.0
  %3745 = vmatpush1.msra.mxu0 %v3629
  %3746 = vmatprep.subr.mxu0 0.0
  %3747 = vmatpush1.msra.mxu0 %v3628
  %3748 = vmatprep.subr.mxu0 0.0
  %3749 = vmatpush1.msra.mxu0 %v3627
  %3750 = vmatprep.subr.mxu0 0.0
  %3751 = vmatpush1.msra.mxu0 %v3626
  %3752 = vmatprep.subr.mxu0 0.0
  %3753 = vmatpush1.msra.mxu0 %v3625
  %3754 = vmatprep.subr.mxu0 0.0
  %3755 = vmatpush2.msra.mxu0 0.0
  %3756 = vmatprep.subr.mxu0 0.0
  %3757 = vmatpush2.msra.mxu0 0.0
  %3758 = vmatprep.subr.mxu0 0.0
  %3759 = vmatpush2.msra.mxu0 0.0
  %3760 = vmatprep.subr.mxu0 0.0
  %3761 = vmatpush2.msra.mxu0 0.0
  %3762 = vmatprep.subr.mxu0 0.0
  %3763 = vmatpush2.msra.mxu0 0.0
  %3764 = vmatprep.subr.mxu0 0.0
  %3765 = vmatpush2.msra.mxu0 0.0
  %3766 = vmatprep.subr.mxu0 0.0
  %3767 = vmatpush2.msra.mxu0 0.0
  %3768 = vmatprep.subr.mxu0 0.0
  %3769 = vmatpush2.msra.mxu0 0.0
  %3770 = vmatprep.subr.mxu0 0.0
  %3771 = vmatpush2.msra.mxu0 0.0
  %3772 = vmatprep.subr.mxu0 0.0
  %3773 = vmatpush2.msra.mxu0 0.0
  %3774 = vmatprep.subr.mxu0 0.0
  %3775 = vmatpush2.msra.mxu0 0.0
  %3776 = vmatprep.subr.mxu0 0.0
  %3777 = vmatpush2.msra.mxu0 %v3650
  %3778 = vmatprep.subr.mxu0 0.0
  %3779 = vmatpush2.msra.mxu0 %v3644
  %3780 = vmatprep.subr.mxu0 0.0
  %3781 = vmatpush2.msra.mxu0 %v3643
  %3782 = vmatprep.subr.mxu0 0.0
  %3783 = vmatpush2.msra.mxu0 %v3642
  %3784 = vmatprep.subr.mxu0 0.0
  %3785 = vmatpush2.msra.mxu0 %v3641
  %3786 = vmatprep.mubr.f32.mxu0 %v3647
  %3787 = vmatmul.mubr.f32.gmra.mxu0 %v2982
  %v3788 = vpop.f32.mrf.mxu0
  %v3789 = vadd.f32 %v3719, %v3788
  %v3790 = vpop.f32.mrf.mxu0
  %3791 = vdwg.mxu0
  %v3792 = vadd.f32 %v3591, %v3789
  %v3793 = vld [vmem:[%s7] sm:$0x1]
  %v3795 = vlaneseq
  %v3796 = vshrl.u32 %v3795, 7
  %v3797 = vsub.s32 0, %v3796
  %v3798 = vrot.slane %v3793, %v3797
  %v3800 = vadd.f32 %v3792, %v3798
  %s3801 = scalar_lea.vmem %s7, 1
  %v3802 = vld [vmem:[%s3801] sm:$0x1]
  %s3803 = scalar_lea.vmem %s7, 2
  %v3804 = vld [vmem:[%s3803] sm:$0x1]
  %3806 = vset.pattern.permute.xlu0 0
  %3807 = vperm.xlu0 %3806, %v3804
  %v3808 = vpop.permute.xlu0 %3807
  %v3810 = vlaneseq
  %v3811 = vshrl.u32 %v3810, 7
  %v3812 = vsub.s32 0, %v3811
  %v3813 = vrot.slane %v3808, %v3812
  %vm3814 = vcmask 523264
  %v3816 = vsel %vm3814, %v3802, 0
  %v3819 = vsel %vm3814, %v3800, 0
  %3821 = vmatprep.subr.mxu0 0.0
  %3822 = vmatpush1.xpose.msra.mxu0 0.0
  %3823 = vmatprep.subr.mxu0 0.0
  %3824 = vmatpush1.xpose.msra.mxu0 0.0
  %3825 = vmatprep.subr.mxu0 0.0
  %3826 = vmatpush1.xpose.msra.mxu0 0.0
  %3827 = vmatprep.subr.mxu0 0.0
  %3828 = vmatpush1.xpose.msra.mxu0 0.0
  %3829 = vmatprep.subr.mxu0 0.0
  %3830 = vmatpush1.xpose.msra.mxu0 0.0
  %3831 = vmatprep.subr.mxu0 0.0
  %3832 = vmatpush1.xpose.msra.mxu0 0.0
  %3833 = vmatprep.subr.mxu0 0.0
  %3834 = vmatpush1.xpose.msra.mxu0 0.0
  %3835 = vmatprep.subr.mxu0 0.0
  %3836 = vmatpush1.xpose.msra.mxu0 0.0
  %3837 = vmatprep.subr.mxu0 0.0
  %3838 = vmatpush1.xpose.msra.mxu0 0.0
  %3839 = vmatprep.subr.mxu0 0.0
  %3840 = vmatpush1.xpose.msra.mxu0 0.0
  %3841 = vmatprep.subr.mxu0 0.0
  %3842 = vmatpush1.xpose.msra.mxu0 0.0
  %3843 = vmatprep.subr.mxu0 0.0
  %3844 = vmatpush1.xpose.msra.mxu0 0.0
  %3845 = vmatprep.subr.mxu0 0.0
  %3846 = vmatpush1.xpose.msra.mxu0 0.0
  %3847 = vmatprep.subr.mxu0 0.0
  %3848 = vmatpush1.xpose.msra.mxu0 0.0
  %3849 = vmatprep.subr.mxu0 0.0
  %3850 = vmatpush1.xpose.msra.mxu0 0.0
  %3851 = vmatprep.subr.mxu0 0.0
  %3852 = vmatpush1.xpose.msra.mxu0 %v3819
  %3853 = vmatprep.subr.mxu0 0.0
  %3854 = vmatpush2.xpose.msra.mxu0 0.0
  %3855 = vmatprep.subr.mxu0 0.0
  %3856 = vmatpush2.xpose.msra.mxu0 0.0
  %3857 = vmatprep.subr.mxu0 0.0
  %3858 = vmatpush2.xpose.msra.mxu0 0.0
  %3859 = vmatprep.subr.mxu0 0.0
  %3860 = vmatpush2.xpose.msra.mxu0 0.0
  %3861 = vmatprep.subr.mxu0 0.0
  %3862 = vmatpush2.xpose.msra.mxu0 0.0
  %3863 = vmatprep.subr.mxu0 0.0
  %3864 = vmatpush2.xpose.msra.mxu0 0.0
  %3865 = vmatprep.subr.mxu0 0.0
  %3866 = vmatpush2.xpose.msra.mxu0 0.0
  %3867 = vmatprep.subr.mxu0 0.0
  %3868 = vmatpush2.xpose.msra.mxu0 0.0
  %3869 = vmatprep.subr.mxu0 0.0
  %3870 = vmatpush2.xpose.msra.mxu0 0.0
  %3871 = vmatprep.subr.mxu0 0.0
  %3872 = vmatpush2.xpose.msra.mxu0 0.0
  %3873 = vmatprep.subr.mxu0 0.0
  %3874 = vmatpush2.xpose.msra.mxu0 0.0
  %3875 = vmatprep.subr.mxu0 0.0
  %3876 = vmatpush2.xpose.msra.mxu0 0.0
  %3877 = vmatprep.subr.mxu0 0.0
  %3878 = vmatpush2.xpose.msra.mxu0 0.0
  %3879 = vmatprep.subr.mxu0 0.0
  %3880 = vmatpush2.xpose.msra.mxu0 0.0
  %3881 = vmatprep.subr.mxu0 0.0
  %3882 = vmatpush2.xpose.msra.mxu0 0.0
  %3883 = vmatprep.subr.mxu0 0.0
  %3884 = vmatpush2.xpose.msra.mxu0 0.0
  %3885 = vmatprep.mubr.f32.mxu0 0.0
  %3886 = vmatmul.mubr.f32.gmra.mxu0 %v3816
  %v3887 = vpop.f32.mrf.mxu0
  %v3888 = vadd.f32 %v3813, %v3887
  %v3889 = vpop.f32.mrf.mxu0
  %3890 = vdwg.mxu0
  %vm3891 = vcmask 57344
  %3892 = vst.msk [vmem:[%s8] sm:$0x1] %vm3891, %v3888
  // Predicated region
  $region34: #{encoder_forward.1} parent=0 // pred_check
    _
  $region35: #{encoder_forward.1} parent=0 // pred_check_branch
    %3894 = sbr.rel (0) target = $region37
  $region36: #{encoder_forward.1} parent=0 // pred_region
    _
  $region37: #{encoder_forward.1} parent=0 // pred_fallthru
    _
  // Predicated region
  $region38: #{encoder_forward.1} parent=0 // pred_check
    _
  $region39: #{encoder_forward.1} parent=0 // pred_check_branch
    %3896 = sbr.rel (0) target = $region41
  $region40: #{encoder_forward.1} parent=0 // pred_region
    _
  $region41: #{encoder_forward.1} parent=0 // pred_fallthru
    _

</llo_original>
